<compile_context>
chip_gen: v6e
topology: v6e:2x2x1
jax: 0.10.0
libtpu: 0.0.40
codegen_flags: <defaults>
</compile_context>

<pallas_src>
import numpy as np
import jax
import jax.numpy as jnp
from jax.experimental import pallas as pl
from jax.experimental.pallas import tpu as pltpu


# ----------------------------- config (small, consistent with module) -----------------------------
class Config:
    sample_rate = 16000
    n_mels = 40                   # fixed by init_buffer (buffer is 40 x 101)
    cnn_out_channels = 4
    kernel_size = (5, 20)
    stride = (2, 8)
    hidden_size = 32
    gru_num_layers = 2
    bidirectional = False         # classifier takes hidden_size -> must be False
    num_classes = 2


CFG = Config()
MAX_WINDOW_LEN = 101
N_FFT = 400
WIN_LENGTH = 400
HOP_LENGTH = 160
N_FREQS = N_FFT // 2 + 1          # 201
DFT_COLS = 512                    # [cos | zero-pad | sin | zero-pad], halves 128-lane aligned
FB_ROWS = 256                     # mel filterbank rows zero-padded to 256

CONV_OUT_FREQ = (CFG.n_mels - CFG.kernel_size[0]) // CFG.stride[0] + 1       # 18
CONV_OUT_TIME = (MAX_WINDOW_LEN - CFG.kernel_size[1]) // CFG.stride[1] + 1   # 11
GRU_INPUT = CONV_OUT_FREQ * CFG.cnn_out_channels                             # 72
H = CFG.hidden_size                                                          # 32
TAP_GROUP = 4                                                                # taps merged per gi dot

VMEM_SPEC = lambda: pl.BlockSpec(memory_space=pltpu.MemorySpace.VMEM)


# ----------------------------- deterministic constants (melspec / conv selection) -----------------
def _hann_periodic(n):
    i = np.arange(n, dtype=np.float64)
    return (0.5 - 0.5 * np.cos(2.0 * np.pi * i / n)).astype(np.float32)


def _dft_mats(n_fft, n_freqs):
    n = np.arange(n_fft, dtype=np.float64)[:, None]
    k = np.arange(n_freqs, dtype=np.float64)[None, :]
    ang = 2.0 * np.pi * n * k / n_fft
    return np.cos(ang).astype(np.float32), np.sin(ang).astype(np.float32)


def _mel_fbank(n_freqs, f_min, f_max, n_mels, sample_rate):
    # torchaudio.functional.melscale_fbanks, mel_scale='htk', norm=None
    all_freqs = np.linspace(0.0, sample_rate // 2, n_freqs)
    hz2mel = lambda f: 2595.0 * np.log10(1.0 + f / 700.0)
    mel2hz = lambda m: 700.0 * (10.0 ** (m / 2595.0) - 1.0)
    m_pts = np.linspace(hz2mel(f_min), hz2mel(f_max), n_mels + 2)
    f_pts = mel2hz(m_pts)
    f_diff = f_pts[1:] - f_pts[:-1]
    slopes = f_pts[None, :] - all_freqs[:, None]
    down = -slopes[:, :-2] / f_diff[:-1]
    up = slopes[:, 2:] / f_diff[1:]
    return np.maximum(0.0, np.minimum(down, up)).astype(np.float32)  # (n_freqs, n_mels)


def _dft_windowed_packed():
    cos, sin = _dft_mats(N_FFT, N_FREQS)
    packed = np.zeros((N_FFT, DFT_COLS), np.float32)
    packed[:, 0:N_FREQS] = cos
    packed[:, DFT_COLS // 2:DFT_COLS // 2 + N_FREQS] = sin
    return _hann_periodic(N_FFT)[:, None] * packed            # Hann window folded into the DFT


def _fb_padded():
    fb = np.zeros((FB_ROWS, CFG.n_mels), np.float32)
    fb[:N_FREQS] = _mel_fbank(N_FREQS, 0.0, CFG.sample_rate // 2, CFG.n_mels, CFG.sample_rate)
    return fb


def _conv_row_selection():
    # sel[j*Tc + t, t*stride_t + j] = 1  -> rows = sel @ buffer gives every conv time-tap row
    kt, st = CFG.kernel_size[1], CFG.stride[1]
    sel = np.zeros((kt * CONV_OUT_TIME, MAX_WINDOW_LEN), np.float32)
    for j in range(kt):
        for t in range(CONV_OUT_TIME):
            sel[j * CONV_OUT_TIME + t, t * st + j] = 1.0
    return sel


# bf16 constants: fed only to the MXU (f32 accumulation), halves constant HBM->VMEM DMA per call.
DFT_W = jnp.asarray(_dft_windowed_packed(), dtype=jnp.bfloat16)    # (400, 512)
FB_PAD = jnp.asarray(_fb_padded(), dtype=jnp.bfloat16)             # (256, 40)
SEL = jnp.asarray(_conv_row_selection(), dtype=jnp.bfloat16)       # (220, 101), exact 0/1 in bf16


# ----------------------------- the single fused Pallas kernel -----------------------------
# Packed 256-lane gate layout (column blocks of 32):
#   [ r0 | r1 | z0 | z1 | n0_h | n1_h | n0_x | n1_x ]
# r/z blocks merge input + hidden contributions (plain adds); n keeps input/hidden separate
# because PyTorch GRU computes n = tanh(W_in x + b_in + r * (W_hn h + b_hn)).
def crnn_fused_kernel(frames_ref, dft_ref, fb_ref, sel_ref, buf_in_ref,
                      w0_ref, wbig_ref, bias_ref, head_w_ref, head_b_ref, h0_ref,
                      buf_out_ref, probs_ref, hout_ref):
    f32, bf16 = jnp.float32, jnp.bfloat16
    Tc, M, W = CONV_OUT_TIME, CFG.n_mels, MAX_WINDOW_LEN
    kt = CFG.kernel_size[1]
    t_new = frames_ref.shape[0]

    # --- 0) read old buffer tail BEFORE any ref write (buf_in aliases buf_out in place) ---
    old_tail = buf_in_ref[t_new:W, :]                                            # (W - t_new, 40)

    # --- 1) log-mel spectrogram: packed windowed-DFT matmul + mel matmul + log(clamp) ---
    spec = jnp.dot(frames_ref[...].astype(bf16), dft_ref[...],
                   preferred_element_type=f32)                                   # (t_new, 512)
    re = spec[:, 0:DFT_COLS // 2]
    im = spec[:, DFT_COLS // 2:DFT_COLS]
    power = re * re + im * im                                                    # (t_new, 256)
    mel = jnp.dot(power.astype(bf16), fb_ref[...], preferred_element_type=f32)   # (t_new, 40)
    logmel = jnp.log(jnp.clip(mel, 1e-9, 1e9))

    # --- 2) streaming buffer roll + append (time-major (101, 40)), single store ---
    newbuf = jnp.concatenate([old_tail, logmel], axis=0)                         # (101, 40)
    buf_out_ref[...] = newbuf

    # --- 3) DSConv folded into GRU layer-0 input projection, taps quad-merged, tree-summed ---
    rows = jnp.dot(sel_ref[...], newbuf.astype(bf16),
                   preferred_element_type=f32)                                   # (kt*Tc, 40)
    parts = []
    for g in range(kt // TAP_GROUP):                                             # 5 dots, K = 160
        blk = jnp.concatenate(
            [rows[(TAP_GROUP * g + q) * Tc:(TAP_GROUP * g + q + 1) * Tc, :]
             for q in range(TAP_GROUP)], axis=1)                                 # (Tc, 160)
        parts.append(jnp.dot(blk.astype(bf16),
                             w0_ref[g * TAP_GROUP * M:(g + 1) * TAP_GROUP * M, :],
                             preferred_element_type=f32))                        # (Tc, 96)
    while len(parts) > 1:                                                        # tree sum
        parts = [parts[i] + parts[i + 1] if i + 1 < len(parts) else parts[i]
                 for i in range(0, len(parts), 2)]
    gi = parts[0]                                                                # (Tc, 96) r0|z0|n0

    # scatter gi into the 256-lane layout and fold ALL biases once (no per-step broadcasts)
    z32 = jnp.zeros((Tc, H), f32)
    gi256 = jnp.concatenate(
        [gi[:, 0:H], z32, gi[:, H:2 * H], z32, z32, z32, gi[:, 2 * H:3 * H], z32], axis=1)
    bias_row = bias_ref[...]                                                     # (1, 256)
    add_table = jnp.concatenate([gi256 + bias_row, bias_row], axis=0)            # (Tc+1, 256)

    # --- 4) fused two-layer GRU: 1-step skew, ONE (1,64)x(64,256) dot per step, 12 steps ---
    wbig = wbig_ref[...]                                                         # (64, 256)
    h = h0_ref[...]                                                              # (1, 64) [l0 | l1]
    lane = jax.lax.broadcasted_iota(jnp.int32, (1, 2 * H), 1)
    mask_l0 = lane < H
    seq1 = []
    for s in range(Tc + 1):
        big = jnp.dot(h, wbig, preferred_element_type=f32)                       # (1, 256)
        pre = big + add_table[s:s + 1, :]
        rz = jax.nn.sigmoid(pre[:, 0:4 * H])                                     # [r0|r1|z0|z1]
        r = rz[:, 0:2 * H]                                                       # [r0|r1]
        z = rz[:, 2 * H:4 * H]                                                   # [z0|z1]
        n = jnp.tanh(pre[:, 6 * H:8 * H] + r * pre[:, 4 * H:6 * H])              # [n0|n1]
        h_upd = (1.0 - z) * n + z * h
        if s == 0:
            h = jnp.where(mask_l0, h_upd, h)          # fill step: only layer-0 time 0 is valid
        elif s == Tc:
            h = jnp.where(mask_l0, h, h_upd)          # drain step: only layer-1 time Tc-1
        else:
            h = h_upd
        if s >= 1:
            seq1.append(h[:, H:2 * H])                # layer-1 output at time s-1 (stays in vregs)
    hout_ref[...] = h                                  # final [h_l0(Tc-1) | h_l1(Tc-1)]
    g_seq = jnp.concatenate(seq1, axis=0)              # (Tc, H) layer-1 output sequence

    # --- 5) attention (Linear -> tanh -> Linear, softmax over time, weighted sum) + classifier ---
    nc = CFG.num_classes
    w1 = head_w_ref[:, 0:H]
    w2 = head_w_ref[:, H:H + 1]
    wc = head_w_ref[:, H + 1:H + 1 + nc]
    b1 = head_b_ref[:, 0:H]
    b2 = head_b_ref[:, H:H + 1]
    bc = head_b_ref[:, H + 1:H + 1 + nc]

    e1 = jnp.tanh(jnp.dot(g_seq, w1, preferred_element_type=f32) + b1)           # (Tc, H)
    e = jnp.dot(e1, w2, preferred_element_type=f32) + b2                         # (Tc, 1)
    e = e - jnp.max(e, axis=0, keepdims=True)
    a = jnp.exp(e)
    alpha = a / jnp.sum(a, axis=0, keepdims=True)
    ctx = jnp.sum(alpha * g_seq, axis=0, keepdims=True)                          # (1, H)

    logits = jnp.dot(ctx, wc, preferred_element_type=f32) + bc                   # (1, nc)
    logits = logits - jnp.max(logits, axis=1, keepdims=True)
    p = jnp.exp(logits)
    probs_ref[...] = p / jnp.sum(p, axis=1, keepdims=True)


# ----------------------------- parameters (deterministic synthetic init, PyTorch layout) ----------
def init_raw_params(key):
    kf, kt = CFG.kernel_size
    D, C = GRU_INPUT, CFG.num_classes
    keys = iter(jax.random.split(key, 32))

    def u(shape, fan_in):
        s = 1.0 / np.sqrt(fan_in)
        return jax.random.uniform(next(keys), shape, jnp.float32, -s, s)

    raw = {
        "dw_w": u((kf, kt), kf * kt), "dw_b": u((), kf * kt),
        "pw_w": u((CFG.cnn_out_channels,), 1), "pw_b": u((CFG.cnn_out_channels,), 1),
        "att_w1": u((H, H), H), "att_b1": u((H,), H),
        "att_w2": u((1, H), H), "att_b2": u((1,), H),
        "cls_w": u((C, H), H), "cls_b": u((C,), H),
        "gru": [],
    }
    for l in range(CFG.gru_num_layers):
        d_in = D if l == 0 else H
        raw["gru"].append(dict(
            w_ih=u((3 * H, d_in), H), w_hh=u((3 * H, H), H),     # gate rows: r | z | n
            b_ih=u((3 * H,), H), b_hh=u((3 * H,), H)))
    return raw


def pack_params(raw):
    """Host-side weight folding: DSConv x GRU-layer-0 fusion, layer-0/1 recurrent fusion into one
    block-structured W_big (64,256), full bias folding, head packing."""
    kf, kt = CFG.kernel_size
    sf = CFG.stride[0]
    Fp, C, M = CONV_OUT_FREQ, CFG.cnn_out_channels, CFG.n_mels
    npf = lambda a: np.asarray(a, np.float32)

    # fuse depthwise (1->1) and pointwise (1->C) convs; exact for in_channels == 1
    w_eff = npf(raw["dw_w"]).reshape(kf * kt)[:, None] * npf(raw["pw_w"])[None, :]   # (kf*kt, C)
    b_eff = npf(raw["pw_w"]) * float(raw["dw_b"]) + npf(raw["pw_b"])                 # (C,)

    g0, g1 = raw["gru"]
    wih0 = npf(g0["w_ih"]).T.reshape(C, Fp, 3 * H)        # GRU input index d = c*Fp + f, cols r|z|n

    # fold conv into layer-0 ih projection, regrouped by (time-tap j, mel bin m)
    tmp = np.einsum("ijc,cfg->ijfg", w_eff.reshape(kf, kt, C), wih0)                 # (kf,kt,Fp,3H)
    w_t = np.zeros((kt, M, 3 * H), np.float32)
    for f in range(Fp):
        for i in range(kf):
            w_t[:, sf * f + i, :] += tmp[i, :, f, :]
    w0 = w_t.reshape(kt * M, 3 * H)                                                  # (800, 96)
    b0 = np.einsum("c,cfg->g", b_eff, wih0) + npf(g0["b_ih"])                        # (96,)

    # fused recurrent weight: rows 0:32 = h_l0 contributions, rows 32:64 = h_l1 contributions;
    # column blocks (32 wide): r0 | r1 | z0 | z1 | n0_h | n1_h | n0_x | n1_x
    Whh0T = npf(g0["w_hh"]).T   # (32, 96) columns r|z|n
    Wih1T = npf(g1["w_ih"]).T   # (32, 96)
    Whh1T = npf(g1["w_hh"]).T   # (32, 96)
    b_hh0, b_ih1, b_hh1 = npf(g0["b_hh"]), npf(g1["b_ih"]), npf(g1["b_hh"])

    def col(b):
        return slice(b * H, (b + 1) * H)

    Wbig = np.zeros((2 * H, 8 * H), np.float32)
    Wbig[0:H, col(0)] = Whh0T[:, 0:H]
    Wbig[0:H, col(1)] = Wih1T[:, 0:H]
    Wbig[H:2 * H, col(1)] = Whh1T[:, 0:H]
    Wbig[0:H, col(2)] = Whh0T[:, H:2 * H]
    Wbig[0:H, col(3)] = Wih1T[:, H:2 * H]
    Wbig[H:2 * H, col(3)] = Whh1T[:, H:2 * H]
    Wbig[0:H, col(4)] = Whh0T[:, 2 * H:3 * H]
    Wbig[H:2 * H, col(5)] = Whh1T[:, 2 * H:3 * H]
    Wbig[0:H, col(7)] = Wih1T[:, 2 * H:3 * H]

    bias = np.zeros((1, 8 * H), np.float32)
    bias[0, col(0)] = b_hh0[0:H] + b0[0:H]
    bias[0, col(1)] = b_ih1[0:H] + b_hh1[0:H]
    bias[0, col(2)] = b_hh0[H:2 * H] + b0[H:2 * H]
    bias[0, col(3)] = b_ih1[H:2 * H] + b_hh1[H:2 * H]
    bias[0, col(4)] = b_hh0[2 * H:3 * H]
    bias[0, col(5)] = b_hh1[2 * H:3 * H]
    bias[0, col(6)] = b0[2 * H:3 * H]
    bias[0, col(7)] = b_ih1[2 * H:3 * H]

    head_w = np.concatenate(
        [npf(raw["att_w1"]).T, npf(raw["att_w2"]).T, npf(raw["cls_w"]).T], axis=1)   # (32, 35)
    head_b = np.concatenate(
        [npf(raw["att_b1"]), npf(raw["att_b2"]), npf(raw["cls_b"])])[None, :]        # (1, 35)

    return {"w0": jnp.asarray(w0, jnp.bfloat16),      # (800, 96) bf16 constant
            "w_big": jnp.asarray(Wbig),               # (64, 256) f32 (recurrent precision)
            "bias": jnp.asarray(bias),                # (1, 256)
            "head_w": jnp.asarray(head_w), "head_b": jnp.asarray(head_b)}


# ----------------------------- full streaming forward (one pallas_call) -----------------------------
def make_forward(packed):
    n_in = 11

    @jax.jit
    def forward(audio, buffer, hidden):
        # audio: (1, L) waveform chunk; buffer: (101, 40) time-major log-mel; hidden: (1, 64)
        x = audio[0]
        padded = jnp.pad(x, (N_FFT // 2, N_FFT // 2), mode="reflect")   # center=True, reflect pad
        n_frames = 1 + (padded.shape[0] - N_FFT) // HOP_LENGTH
        assert 1 <= n_frames <= MAX_WINDOW_LEN
        idx = jnp.arange(n_frames)[:, None] * HOP_LENGTH + jnp.arange(N_FFT)[None, :]
        frames = padded[idx]                    # (T_new, 400); Hann window is folded into DFT_W

        buf_out, probs, h_out = pl.pallas_call(
            crnn_fused_kernel,
            out_shape=(
                jax.ShapeDtypeStruct((MAX_WINDOW_LEN, CFG.n_mels), jnp.float32),
                jax.ShapeDtypeStruct((1, CFG.num_classes), jnp.float32),
                jax.ShapeDtypeStruct((1, 2 * CFG.hidden_size), jnp.float32),
            ),
            in_specs=[VMEM_SPEC() for _ in range(n_in)],
            out_specs=(VMEM_SPEC(), VMEM_SPEC(), VMEM_SPEC()),
            input_output_aliases={4: 0, 10: 2},   # mel buffer and GRU hidden updated in place
        )(frames, DFT_W, FB_PAD, SEL, buffer,
          packed["w0"], packed["w_big"], packed["bias"],
          packed["head_w"], packed["head_b"], hidden)

        return probs[0, 1], buf_out, h_out

    return forward


# ----------------------------- main -----------------------------
if __name__ == "__main__":
    key = jax.random.PRNGKey(0)
    k_params, k_audio = jax.random.split(key)

    raw = init_raw_params(k_params)
    packed = pack_params(raw)
    forward = make_forward(packed)

    audio = 0.1 * jax.random.normal(k_audio, (1, 1600), dtype=jnp.float32)   # 0.1 s @ 16 kHz chunk
    buffer = jnp.zeros((MAX_WINDOW_LEN, CFG.n_mels), jnp.float32)            # init_buffer(), time-major
    hidden = jnp.zeros((1, 2 * CFG.hidden_size), jnp.float32)                # [h_l0 | h_l1], first call = 0

    prob, buffer, hidden = forward(audio, buffer, hidden)
    prob = jax.block_until_ready(prob)
    jax.block_until_ready((buffer, hidden))

    assert bool(jnp.isfinite(prob)), "non-finite output probability"
    print("KERNEL_OK")
</pallas_src>

<mosaic_0001>
module attributes {stable_mosaic.version = 11 : i64} {
  func.func @crnn_fused_kernel(%arg0: memref<11x400xf32, #tpu.memory_space<vmem>>, %arg1: memref<400x512xbf16, #tpu.memory_space<vmem>>, %arg2: memref<256x40xbf16, #tpu.memory_space<vmem>>, %arg3: memref<220x101xbf16, #tpu.memory_space<vmem>>, %arg4: memref<101x40xf32, #tpu.memory_space<vmem>>, %arg5: memref<800x96xbf16, #tpu.memory_space<vmem>>, %arg6: memref<64x256xf32, #tpu.memory_space<vmem>>, %arg7: memref<1x256xf32, #tpu.memory_space<vmem>>, %arg8: memref<32x35xf32, #tpu.memory_space<vmem>>, %arg9: memref<1x35xf32, #tpu.memory_space<vmem>>, %arg10: memref<1x64xf32, #tpu.memory_space<vmem>>, %arg11: memref<101x40xf32, #tpu.memory_space<vmem>>, %arg12: memref<1x2xf32, #tpu.memory_space<vmem>>, %arg13: memref<1x64xf32, #tpu.memory_space<vmem>>) attributes {dimension_semantics = [], scalar_prefetch = 0 : i64, scratch_operands = 0 : i64, tpu.core_type = #tpu.core_type<tc>} {
    %c11 = arith.constant 11 : index
    %c0 = arith.constant 0 : index
    %0 = vector.load %arg4[%c11, %c0] : memref<101x40xf32, #tpu.memory_space<vmem>>, vector<90x40xf32>
    %c0_0 = arith.constant 0 : index
    %c0_1 = arith.constant 0 : index
    %1 = vector.load %arg0[%c0_0, %c0_1] : memref<11x400xf32, #tpu.memory_space<vmem>>, vector<11x400xf32>
    %2 = arith.truncf %1 : vector<11x400xf32> to vector<11x400xbf16>
    %c0_2 = arith.constant 0 : index
    %c0_3 = arith.constant 0 : index
    %3 = vector.load %arg1[%c0_2, %c0_3] : memref<400x512xbf16, #tpu.memory_space<vmem>>, vector<400x512xbf16>
    %cst = arith.constant dense<0.000000e+00> : vector<11x512xf32>
    %4 = tpu.matmul %2, %3, %cst {dimension_numbers = #tpu.dot_dimension_numbers<[1], [0], [0], [1], [0, 0, 1, 1], [], []>} : vector<11x400xbf16>, vector<400x512xbf16>, vector<11x512xf32> -> vector<11x512xf32>
    %5 = vector.extract_strided_slice %4 {offsets = [0, 0], sizes = [11, 256], strides = [1, 1]} : vector<11x512xf32> to vector<11x256xf32>
    %6 = vector.extract_strided_slice %4 {offsets = [0, 256], sizes = [11, 256], strides = [1, 1]} : vector<11x512xf32> to vector<11x256xf32>
    %7 = arith.mulf %5, %5 : vector<11x256xf32>
    %8 = arith.mulf %6, %6 : vector<11x256xf32>
    %9 = arith.addf %7, %8 : vector<11x256xf32>
    %10 = arith.truncf %9 : vector<11x256xf32> to vector<11x256xbf16>
    %c0_4 = arith.constant 0 : index
    %c0_5 = arith.constant 0 : index
    %11 = vector.load %arg2[%c0_4, %c0_5] : memref<256x40xbf16, #tpu.memory_space<vmem>>, vector<256x40xbf16>
    %cst_6 = arith.constant dense<0.000000e+00> : vector<11x40xf32>
    %12 = tpu.matmul %10, %11, %cst_6 {dimension_numbers = #tpu.dot_dimension_numbers<[1], [0], [0], [1], [0, 0, 1, 1], [], []>} : vector<11x256xbf16>, vector<256x40xbf16>, vector<11x40xf32> -> vector<11x40xf32>
    %cst_7 = arith.constant 9.99999971E-10 : f32
    %cst_8 = arith.constant 1.000000e+09 : f32
    %13 = vector.broadcast %cst_7 : f32 to vector<11x40xf32>
    %14 = arith.maximumf %13, %12 : vector<11x40xf32>
    %15 = vector.broadcast %cst_8 : f32 to vector<11x40xf32>
    %16 = arith.minimumf %15, %14 : vector<11x40xf32>
    %17 = math.log %16 : vector<11x40xf32>
    %18 = tpu.concatenate %0, %17 in 0 : vector<90x40xf32>, vector<11x40xf32> -> vector<101x40xf32>
    %c0_9 = arith.constant 0 : index
    %c0_10 = arith.constant 0 : index
    %19 = vector.load %arg11[%c0_9, %c0_10] : memref<101x40xf32, #tpu.memory_space<vmem>>, vector<101x40xf32>
    tpu.vector_store %arg11[%c0_9, %c0_10], %18 {strides = array<i32>} : memref<101x40xf32, #tpu.memory_space<vmem>>, vector<101x40xf32>,
    %c0_11 = arith.constant 0 : index
    %c0_12 = arith.constant 0 : index
    %20 = vector.load %arg3[%c0_11, %c0_12] : memref<220x101xbf16, #tpu.memory_space<vmem>>, vector<220x101xbf16>
    %21 = arith.truncf %18 : vector<101x40xf32> to vector<101x40xbf16>
    %cst_13 = arith.constant dense<0.000000e+00> : vector<220x40xf32>
    %22 = tpu.matmul %20, %21, %cst_13 {dimension_numbers = #tpu.dot_dimension_numbers<[1], [0], [0], [1], [0, 0, 1, 1], [], []>} : vector<220x101xbf16>, vector<101x40xbf16>, vector<220x40xf32> -> vector<220x40xf32>
    %23 = vector.extract_strided_slice %22 {offsets = [0, 0], sizes = [11, 40], strides = [1, 1]} : vector<220x40xf32> to vector<11x40xf32>
    %24 = vector.extract_strided_slice %22 {offsets = [11, 0], sizes = [11, 40], strides = [1, 1]} : vector<220x40xf32> to vector<11x40xf32>
    %25 = vector.extract_strided_slice %22 {offsets = [22, 0], sizes = [11, 40], strides = [1, 1]} : vector<220x40xf32> to vector<11x40xf32>
    %26 = vector.extract_strided_slice %22 {offsets = [33, 0], sizes = [11, 40], strides = [1, 1]} : vector<220x40xf32> to vector<11x40xf32>
    %27 = tpu.concatenate %23, %24, %25, %26 in 1 : vector<11x40xf32>, vector<11x40xf32>, vector<11x40xf32>, vector<11x40xf32> -> vector<11x160xf32>
    %28 = arith.truncf %27 : vector<11x160xf32> to vector<11x160xbf16>
    %c0_14 = arith.constant 0 : index
    %c0_15 = arith.constant 0 : index
    %29 = vector.load %arg5[%c0_14, %c0_15] : memref<800x96xbf16, #tpu.memory_space<vmem>>, vector<160x96xbf16>
    %cst_16 = arith.constant dense<0.000000e+00> : vector<11x96xf32>
    %30 = tpu.matmul %28, %29, %cst_16 {dimension_numbers = #tpu.dot_dimension_numbers<[1], [0], [0], [1], [0, 0, 1, 1], [], []>} : vector<11x160xbf16>, vector<160x96xbf16>, vector<11x96xf32> -> vector<11x96xf32>
    %31 = vector.extract_strided_slice %22 {offsets = [44, 0], sizes = [11, 40], strides = [1, 1]} : vector<220x40xf32> to vector<11x40xf32>
    %32 = vector.extract_strided_slice %22 {offsets = [55, 0], sizes = [11, 40], strides = [1, 1]} : vector<220x40xf32> to vector<11x40xf32>
    %33 = vector.extract_strided_slice %22 {offsets = [66, 0], sizes = [11, 40], strides = [1, 1]} : vector<220x40xf32> to vector<11x40xf32>
    %34 = vector.extract_strided_slice %22 {offsets = [77, 0], sizes = [11, 40], strides = [1, 1]} : vector<220x40xf32> to vector<11x40xf32>
    %35 = tpu.concatenate %31, %32, %33, %34 in 1 : vector<11x40xf32>, vector<11x40xf32>, vector<11x40xf32>, vector<11x40xf32> -> vector<11x160xf32>
    %36 = arith.truncf %35 : vector<11x160xf32> to vector<11x160xbf16>
    %c160 = arith.constant 160 : index
    %c0_17 = arith.constant 0 : index
    %37 = vector.load %arg5[%c160, %c0_17] : memref<800x96xbf16, #tpu.memory_space<vmem>>, vector<160x96xbf16>
    %cst_18 = arith.constant dense<0.000000e+00> : vector<11x96xf32>
    %38 = tpu.matmul %36, %37, %cst_18 {dimension_numbers = #tpu.dot_dimension_numbers<[1], [0], [0], [1], [0, 0, 1, 1], [], []>} : vector<11x160xbf16>, vector<160x96xbf16>, vector<11x96xf32> -> vector<11x96xf32>
    %39 = vector.extract_strided_slice %22 {offsets = [88, 0], sizes = [11, 40], strides = [1, 1]} : vector<220x40xf32> to vector<11x40xf32>
    %40 = vector.extract_strided_slice %22 {offsets = [99, 0], sizes = [11, 40], strides = [1, 1]} : vector<220x40xf32> to vector<11x40xf32>
    %41 = vector.extract_strided_slice %22 {offsets = [110, 0], sizes = [11, 40], strides = [1, 1]} : vector<220x40xf32> to vector<11x40xf32>
    %42 = vector.extract_strided_slice %22 {offsets = [121, 0], sizes = [11, 40], strides = [1, 1]} : vector<220x40xf32> to vector<11x40xf32>
    %43 = tpu.concatenate %39, %40, %41, %42 in 1 : vector<11x40xf32>, vector<11x40xf32>, vector<11x40xf32>, vector<11x40xf32> -> vector<11x160xf32>
    %44 = arith.truncf %43 : vector<11x160xf32> to vector<11x160xbf16>
    %c320 = arith.constant 320 : index
    %c0_19 = arith.constant 0 : index
    %45 = vector.load %arg5[%c320, %c0_19] : memref<800x96xbf16, #tpu.memory_space<vmem>>, vector<160x96xbf16>
    %cst_20 = arith.constant dense<0.000000e+00> : vector<11x96xf32>
    %46 = tpu.matmul %44, %45, %cst_20 {dimension_numbers = #tpu.dot_dimension_numbers<[1], [0], [0], [1], [0, 0, 1, 1], [], []>} : vector<11x160xbf16>, vector<160x96xbf16>, vector<11x96xf32> -> vector<11x96xf32>
    %47 = vector.extract_strided_slice %22 {offsets = [132, 0], sizes = [11, 40], strides = [1, 1]} : vector<220x40xf32> to vector<11x40xf32>
    %48 = vector.extract_strided_slice %22 {offsets = [143, 0], sizes = [11, 40], strides = [1, 1]} : vector<220x40xf32> to vector<11x40xf32>
    %49 = vector.extract_strided_slice %22 {offsets = [154, 0], sizes = [11, 40], strides = [1, 1]} : vector<220x40xf32> to vector<11x40xf32>
    %50 = vector.extract_strided_slice %22 {offsets = [165, 0], sizes = [11, 40], strides = [1, 1]} : vector<220x40xf32> to vector<11x40xf32>
    %51 = tpu.concatenate %47, %48, %49, %50 in 1 : vector<11x40xf32>, vector<11x40xf32>, vector<11x40xf32>, vector<11x40xf32> -> vector<11x160xf32>
    %52 = arith.truncf %51 : vector<11x160xf32> to vector<11x160xbf16>
    %c480 = arith.constant 480 : index
    %c0_21 = arith.constant 0 : index
    %53 = vector.load %arg5[%c480, %c0_21] : memref<800x96xbf16, #tpu.memory_space<vmem>>, vector<160x96xbf16>
    %cst_22 = arith.constant dense<0.000000e+00> : vector<11x96xf32>
    %54 = tpu.matmul %52, %53, %cst_22 {dimension_numbers = #tpu.dot_dimension_numbers<[1], [0], [0], [1], [0, 0, 1, 1], [], []>} : vector<11x160xbf16>, vector<160x96xbf16>, vector<11x96xf32> -> vector<11x96xf32>
    %55 = vector.extract_strided_slice %22 {offsets = [176, 0], sizes = [11, 40], strides = [1, 1]} : vector<220x40xf32> to vector<11x40xf32>
    %56 = vector.extract_strided_slice %22 {offsets = [187, 0], sizes = [11, 40], strides = [1, 1]} : vector<220x40xf32> to vector<11x40xf32>
    %57 = vector.extract_strided_slice %22 {offsets = [198, 0], sizes = [11, 40], strides = [1, 1]} : vector<220x40xf32> to vector<11x40xf32>
    %58 = vector.extract_strided_slice %22 {offsets = [209, 0], sizes = [11, 40], strides = [1, 1]} : vector<220x40xf32> to vector<11x40xf32>
    %59 = tpu.concatenate %55, %56, %57, %58 in 1 : vector<11x40xf32>, vector<11x40xf32>, vector<11x40xf32>, vector<11x40xf32> -> vector<11x160xf32>
    %60 = arith.truncf %59 : vector<11x160xf32> to vector<11x160xbf16>
    %c640 = arith.constant 640 : index
    %c0_23 = arith.constant 0 : index
    %61 = vector.load %arg5[%c640, %c0_23] : memref<800x96xbf16, #tpu.memory_space<vmem>>, vector<160x96xbf16>
    %cst_24 = arith.constant dense<0.000000e+00> : vector<11x96xf32>
    %62 = tpu.matmul %60, %61, %cst_24 {dimension_numbers = #tpu.dot_dimension_numbers<[1], [0], [0], [1], [0, 0, 1, 1], [], []>} : vector<11x160xbf16>, vector<160x96xbf16>, vector<11x96xf32> -> vector<11x96xf32>
    %63 = arith.addf %30, %38 : vector<11x96xf32>
    %64 = arith.addf %46, %54 : vector<11x96xf32>
    %65 = arith.addf %63, %64 : vector<11x96xf32>
    %66 = arith.addf %65, %62 : vector<11x96xf32>
    %cst_25 = arith.constant 0.000000e+00 : f32
    %67 = vector.broadcast %cst_25 : f32 to vector<11x32xf32>
    %68 = vector.extract_strided_slice %66 {offsets = [0, 0], sizes = [11, 32], strides = [1, 1]} : vector<11x96xf32> to vector<11x32xf32>
    %69 = vector.extract_strided_slice %66 {offsets = [0, 32], sizes = [11, 32], strides = [1, 1]} : vector<11x96xf32> to vector<11x32xf32>
    %70 = vector.extract_strided_slice %66 {offsets = [0, 64], sizes = [11, 32], strides = [1, 1]} : vector<11x96xf32> to vector<11x32xf32>
    %71 = tpu.concatenate %68, %67, %69, %67, %67, %67, %70, %67 in 1 : vector<11x32xf32>, vector<11x32xf32>, vector<11x32xf32>, vector<11x32xf32>, vector<11x32xf32>, vector<11x32xf32>, vector<11x32xf32>, vector<11x32xf32> -> vector<11x256xf32>
    %c0_26 = arith.constant 0 : index
    %c0_27 = arith.constant 0 : index
    %72 = vector.load %arg7[%c0_26, %c0_27] : memref<1x256xf32, #tpu.memory_space<vmem>>, vector<1x256xf32>
    %73 = vector.broadcast %72 : vector<1x256xf32> to vector<11x256xf32>
    %74 = arith.addf %71, %73 : vector<11x256xf32>
    %75 = tpu.concatenate %74, %72 in 0 : vector<11x256xf32>, vector<1x256xf32> -> vector<12x256xf32>
    %c0_28 = arith.constant 0 : index
    %c0_29 = arith.constant 0 : index
    %76 = vector.load %arg6[%c0_28, %c0_29] : memref<64x256xf32, #tpu.memory_space<vmem>>, vector<64x256xf32>
    %c0_30 = arith.constant 0 : index
    %c0_31 = arith.constant 0 : index
    %77 = vector.load %arg10[%c0_30, %c0_31] : memref<1x64xf32, #tpu.memory_space<vmem>>, vector<1x64xf32>
    %78 = tpu.iota {dimensions = array<i32: 1>} : vector<1x64xi32>
    %c32_i32 = arith.constant 32 : i32
    %79 = vector.broadcast %c32_i32 : i32 to vector<1x64xi32>
    %80 = arith.cmpi slt, %78, %79 : vector<1x64xi32>
    %cst_32 = arith.constant dense<0.000000e+00> : vector<1x256xf32>
    %81 = tpu.matmul %77, %76, %cst_32 {dimension_numbers = #tpu.dot_dimension_numbers<[1], [0], [0], [1], [0, 0, 1, 1], [], []>} : vector<1x64xf32>, vector<64x256xf32>, vector<1x256xf32> -> vector<1x256xf32>
    %82 = vector.extract_strided_slice %75 {offsets = [0, 0], sizes = [1, 256], strides = [1, 1]} : vector<12x256xf32> to vector<1x256xf32>
    %83 = arith.addf %81, %82 : vector<1x256xf32>
    %84 = vector.extract_strided_slice %83 {offsets = [0, 0], sizes = [1, 128], strides = [1, 1]} : vector<1x256xf32> to vector<1x128xf32>
    %85 = arith.negf %84 : vector<1x128xf32>
    %86 = math.exp %85 : vector<1x128xf32>
    %cst_33 = arith.constant 1.000000e+00 : f32
    %87 = vector.broadcast %cst_33 : f32 to vector<1x128xf32>
    %88 = arith.addf %87, %86 : vector<1x128xf32>
    %89 = arith.divf %87, %88 : vector<1x128xf32>
    %90 = vector.extract_strided_slice %89 {offsets = [0, 0], sizes = [1, 64], strides = [1, 1]} : vector<1x128xf32> to vector<1x64xf32>
    %91 = vector.extract_strided_slice %89 {offsets = [0, 64], sizes = [1, 64], strides = [1, 1]} : vector<1x128xf32> to vector<1x64xf32>
    %92 = vector.extract_strided_slice %83 {offsets = [0, 192], sizes = [1, 64], strides = [1, 1]} : vector<1x256xf32> to vector<1x64xf32>
    %93 = vector.extract_strided_slice %83 {offsets = [0, 128], sizes = [1, 64], strides = [1, 1]} : vector<1x256xf32> to vector<1x64xf32>
    %94 = arith.mulf %90, %93 : vector<1x64xf32>
    %95 = arith.addf %92, %94 : vector<1x64xf32>
    %96 = math.tanh %95 : vector<1x64xf32>
    %cst_34 = arith.constant 1.000000e+00 : f32
    %97 = vector.broadcast %cst_34 : f32 to vector<1x64xf32>
    %98 = arith.subf %97, %91 : vector<1x64xf32>
    %99 = arith.mulf %98, %96 : vector<1x64xf32>
    %100 = arith.mulf %91, %77 : vector<1x64xf32>
    %101 = arith.addf %99, %100 : vector<1x64xf32>
    %102 = arith.select %80, %101, %77 : vector<1x64xi1>, vector<1x64xf32>
    %cst_35 = arith.constant dense<0.000000e+00> : vector<1x256xf32>
    %103 = tpu.matmul %102, %76, %cst_35 {dimension_numbers = #tpu.dot_dimension_numbers<[1], [0], [0], [1], [0, 0, 1, 1], [], []>} : vector<1x64xf32>, vector<64x256xf32>, vector<1x256xf32> -> vector<1x256xf32>
    %104 = vector.extract_strided_slice %75 {offsets = [1, 0], sizes = [1, 256], strides = [1, 1]} : vector<12x256xf32> to vector<1x256xf32>
    %105 = arith.addf %103, %104 : vector<1x256xf32>
    %106 = vector.extract_strided_slice %105 {offsets = [0, 0], sizes = [1, 128], strides = [1, 1]} : vector<1x256xf32> to vector<1x128xf32>
    %107 = arith.negf %106 : vector<1x128xf32>
    %108 = math.exp %107 : vector<1x128xf32>
    %cst_36 = arith.constant 1.000000e+00 : f32
    %109 = vector.broadcast %cst_36 : f32 to vector<1x128xf32>
    %110 = arith.addf %109, %108 : vector<1x128xf32>
    %111 = arith.divf %109, %110 : vector<1x128xf32>
    %112 = vector.extract_strided_slice %111 {offsets = [0, 0], sizes = [1, 64], strides = [1, 1]} : vector<1x128xf32> to vector<1x64xf32>
    %113 = vector.extract_strided_slice %111 {offsets = [0, 64], sizes = [1, 64], strides = [1, 1]} : vector<1x128xf32> to vector<1x64xf32>
    %114 = vector.extract_strided_slice %105 {offsets = [0, 192], sizes = [1, 64], strides = [1, 1]} : vector<1x256xf32> to vector<1x64xf32>
    %115 = vector.extract_strided_slice %105 {offsets = [0, 128], sizes = [1, 64], strides = [1, 1]} : vector<1x256xf32> to vector<1x64xf32>
    %116 = arith.mulf %112, %115 : vector<1x64xf32>
    %117 = arith.addf %114, %116 : vector<1x64xf32>
    %118 = math.tanh %117 : vector<1x64xf32>
    %cst_37 = arith.constant 1.000000e+00 : f32
    %119 = vector.broadcast %cst_37 : f32 to vector<1x64xf32>
    %120 = arith.subf %119, %113 : vector<1x64xf32>
    %121 = arith.mulf %120, %118 : vector<1x64xf32>
    %122 = arith.mulf %113, %102 : vector<1x64xf32>
    %123 = arith.addf %121, %122 : vector<1x64xf32>
    %124 = vector.extract_strided_slice %123 {offsets = [0, 32], sizes = [1, 32], strides = [1, 1]} : vector<1x64xf32> to vector<1x32xf32>
    %cst_38 = arith.constant dense<0.000000e+00> : vector<1x256xf32>
    %125 = tpu.matmul %123, %76, %cst_38 {dimension_numbers = #tpu.dot_dimension_numbers<[1], [0], [0], [1], [0, 0, 1, 1], [], []>} : vector<1x64xf32>, vector<64x256xf32>, vector<1x256xf32> -> vector<1x256xf32>
    %126 = vector.extract_strided_slice %75 {offsets = [2, 0], sizes = [1, 256], strides = [1, 1]} : vector<12x256xf32> to vector<1x256xf32>
    %127 = arith.addf %125, %126 : vector<1x256xf32>
    %128 = vector.extract_strided_slice %127 {offsets = [0, 0], sizes = [1, 128], strides = [1, 1]} : vector<1x256xf32> to vector<1x128xf32>
    %129 = arith.negf %128 : vector<1x128xf32>
    %130 = math.exp %129 : vector<1x128xf32>
    %cst_39 = arith.constant 1.000000e+00 : f32
    %131 = vector.broadcast %cst_39 : f32 to vector<1x128xf32>
    %132 = arith.addf %131, %130 : vector<1x128xf32>
    %133 = arith.divf %131, %132 : vector<1x128xf32>
    %134 = vector.extract_strided_slice %133 {offsets = [0, 0], sizes = [1, 64], strides = [1, 1]} : vector<1x128xf32> to vector<1x64xf32>
    %135 = vector.extract_strided_slice %133 {offsets = [0, 64], sizes = [1, 64], strides = [1, 1]} : vector<1x128xf32> to vector<1x64xf32>
    %136 = vector.extract_strided_slice %127 {offsets = [0, 192], sizes = [1, 64], strides = [1, 1]} : vector<1x256xf32> to vector<1x64xf32>
    %137 = vector.extract_strided_slice %127 {offsets = [0, 128], sizes = [1, 64], strides = [1, 1]} : vector<1x256xf32> to vector<1x64xf32>
    %138 = arith.mulf %134, %137 : vector<1x64xf32>
    %139 = arith.addf %136, %138 : vector<1x64xf32>
    %140 = math.tanh %139 : vector<1x64xf32>
    %cst_40 = arith.constant 1.000000e+00 : f32
    %141 = vector.broadcast %cst_40 : f32 to vector<1x64xf32>
    %142 = arith.subf %141, %135 : vector<1x64xf32>
    %143 = arith.mulf %142, %140 : vector<1x64xf32>
    %144 = arith.mulf %135, %123 : vector<1x64xf32>
    %145 = arith.addf %143, %144 : vector<1x64xf32>
    %146 = vector.extract_strided_slice %145 {offsets = [0, 32], sizes = [1, 32], strides = [1, 1]} : vector<1x64xf32> to vector<1x32xf32>
    %cst_41 = arith.constant dense<0.000000e+00> : vector<1x256xf32>
    %147 = tpu.matmul %145, %76, %cst_41 {dimension_numbers = #tpu.dot_dimension_numbers<[1], [0], [0], [1], [0, 0, 1, 1], [], []>} : vector<1x64xf32>, vector<64x256xf32>, vector<1x256xf32> -> vector<1x256xf32>
    %148 = vector.extract_strided_slice %75 {offsets = [3, 0], sizes = [1, 256], strides = [1, 1]} : vector<12x256xf32> to vector<1x256xf32>
    %149 = arith.addf %147, %148 : vector<1x256xf32>
    %150 = vector.extract_strided_slice %149 {offsets = [0, 0], sizes = [1, 128], strides = [1, 1]} : vector<1x256xf32> to vector<1x128xf32>
    %151 = arith.negf %150 : vector<1x128xf32>
    %152 = math.exp %151 : vector<1x128xf32>
    %cst_42 = arith.constant 1.000000e+00 : f32
    %153 = vector.broadcast %cst_42 : f32 to vector<1x128xf32>
    %154 = arith.addf %153, %152 : vector<1x128xf32>
    %155 = arith.divf %153, %154 : vector<1x128xf32>
    %156 = vector.extract_strided_slice %155 {offsets = [0, 0], sizes = [1, 64], strides = [1, 1]} : vector<1x128xf32> to vector<1x64xf32>
    %157 = vector.extract_strided_slice %155 {offsets = [0, 64], sizes = [1, 64], strides = [1, 1]} : vector<1x128xf32> to vector<1x64xf32>
    %158 = vector.extract_strided_slice %149 {offsets = [0, 192], sizes = [1, 64], strides = [1, 1]} : vector<1x256xf32> to vector<1x64xf32>
    %159 = vector.extract_strided_slice %149 {offsets = [0, 128], sizes = [1, 64], strides = [1, 1]} : vector<1x256xf32> to vector<1x64xf32>
    %160 = arith.mulf %156, %159 : vector<1x64xf32>
    %161 = arith.addf %158, %160 : vector<1x64xf32>
    %162 = math.tanh %161 : vector<1x64xf32>
    %cst_43 = arith.constant 1.000000e+00 : f32
    %163 = vector.broadcast %cst_43 : f32 to vector<1x64xf32>
    %164 = arith.subf %163, %157 : vector<1x64xf32>
    %165 = arith.mulf %164, %162 : vector<1x64xf32>
    %166 = arith.mulf %157, %145 : vector<1x64xf32>
    %167 = arith.addf %165, %166 : vector<1x64xf32>
    %168 = vector.extract_strided_slice %167 {offsets = [0, 32], sizes = [1, 32], strides = [1, 1]} : vector<1x64xf32> to vector<1x32xf32>
    %cst_44 = arith.constant dense<0.000000e+00> : vector<1x256xf32>
    %169 = tpu.matmul %167, %76, %cst_44 {dimension_numbers = #tpu.dot_dimension_numbers<[1], [0], [0], [1], [0, 0, 1, 1], [], []>} : vector<1x64xf32>, vector<64x256xf32>, vector<1x256xf32> -> vector<1x256xf32>
    %170 = vector.extract_strided_slice %75 {offsets = [4, 0], sizes = [1, 256], strides = [1, 1]} : vector<12x256xf32> to vector<1x256xf32>
    %171 = arith.addf %169, %170 : vector<1x256xf32>
    %172 = vector.extract_strided_slice %171 {offsets = [0, 0], sizes = [1, 128], strides = [1, 1]} : vector<1x256xf32> to vector<1x128xf32>
    %173 = arith.negf %172 : vector<1x128xf32>
    %174 = math.exp %173 : vector<1x128xf32>
    %cst_45 = arith.constant 1.000000e+00 : f32
    %175 = vector.broadcast %cst_45 : f32 to vector<1x128xf32>
    %176 = arith.addf %175, %174 : vector<1x128xf32>
    %177 = arith.divf %175, %176 : vector<1x128xf32>
    %178 = vector.extract_strided_slice %177 {offsets = [0, 0], sizes = [1, 64], strides = [1, 1]} : vector<1x128xf32> to vector<1x64xf32>
    %179 = vector.extract_strided_slice %177 {offsets = [0, 64], sizes = [1, 64], strides = [1, 1]} : vector<1x128xf32> to vector<1x64xf32>
    %180 = vector.extract_strided_slice %171 {offsets = [0, 192], sizes = [1, 64], strides = [1, 1]} : vector<1x256xf32> to vector<1x64xf32>
    %181 = vector.extract_strided_slice %171 {offsets = [0, 128], sizes = [1, 64], strides = [1, 1]} : vector<1x256xf32> to vector<1x64xf32>
    %182 = arith.mulf %178, %181 : vector<1x64xf32>
    %183 = arith.addf %180, %182 : vector<1x64xf32>
    %184 = math.tanh %183 : vector<1x64xf32>
    %cst_46 = arith.constant 1.000000e+00 : f32
    %185 = vector.broadcast %cst_46 : f32 to vector<1x64xf32>
    %186 = arith.subf %185, %179 : vector<1x64xf32>
    %187 = arith.mulf %186, %184 : vector<1x64xf32>
    %188 = arith.mulf %179, %167 : vector<1x64xf32>
    %189 = arith.addf %187, %188 : vector<1x64xf32>
    %190 = vector.extract_strided_slice %189 {offsets = [0, 32], sizes = [1, 32], strides = [1, 1]} : vector<1x64xf32> to vector<1x32xf32>
    %cst_47 = arith.constant dense<0.000000e+00> : vector<1x256xf32>
    %191 = tpu.matmul %189, %76, %cst_47 {dimension_numbers = #tpu.dot_dimension_numbers<[1], [0], [0], [1], [0, 0, 1, 1], [], []>} : vector<1x64xf32>, vector<64x256xf32>, vector<1x256xf32> -> vector<1x256xf32>
    %192 = vector.extract_strided_slice %75 {offsets = [5, 0], sizes = [1, 256], strides = [1, 1]} : vector<12x256xf32> to vector<1x256xf32>
    %193 = arith.addf %191, %192 : vector<1x256xf32>
    %194 = vector.extract_strided_slice %193 {offsets = [0, 0], sizes = [1, 128], strides = [1, 1]} : vector<1x256xf32> to vector<1x128xf32>
    %195 = arith.negf %194 : vector<1x128xf32>
    %196 = math.exp %195 : vector<1x128xf32>
    %cst_48 = arith.constant 1.000000e+00 : f32
    %197 = vector.broadcast %cst_48 : f32 to vector<1x128xf32>
    %198 = arith.addf %197, %196 : vector<1x128xf32>
    %199 = arith.divf %197, %198 : vector<1x128xf32>
    %200 = vector.extract_strided_slice %199 {offsets = [0, 0], sizes = [1, 64], strides = [1, 1]} : vector<1x128xf32> to vector<1x64xf32>
    %201 = vector.extract_strided_slice %199 {offsets = [0, 64], sizes = [1, 64], strides = [1, 1]} : vector<1x128xf32> to vector<1x64xf32>
    %202 = vector.extract_strided_slice %193 {offsets = [0, 192], sizes = [1, 64], strides = [1, 1]} : vector<1x256xf32> to vector<1x64xf32>
    %203 = vector.extract_strided_slice %193 {offsets = [0, 128], sizes = [1, 64], strides = [1, 1]} : vector<1x256xf32> to vector<1x64xf32>
    %204 = arith.mulf %200, %203 : vector<1x64xf32>
    %205 = arith.addf %202, %204 : vector<1x64xf32>
    %206 = math.tanh %205 : vector<1x64xf32>
    %cst_49 = arith.constant 1.000000e+00 : f32
    %207 = vector.broadcast %cst_49 : f32 to vector<1x64xf32>
    %208 = arith.subf %207, %201 : vector<1x64xf32>
    %209 = arith.mulf %208, %206 : vector<1x64xf32>
    %210 = arith.mulf %201, %189 : vector<1x64xf32>
    %211 = arith.addf %209, %210 : vector<1x64xf32>
    %212 = vector.extract_strided_slice %211 {offsets = [0, 32], sizes = [1, 32], strides = [1, 1]} : vector<1x64xf32> to vector<1x32xf32>
    %cst_50 = arith.constant dense<0.000000e+00> : vector<1x256xf32>
    %213 = tpu.matmul %211, %76, %cst_50 {dimension_numbers = #tpu.dot_dimension_numbers<[1], [0], [0], [1], [0, 0, 1, 1], [], []>} : vector<1x64xf32>, vector<64x256xf32>, vector<1x256xf32> -> vector<1x256xf32>
    %214 = vector.extract_strided_slice %75 {offsets = [6, 0], sizes = [1, 256], strides = [1, 1]} : vector<12x256xf32> to vector<1x256xf32>
    %215 = arith.addf %213, %214 : vector<1x256xf32>
    %216 = vector.extract_strided_slice %215 {offsets = [0, 0], sizes = [1, 128], strides = [1, 1]} : vector<1x256xf32> to vector<1x128xf32>
    %217 = arith.negf %216 : vector<1x128xf32>
    %218 = math.exp %217 : vector<1x128xf32>
    %cst_51 = arith.constant 1.000000e+00 : f32
    %219 = vector.broadcast %cst_51 : f32 to vector<1x128xf32>
    %220 = arith.addf %219, %218 : vector<1x128xf32>
    %221 = arith.divf %219, %220 : vector<1x128xf32>
    %222 = vector.extract_strided_slice %221 {offsets = [0, 0], sizes = [1, 64], strides = [1, 1]} : vector<1x128xf32> to vector<1x64xf32>
    %223 = vector.extract_strided_slice %221 {offsets = [0, 64], sizes = [1, 64], strides = [1, 1]} : vector<1x128xf32> to vector<1x64xf32>
    %224 = vector.extract_strided_slice %215 {offsets = [0, 192], sizes = [1, 64], strides = [1, 1]} : vector<1x256xf32> to vector<1x64xf32>
    %225 = vector.extract_strided_slice %215 {offsets = [0, 128], sizes = [1, 64], strides = [1, 1]} : vector<1x256xf32> to vector<1x64xf32>
    %226 = arith.mulf %222, %225 : vector<1x64xf32>
    %227 = arith.addf %224, %226 : vector<1x64xf32>
    %228 = math.tanh %227 : vector<1x64xf32>
    %cst_52 = arith.constant 1.000000e+00 : f32
    %229 = vector.broadcast %cst_52 : f32 to vector<1x64xf32>
    %230 = arith.subf %229, %223 : vector<1x64xf32>
    %231 = arith.mulf %230, %228 : vector<1x64xf32>
    %232 = arith.mulf %223, %211 : vector<1x64xf32>
    %233 = arith.addf %231, %232 : vector<1x64xf32>
    %234 = vector.extract_strided_slice %233 {offsets = [0, 32], sizes = [1, 32], strides = [1, 1]} : vector<1x64xf32> to vector<1x32xf32>
    %cst_53 = arith.constant dense<0.000000e+00> : vector<1x256xf32>
    %235 = tpu.matmul %233, %76, %cst_53 {dimension_numbers = #tpu.dot_dimension_numbers<[1], [0], [0], [1], [0, 0, 1, 1], [], []>} : vector<1x64xf32>, vector<64x256xf32>, vector<1x256xf32> -> vector<1x256xf32>
    %236 = vector.extract_strided_slice %75 {offsets = [7, 0], sizes = [1, 256], strides = [1, 1]} : vector<12x256xf32> to vector<1x256xf32>
    %237 = arith.addf %235, %236 : vector<1x256xf32>
    %238 = vector.extract_strided_slice %237 {offsets = [0, 0], sizes = [1, 128], strides = [1, 1]} : vector<1x256xf32> to vector<1x128xf32>
    %239 = arith.negf %238 : vector<1x128xf32>
    %240 = math.exp %239 : vector<1x128xf32>
    %cst_54 = arith.constant 1.000000e+00 : f32
    %241 = vector.broadcast %cst_54 : f32 to vector<1x128xf32>
    %242 = arith.addf %241, %240 : vector<1x128xf32>
    %243 = arith.divf %241, %242 : vector<1x128xf32>
    %244 = vector.extract_strided_slice %243 {offsets = [0, 0], sizes = [1, 64], strides = [1, 1]} : vector<1x128xf32> to vector<1x64xf32>
    %245 = vector.extract_strided_slice %243 {offsets = [0, 64], sizes = [1, 64], strides = [1, 1]} : vector<1x128xf32> to vector<1x64xf32>
    %246 = vector.extract_strided_slice %237 {offsets = [0, 192], sizes = [1, 64], strides = [1, 1]} : vector<1x256xf32> to vector<1x64xf32>
    %247 = vector.extract_strided_slice %237 {offsets = [0, 128], sizes = [1, 64], strides = [1, 1]} : vector<1x256xf32> to vector<1x64xf32>
    %248 = arith.mulf %244, %247 : vector<1x64xf32>
    %249 = arith.addf %246, %248 : vector<1x64xf32>
    %250 = math.tanh %249 : vector<1x64xf32>
    %cst_55 = arith.constant 1.000000e+00 : f32
    %251 = vector.broadcast %cst_55 : f32 to vector<1x64xf32>
    %252 = arith.subf %251, %245 : vector<1x64xf32>
    %253 = arith.mulf %252, %250 : vector<1x64xf32>
    %254 = arith.mulf %245, %233 : vector<1x64xf32>
    %255 = arith.addf %253, %254 : vector<1x64xf32>
    %256 = vector.extract_strided_slice %255 {offsets = [0, 32], sizes = [1, 32], strides = [1, 1]} : vector<1x64xf32> to vector<1x32xf32>
    %cst_56 = arith.constant dense<0.000000e+00> : vector<1x256xf32>
    %257 = tpu.matmul %255, %76, %cst_56 {dimension_numbers = #tpu.dot_dimension_numbers<[1], [0], [0], [1], [0, 0, 1, 1], [], []>} : vector<1x64xf32>, vector<64x256xf32>, vector<1x256xf32> -> vector<1x256xf32>
    %258 = vector.extract_strided_slice %75 {offsets = [8, 0], sizes = [1, 256], strides = [1, 1]} : vector<12x256xf32> to vector<1x256xf32>
    %259 = arith.addf %257, %258 : vector<1x256xf32>
    %260 = vector.extract_strided_slice %259 {offsets = [0, 0], sizes = [1, 128], strides = [1, 1]} : vector<1x256xf32> to vector<1x128xf32>
    %261 = arith.negf %260 : vector<1x128xf32>
    %262 = math.exp %261 : vector<1x128xf32>
    %cst_57 = arith.constant 1.000000e+00 : f32
    %263 = vector.broadcast %cst_57 : f32 to vector<1x128xf32>
    %264 = arith.addf %263, %262 : vector<1x128xf32>
    %265 = arith.divf %263, %264 : vector<1x128xf32>
    %266 = vector.extract_strided_slice %265 {offsets = [0, 0], sizes = [1, 64], strides = [1, 1]} : vector<1x128xf32> to vector<1x64xf32>
    %267 = vector.extract_strided_slice %265 {offsets = [0, 64], sizes = [1, 64], strides = [1, 1]} : vector<1x128xf32> to vector<1x64xf32>
    %268 = vector.extract_strided_slice %259 {offsets = [0, 192], sizes = [1, 64], strides = [1, 1]} : vector<1x256xf32> to vector<1x64xf32>
    %269 = vector.extract_strided_slice %259 {offsets = [0, 128], sizes = [1, 64], strides = [1, 1]} : vector<1x256xf32> to vector<1x64xf32>
    %270 = arith.mulf %266, %269 : vector<1x64xf32>
    %271 = arith.addf %268, %270 : vector<1x64xf32>
    %272 = math.tanh %271 : vector<1x64xf32>
    %cst_58 = arith.constant 1.000000e+00 : f32
    %273 = vector.broadcast %cst_58 : f32 to vector<1x64xf32>
    %274 = arith.subf %273, %267 : vector<1x64xf32>
    %275 = arith.mulf %274, %272 : vector<1x64xf32>
    %276 = arith.mulf %267, %255 : vector<1x64xf32>
    %277 = arith.addf %275, %276 : vector<1x64xf32>
    %278 = vector.extract_strided_slice %277 {offsets = [0, 32], sizes = [1, 32], strides = [1, 1]} : vector<1x64xf32> to vector<1x32xf32>
    %cst_59 = arith.constant dense<0.000000e+00> : vector<1x256xf32>
    %279 = tpu.matmul %277, %76, %cst_59 {dimension_numbers = #tpu.dot_dimension_numbers<[1], [0], [0], [1], [0, 0, 1, 1], [], []>} : vector<1x64xf32>, vector<64x256xf32>, vector<1x256xf32> -> vector<1x256xf32>
    %280 = vector.extract_strided_slice %75 {offsets = [9, 0], sizes = [1, 256], strides = [1, 1]} : vector<12x256xf32> to vector<1x256xf32>
    %281 = arith.addf %279, %280 : vector<1x256xf32>
    %282 = vector.extract_strided_slice %281 {offsets = [0, 0], sizes = [1, 128], strides = [1, 1]} : vector<1x256xf32> to vector<1x128xf32>
    %283 = arith.negf %282 : vector<1x128xf32>
    %284 = math.exp %283 : vector<1x128xf32>
    %cst_60 = arith.constant 1.000000e+00 : f32
    %285 = vector.broadcast %cst_60 : f32 to vector<1x128xf32>
    %286 = arith.addf %285, %284 : vector<1x128xf32>
    %287 = arith.divf %285, %286 : vector<1x128xf32>
    %288 = vector.extract_strided_slice %287 {offsets = [0, 0], sizes = [1, 64], strides = [1, 1]} : vector<1x128xf32> to vector<1x64xf32>
    %289 = vector.extract_strided_slice %287 {offsets = [0, 64], sizes = [1, 64], strides = [1, 1]} : vector<1x128xf32> to vector<1x64xf32>
    %290 = vector.extract_strided_slice %281 {offsets = [0, 192], sizes = [1, 64], strides = [1, 1]} : vector<1x256xf32> to vector<1x64xf32>
    %291 = vector.extract_strided_slice %281 {offsets = [0, 128], sizes = [1, 64], strides = [1, 1]} : vector<1x256xf32> to vector<1x64xf32>
    %292 = arith.mulf %288, %291 : vector<1x64xf32>
    %293 = arith.addf %290, %292 : vector<1x64xf32>
    %294 = math.tanh %293 : vector<1x64xf32>
    %cst_61 = arith.constant 1.000000e+00 : f32
    %295 = vector.broadcast %cst_61 : f32 to vector<1x64xf32>
    %296 = arith.subf %295, %289 : vector<1x64xf32>
    %297 = arith.mulf %296, %294 : vector<1x64xf32>
    %298 = arith.mulf %289, %277 : vector<1x64xf32>
    %299 = arith.addf %297, %298 : vector<1x64xf32>
    %300 = vector.extract_strided_slice %299 {offsets = [0, 32], sizes = [1, 32], strides = [1, 1]} : vector<1x64xf32> to vector<1x32xf32>
    %cst_62 = arith.constant dense<0.000000e+00> : vector<1x256xf32>
    %301 = tpu.matmul %299, %76, %cst_62 {dimension_numbers = #tpu.dot_dimension_numbers<[1], [0], [0], [1], [0, 0, 1, 1], [], []>} : vector<1x64xf32>, vector<64x256xf32>, vector<1x256xf32> -> vector<1x256xf32>
    %302 = vector.extract_strided_slice %75 {offsets = [10, 0], sizes = [1, 256], strides = [1, 1]} : vector<12x256xf32> to vector<1x256xf32>
    %303 = arith.addf %301, %302 : vector<1x256xf32>
    %304 = vector.extract_strided_slice %303 {offsets = [0, 0], sizes = [1, 128], strides = [1, 1]} : vector<1x256xf32> to vector<1x128xf32>
    %305 = arith.negf %304 : vector<1x128xf32>
    %306 = math.exp %305 : vector<1x128xf32>
    %cst_63 = arith.constant 1.000000e+00 : f32
    %307 = vector.broadcast %cst_63 : f32 to vector<1x128xf32>
    %308 = arith.addf %307, %306 : vector<1x128xf32>
    %309 = arith.divf %307, %308 : vector<1x128xf32>
    %310 = vector.extract_strided_slice %309 {offsets = [0, 0], sizes = [1, 64], strides = [1, 1]} : vector<1x128xf32> to vector<1x64xf32>
    %311 = vector.extract_strided_slice %309 {offsets = [0, 64], sizes = [1, 64], strides = [1, 1]} : vector<1x128xf32> to vector<1x64xf32>
    %312 = vector.extract_strided_slice %303 {offsets = [0, 192], sizes = [1, 64], strides = [1, 1]} : vector<1x256xf32> to vector<1x64xf32>
    %313 = vector.extract_strided_slice %303 {offsets = [0, 128], sizes = [1, 64], strides = [1, 1]} : vector<1x256xf32> to vector<1x64xf32>
    %314 = arith.mulf %310, %313 : vector<1x64xf32>
    %315 = arith.addf %312, %314 : vector<1x64xf32>
    %316 = math.tanh %315 : vector<1x64xf32>
    %cst_64 = arith.constant 1.000000e+00 : f32
    %317 = vector.broadcast %cst_64 : f32 to vector<1x64xf32>
    %318 = arith.subf %317, %311 : vector<1x64xf32>
    %319 = arith.mulf %318, %316 : vector<1x64xf32>
    %320 = arith.mulf %311, %299 : vector<1x64xf32>
    %321 = arith.addf %319, %320 : vector<1x64xf32>
    %322 = vector.extract_strided_slice %321 {offsets = [0, 32], sizes = [1, 32], strides = [1, 1]} : vector<1x64xf32> to vector<1x32xf32>
    %cst_65 = arith.constant dense<0.000000e+00> : vector<1x256xf32>
    %323 = tpu.matmul %321, %76, %cst_65 {dimension_numbers = #tpu.dot_dimension_numbers<[1], [0], [0], [1], [0, 0, 1, 1], [], []>} : vector<1x64xf32>, vector<64x256xf32>, vector<1x256xf32> -> vector<1x256xf32>
    %324 = vector.extract_strided_slice %75 {offsets = [11, 0], sizes = [1, 256], strides = [1, 1]} : vector<12x256xf32> to vector<1x256xf32>
    %325 = arith.addf %323, %324 : vector<1x256xf32>
    %326 = vector.extract_strided_slice %325 {offsets = [0, 0], sizes = [1, 128], strides = [1, 1]} : vector<1x256xf32> to vector<1x128xf32>
    %327 = arith.negf %326 : vector<1x128xf32>
    %328 = math.exp %327 : vector<1x128xf32>
    %cst_66 = arith.constant 1.000000e+00 : f32
    %329 = vector.broadcast %cst_66 : f32 to vector<1x128xf32>
    %330 = arith.addf %329, %328 : vector<1x128xf32>
    %331 = arith.divf %329, %330 : vector<1x128xf32>
    %332 = vector.extract_strided_slice %331 {offsets = [0, 0], sizes = [1, 64], strides = [1, 1]} : vector<1x128xf32> to vector<1x64xf32>
    %333 = vector.extract_strided_slice %331 {offsets = [0, 64], sizes = [1, 64], strides = [1, 1]} : vector<1x128xf32> to vector<1x64xf32>
    %334 = vector.extract_strided_slice %325 {offsets = [0, 192], sizes = [1, 64], strides = [1, 1]} : vector<1x256xf32> to vector<1x64xf32>
    %335 = vector.extract_strided_slice %325 {offsets = [0, 128], sizes = [1, 64], strides = [1, 1]} : vector<1x256xf32> to vector<1x64xf32>
    %336 = arith.mulf %332, %335 : vector<1x64xf32>
    %337 = arith.addf %334, %336 : vector<1x64xf32>
    %338 = math.tanh %337 : vector<1x64xf32>
    %cst_67 = arith.constant 1.000000e+00 : f32
    %339 = vector.broadcast %cst_67 : f32 to vector<1x64xf32>
    %340 = arith.subf %339, %333 : vector<1x64xf32>
    %341 = arith.mulf %340, %338 : vector<1x64xf32>
    %342 = arith.mulf %333, %321 : vector<1x64xf32>
    %343 = arith.addf %341, %342 : vector<1x64xf32>
    %344 = arith.select %80, %321, %343 : vector<1x64xi1>, vector<1x64xf32>
    %345 = vector.extract_strided_slice %344 {offsets = [0, 32], sizes = [1, 32], strides = [1, 1]} : vector<1x64xf32> to vector<1x32xf32>
    %c0_68 = arith.constant 0 : index
    %c0_69 = arith.constant 0 : index
    %346 = vector.load %arg13[%c0_68, %c0_69] : memref<1x64xf32, #tpu.memory_space<vmem>>, vector<1x64xf32>
    tpu.vector_store %arg13[%c0_68, %c0_69], %344 {strides = array<i32>} : memref<1x64xf32, #tpu.memory_space<vmem>>, vector<1x64xf32>,
    %347 = tpu.concatenate %124, %146, %168, %190, %212, %234, %256, %278, %300, %322, %345 in 0 : vector<1x32xf32>, vector<1x32xf32>, vector<1x32xf32>, vector<1x32xf32>, vector<1x32xf32>, vector<1x32xf32>, vector<1x32xf32>, vector<1x32xf32>, vector<1x32xf32>, vector<1x32xf32>, vector<1x32xf32> -> vector<11x32xf32>
    %c0_70 = arith.constant 0 : index
    %c0_71 = arith.constant 0 : index
    %348 = vector.load %arg8[%c0_70, %c0_71] : memref<32x35xf32, #tpu.memory_space<vmem>>, vector<32x32xf32>
    %c0_72 = arith.constant 0 : index
    %c32 = arith.constant 32 : index
    %349 = vector.load %arg8[%c0_72, %c32] : memref<32x35xf32, #tpu.memory_space<vmem>>, vector<32x1xf32>
    %c0_73 = arith.constant 0 : index
    %c33 = arith.constant 33 : index
    %350 = vector.load %arg8[%c0_73, %c33] : memref<32x35xf32, #tpu.memory_space<vmem>>, vector<32x2xf32>
    %c0_74 = arith.constant 0 : index
    %c0_75 = arith.constant 0 : index
    %351 = vector.load %arg9[%c0_74, %c0_75] : memref<1x35xf32, #tpu.memory_space<vmem>>, vector<1x32xf32>
    %c0_76 = arith.constant 0 : index
    %c32_77 = arith.constant 32 : index
    %352 = vector.load %arg9[%c0_76, %c32_77] : memref<1x35xf32, #tpu.memory_space<vmem>>, vector<1x1xf32>
    %c0_78 = arith.constant 0 : index
    %c33_79 = arith.constant 33 : index
    %353 = vector.load %arg9[%c0_78, %c33_79] : memref<1x35xf32, #tpu.memory_space<vmem>>, vector<1x2xf32>
    %cst_80 = arith.constant dense<0.000000e+00> : vector<11x32xf32>
    %354 = tpu.matmul %347, %348, %cst_80 {dimension_numbers = #tpu.dot_dimension_numbers<[1], [0], [0], [1], [0, 0, 1, 1], [], []>} : vector<11x32xf32>, vector<32x32xf32>, vector<11x32xf32> -> vector<11x32xf32>
    %355 = vector.broadcast %351 : vector<1x32xf32> to vector<11x32xf32>
    %356 = arith.addf %354, %355 : vector<11x32xf32>
    %357 = math.tanh %356 : vector<11x32xf32>
    %cst_81 = arith.constant dense<0.000000e+00> : vector<11x1xf32>
    %358 = tpu.matmul %357, %349, %cst_81 {dimension_numbers = #tpu.dot_dimension_numbers<[1], [0], [0], [1], [0, 0, 1, 1], [], []>} : vector<11x32xf32>, vector<32x1xf32>, vector<11x1xf32> -> vector<11x1xf32>
    %359 = vector.broadcast %352 : vector<1x1xf32> to vector<11x1xf32>
    %360 = arith.addf %358, %359 : vector<11x1xf32>
    %cst_82 = arith.constant dense<0xFF800000> : vector<1xf32>
    %361 = vector.multi_reduction <maximumf>, %360, %cst_82 [0] : vector<11x1xf32> to vector<1xf32>
    %362 = vector.shape_cast %361 : vector<1xf32> to vector<1x1xf32>
    %363 = vector.broadcast %362 : vector<1x1xf32> to vector<11x1xf32>
    %364 = arith.subf %360, %363 : vector<11x1xf32>
    %365 = math.exp %364 : vector<11x1xf32>
    %cst_83 = arith.constant dense<0.000000e+00> : vector<1xf32>
    %366 = vector.multi_reduction <add>, %365, %cst_83 [0] : vector<11x1xf32> to vector<1xf32>
    %367 = vector.shape_cast %366 : vector<1xf32> to vector<1x1xf32>
    %368 = vector.broadcast %367 : vector<1x1xf32> to vector<11x1xf32>
    %369 = arith.divf %365, %368 : vector<11x1xf32>
    %370 = vector.broadcast %369 : vector<11x1xf32> to vector<11x32xf32>
    %371 = arith.mulf %370, %347 : vector<11x32xf32>
    %cst_84 = arith.constant dense<0.000000e+00> : vector<32xf32>
    %372 = vector.multi_reduction <add>, %371, %cst_84 [0] : vector<11x32xf32> to vector<32xf32>
    %373 = vector.shape_cast %372 : vector<32xf32> to vector<1x32xf32>
    %cst_85 = arith.constant dense<0.000000e+00> : vector<1x2xf32>
    %374 = tpu.matmul %373, %350, %cst_85 {dimension_numbers = #tpu.dot_dimension_numbers<[1], [0], [0], [1], [0, 0, 1, 1], [], []>} : vector<1x32xf32>, vector<32x2xf32>, vector<1x2xf32> -> vector<1x2xf32>
    %375 = arith.addf %374, %353 : vector<1x2xf32>
    %cst_86 = arith.constant dense<0xFF800000> : vector<1xf32>
    %376 = vector.multi_reduction <maximumf>, %375, %cst_86 [1] : vector<1x2xf32> to vector<1xf32>
    %377 = vector.shape_cast %376 : vector<1xf32> to vector<1x1xf32>
    %378 = vector.broadcast %377 : vector<1x1xf32> to vector<1x2xf32>
    %379 = arith.subf %375, %378 : vector<1x2xf32>
    %380 = math.exp %379 : vector<1x2xf32>
    %cst_87 = arith.constant dense<0.000000e+00> : vector<1xf32>
    %381 = vector.multi_reduction <add>, %380, %cst_87 [1] : vector<1x2xf32> to vector<1xf32>
    %382 = vector.shape_cast %381 : vector<1xf32> to vector<1x1xf32>
    %383 = vector.broadcast %382 : vector<1x1xf32> to vector<1x2xf32>
    %384 = arith.divf %380, %383 : vector<1x2xf32>
    %c0_88 = arith.constant 0 : index
    %c0_89 = arith.constant 0 : index
    %385 = vector.load %arg12[%c0_88, %c0_89] : memref<1x2xf32, #tpu.memory_space<vmem>>, vector<1x2xf32>
    tpu.vector_store %arg12[%c0_88, %c0_89], %384 {strides = array<i32>} : memref<1x2xf32, #tpu.memory_space<vmem>>, vector<1x2xf32>,
    return
  }
}

</mosaic_0001>

<llo_original>
// kernel: reverse.1
$region0: #{reverse.1}
  %s0 = inlined_call_operand.vmem [shape: f32[256], index: 0, kind: input, shape index: {}]
  %s1 = inlined_call_operand.vmem [shape: f32[256], index: 1, kind: output, shape index: {}]
  %v2 = vlaneseq
  %v3 = vsub.s32 127, %v2
  %4 = vset.pattern.permute.xlu0 %v3
  $region1: #{reverse.1} parent=0
    #allocation0 [shape = 'u8[8192]{0}', space=vmem, size = 0x2000, scoped, tag = 'operand span for operand 0']
    #allocation1 [shape = 'u8[2048]{0}', space=vmem, size = 0x800, scoped, tag = 'packed  for operand 0']
    #allocation2 [shape = 'u8[4096]{0}', space=vmem, size = 0x1000, scoped, tag = 'operand span for operand 1']
    #allocation3 [shape = 'u8[1024]{0}', space=vmem, size = 0x400, scoped, tag = 'packed  for operand 1']
    %s5 = scalar_lea.vmem [#allocation1], 2
    // Predicated region
    $region2: #{reverse.1} parent=1 // pred_check
      _
    $region3: #{reverse.1} parent=1 // pred_check_branch
      %7 = sbr.rel (0) target = $region5
    $region4: #{reverse.1} parent=1 // pred_region
      // Predicated region
      $region6: #{reverse.1} parent=4 // pred_check
        _
      $region7: #{reverse.1} parent=4 // pred_check_branch
        %9 = sbr.rel target = $region9
      $region8: #{reverse.1} parent=4 // pred_region
        // Predicated region
        $region21: #{reverse.1} parent=8 // pred_check
          _
        $region22: #{reverse.1} parent=8 // pred_check_branch
          %25 = sbr.rel (0) target = $region24
        $region23: #{reverse.1} parent=8 // pred_region
          %s27 = ssub.s32 4, 1
          loop: start=0, step=1, limit=1
          $region25: #{reverse.1} parent=23 // loop_pre_header
            _
          $region26: #{reverse.1} parent=23 // loop_header
            %s29 = sphi 0, %s33
            %p30 = scmp.ge.s32.totalorder %s29, 1
            %s34 = sphi %s0, %s0
            %s35 = sphi %s5, %s5
          $region27: #{reverse.1} parent=23 // loop_header_branch
            %32 = sbr.rel (%p30) target = $region31
          $region28: #{reverse.1} parent=23 // loop_body
            %v36 = vld [vmem:[%s34] sm:%s27]
            %37 = vst [vmem:[%s35] sm:%s27] %v36
          $region29: #{reverse.1} parent=23 // loop_footer
            %s33 = sadd.s32 1, %s29
          $region30: #{reverse.1} parent=23 // loop_footer_branch
            %28 = sbr.rel target = $region26
          $region31: #{reverse.1} parent=23 // loop_exit
            _
        $region24: #{reverse.1} parent=8 // pred_fallthru
          _
      $region9: #{reverse.1} parent=4 // pred_fallthru
        _
      // Predicated region
      $region10: #{reverse.1} parent=4 // pred_check
        _
      $region11: #{reverse.1} parent=4 // pred_check_branch
        %11 = sbr.rel (0) target = $region13
      $region12: #{reverse.1} parent=4 // pred_region
        %s13 = ssub.s32 4, 1
        loop: start=0, step=1, limit=1
        $region14: #{reverse.1} parent=12 // loop_pre_header
          _
        $region15: #{reverse.1} parent=12 // loop_header
          %s15 = sphi 0, %s19
          %p16 = scmp.ge.s32.totalorder %s15, 1
          %s20 = sphi %s0, %s0
          %s21 = sphi %s5, %s5
        $region16: #{reverse.1} parent=12 // loop_header_branch
          %18 = sbr.rel (%p16) target = $region20
        $region17: #{reverse.1} parent=12 // loop_body
          %v22 = vld [vmem:[%s20] sm:%s13]
          %23 = vst [vmem:[%s21] sm:%s13] %v22
        $region18: #{reverse.1} parent=12 // loop_footer
          %s19 = sadd.s32 1, %s15
        $region19: #{reverse.1} parent=12 // loop_footer_branch
          %14 = sbr.rel target = $region15
        $region20: #{reverse.1} parent=12 // loop_exit
          _
      $region13: #{reverse.1} parent=4 // pred_fallthru
        _
    $region5: #{reverse.1} parent=1 // pred_fallthru
      _
    %38 = vnop
    %s40 = sshll.u32 1, 2
    %s41 = ssub.s32 %s40, 1
    %s42 = scalar_lea.vmem [#allocation1], 2
    %v43 = vld [vmem:[%s42] sm:%s41]
    %s44 = scalar_lea.vmem [#allocation0], 8
    %45 = vst [vmem:[%s44] sm:%s41] %v43
    %v46 = vld [vmem:[#allocation1] sm:%s41]
    %47 = vst [vmem:[#allocation0] sm:%s41] %v46
    %s48 = scalar_lea.vmem [#allocation0], 7
    %v49 = vld [vmem:[%s48] ss:$-1 sm:$0xff]
    %v50 = vrot.slane %v49, 6
    %51 = vperm.xlu0 %4, %v50
    %v52 = vpop.permute.xlu0 %51
    %53 = vst [vmem:[#allocation2] sm:$0xff] %v52
    %s54 = scalar_lea.vmem [#allocation0], 8
    %s55 = scalar_lea.vmem %s54, 7 [#allocation0]
    %v56 = vld [vmem:[%s55] ss:$-1 sm:$0xff]
    %v57 = vrot.slane %v56, 6
    %58 = vperm.xlu0 %4, %v57
    %v59 = vpop.permute.xlu0 %58
    %v60 = vlaneseq
    %v61 = vshrl.u32 %v60, 7
    %vm62 = vcmp.lt.s32.totalorder %v61, 2
    %63 = vst.msk [vmem:[#allocation2] sm:$0xff] %vm62, %v59
    %s65 = sshll.u32 1, 2
    %s66 = ssub.s32 %s65, 1
    %v68 = vld [vmem:[#allocation2] sm:%s66]
    %s69 = sshll.u32 1, 2
    %s70 = ssub.s32 %s69, 1
    %71 = vst [vmem:[#allocation3] sm:%s70] %v68
    // Predicated region
    $region32: #{reverse.1} parent=1 // pred_check
      _
    $region33: #{reverse.1} parent=1 // pred_check_branch
      %73 = sbr.rel (0) target = $region35
    $region34: #{reverse.1} parent=1 // pred_region
      // Predicated region
      $region36: #{reverse.1} parent=34 // pred_check
        _
      $region37: #{reverse.1} parent=34 // pred_check_branch
        %75 = sbr.rel target = $region39
      $region38: #{reverse.1} parent=34 // pred_region
        // Predicated region
        $region51: #{reverse.1} parent=38 // pred_check
          _
        $region52: #{reverse.1} parent=38 // pred_check_branch
          %91 = sbr.rel (0) target = $region54
        $region53: #{reverse.1} parent=38 // pred_region
          %s93 = ssub.s32 4, 1
          loop: start=0, step=1, limit=1
          $region55: #{reverse.1} parent=53 // loop_pre_header
            _
          $region56: #{reverse.1} parent=53 // loop_header
            %s95 = sphi 0, %s99
            %p96 = scmp.ge.s32.totalorder %s95, 1
            %s100 = sphi [#allocation3], [#allocation3]
            %s101 = sphi %s1, %s1
          $region57: #{reverse.1} parent=53 // loop_header_branch
            %98 = sbr.rel (%p96) target = $region61
          $region58: #{reverse.1} parent=53 // loop_body
            %v102 = vld [vmem:[%s100] sm:%s93]
            %103 = vst [vmem:[%s101] sm:%s93] %v102
          $region59: #{reverse.1} parent=53 // loop_footer
            %s99 = sadd.s32 1, %s95
          $region60: #{reverse.1} parent=53 // loop_footer_branch
            %94 = sbr.rel target = $region56
          $region61: #{reverse.1} parent=53 // loop_exit
            _
        $region54: #{reverse.1} parent=38 // pred_fallthru
          _
      $region39: #{reverse.1} parent=34 // pred_fallthru
        _
      // Predicated region
      $region40: #{reverse.1} parent=34 // pred_check
        _
      $region41: #{reverse.1} parent=34 // pred_check_branch
        %77 = sbr.rel (0) target = $region43
      $region42: #{reverse.1} parent=34 // pred_region
        %s79 = ssub.s32 4, 1
        loop: start=0, step=1, limit=1
        $region44: #{reverse.1} parent=42 // loop_pre_header
          _
        $region45: #{reverse.1} parent=42 // loop_header
          %s81 = sphi 0, %s85
          %p82 = scmp.ge.s32.totalorder %s81, 1
          %s86 = sphi [#allocation3], [#allocation3]
          %s87 = sphi %s1, %s1
        $region46: #{reverse.1} parent=42 // loop_header_branch
          %84 = sbr.rel (%p82) target = $region50
        $region47: #{reverse.1} parent=42 // loop_body
          %v88 = vld [vmem:[%s86] sm:%s79]
          %89 = vst [vmem:[%s87] sm:%s79] %v88
        $region48: #{reverse.1} parent=42 // loop_footer
          %s85 = sadd.s32 1, %s81
        $region49: #{reverse.1} parent=42 // loop_footer_branch
          %80 = sbr.rel target = $region45
        $region50: #{reverse.1} parent=42 // loop_exit
          _
      $region43: #{reverse.1} parent=34 // pred_fallthru
        _
    $region35: #{reverse.1} parent=1 // pred_fallthru
      _
    %104 = vnop

// kernel: forward.1
$region0: #{forward.1}
  #allocation0 [shape = 'u32[]', space=smem, size = 0x4, offset = 0x4, fixed_abs, tag = 'smem constant byte address 0x4 - core index']
  #allocation1 [shape = 'u32[144,128]{1,0:T(1,128)}', space=vmem, size = 0x12000, scoped, tag = 'internal scratch']
  %s0 = inlined_call_operand.vmem [shape: f32[11,400], index: 0, kind: input, shape index: {}]
  %s1 = inlined_call_operand.vmem [shape: bf16[400,512], index: 1, kind: input, shape index: {}]
  %s2 = inlined_call_operand.vmem [shape: bf16[256,40], index: 2, kind: input, shape index: {}]
  %s3 = inlined_call_operand.vmem [shape: bf16[220,101], index: 3, kind: input, shape index: {}]
  %s4 = inlined_call_operand.vmem [shape: f32[101,40], index: 4, kind: input, shape index: {}, may-alias: {4,11}]
  %s5 = inlined_call_operand.vmem [shape: bf16[800,96], index: 5, kind: input, shape index: {}]
  %s6 = inlined_call_operand.vmem [shape: f32[64,256], index: 6, kind: input, shape index: {}]
  %s7 = inlined_call_operand.vmem [shape: f32[1,256], index: 7, kind: input, shape index: {}]
  %s8 = inlined_call_operand.vmem [shape: f32[32,35], index: 8, kind: input, shape index: {}]
  %s9 = inlined_call_operand.vmem [shape: f32[1,35], index: 9, kind: input, shape index: {}]
  %s10 = inlined_call_operand.vmem [shape: f32[1,64], index: 10, kind: input, shape index: {}, may-alias: {10,13}]
  %s11 = inlined_call_operand.vmem [shape: f32[101,40], index: 11, kind: output, shape index: {0}, may-alias: {4,11}]
  %s12 = inlined_call_operand.vmem [shape: f32[1,2], index: 12, kind: output, shape index: {1}]
  %s13 = inlined_call_operand.vmem [shape: f32[1,64], index: 13, kind: output, shape index: {2}, may-alias: {10,13}]
  %14 = xla_tuple %s11, %s12, %s13
  %s15 = sld [smem:[#allocation0]]
  $region70: #{forward.1} parent=0
    _
  %s17 = ssub.s32 1, %s15
  %s18 = scalar_select 0, %s17, %s15
  // Predicated region
  $region2: #{forward.1} parent=0 // pred_check
    _
  $region3: #{forward.1} parent=0 // pred_check_branch
    %20 = sbr.rel (0) target = $region5
  $region4: #{forward.1} parent=0 // pred_region
    _
  $region5: #{forward.1} parent=0 // pred_fallthru
    _
  // Predicated region
  $region6: #{forward.1} parent=0 // pred_check
    _
  $region7: #{forward.1} parent=0 // pred_check_branch
    %22 = sbr.rel (0) target = $region9
  $region8: #{forward.1} parent=0 // pred_region
    _
  $region9: #{forward.1} parent=0 // pred_fallthru
    _
  // Predicated region
  $region10: #{forward.1} parent=0 // pred_check
    _
  $region11: #{forward.1} parent=0 // pred_check_branch
    %24 = sbr.rel (0) target = $region13
  $region12: #{forward.1} parent=0 // pred_region
    _
  $region13: #{forward.1} parent=0 // pred_fallthru
    _
  // Predicated region
  $region14: #{forward.1} parent=0 // pred_check
    _
  $region15: #{forward.1} parent=0 // pred_check_branch
    %26 = sbr.rel (0) target = $region17
  $region16: #{forward.1} parent=0 // pred_region
    _
  $region17: #{forward.1} parent=0 // pred_fallthru
    _
  // Predicated region
  $region18: #{forward.1} parent=0 // pred_check
    _
  $region19: #{forward.1} parent=0 // pred_check_branch
    %28 = sbr.rel (0) target = $region21
  $region20: #{forward.1} parent=0 // pred_region
    _
  $region21: #{forward.1} parent=0 // pred_fallthru
    _
  // Predicated region
  $region22: #{forward.1} parent=0 // pred_check
    _
  $region23: #{forward.1} parent=0 // pred_check_branch
    %30 = sbr.rel (0) target = $region25
  $region24: #{forward.1} parent=0 // pred_region
    _
  $region25: #{forward.1} parent=0 // pred_fallthru
    _
  // Predicated region
  $region26: #{forward.1} parent=0 // pred_check
    _
  $region27: #{forward.1} parent=0 // pred_check_branch
    %32 = sbr.rel (0) target = $region29
  $region28: #{forward.1} parent=0 // pred_region
    _
  $region29: #{forward.1} parent=0 // pred_fallthru
    _
  // Predicated region
  $region30: #{forward.1} parent=0 // pred_check
    _
  $region31: #{forward.1} parent=0 // pred_check_branch
    %34 = sbr.rel (0) target = $region33
  $region32: #{forward.1} parent=0 // pred_region
    _
  $region33: #{forward.1} parent=0 // pred_fallthru
    _
  // Predicated region
  $region34: #{forward.1} parent=0 // pred_check
    _
  $region35: #{forward.1} parent=0 // pred_check_branch
    %36 = sbr.rel (0) target = $region37
  $region36: #{forward.1} parent=0 // pred_region
    _
  $region37: #{forward.1} parent=0 // pred_fallthru
    _
  // Predicated region
  $region38: #{forward.1} parent=0 // pred_check
    _
  $region39: #{forward.1} parent=0 // pred_check_branch
    %38 = sbr.rel (0) target = $region41
  $region40: #{forward.1} parent=0 // pred_region
    _
  $region41: #{forward.1} parent=0 // pred_fallthru
    _
  // Predicated region
  $region42: #{forward.1} parent=0 // pred_check
    _
  $region43: #{forward.1} parent=0 // pred_check_branch
    %40 = sbr.rel (0) target = $region45
  $region44: #{forward.1} parent=0 // pred_region
    _
  $region45: #{forward.1} parent=0 // pred_fallthru
    _
  %v42 = vld [vmem:[%s4 + $0xb] sm:$0xff]
  %v43 = vld [vmem:[%s4 + $0x13] sm:$0xff]
  %v44 = vld [vmem:[%s4 + $0x1b] sm:$0xff]
  %v45 = vld [vmem:[%s4 + $0x23] sm:$0xff]
  %v46 = vld [vmem:[%s4 + $0x2b] sm:$0xff]
  %v47 = vld [vmem:[%s4 + $0x33] sm:$0xff]
  %v48 = vld [vmem:[%s4 + $0x3b] sm:$0xff]
  %v49 = vld [vmem:[%s4 + $0x43] sm:$0xff]
  %v50 = vld [vmem:[%s4 + $0x4b] sm:$0xff]
  %v51 = vld [vmem:[%s4 + $0x53] sm:$0xff]
  %v52 = vld [vmem:[%s4 + $0x5b] sm:$0xff]
  %v53 = vld [vmem:[%s4 + $0x63] sm:$0x3]
  %v54 = vld [vmem:[%s0] sm:$0xff]
  %v55 = vld [vmem:[%s0 + $0x8] sm:$0xff]
  %v56 = vld [vmem:[%s0 + $0x10] sm:$0xff]
  %v57 = vld [vmem:[%s0 + $0x18] sm:$0xff]
  %v58 = vld [vmem:[%s0 + $0x20] sm:$0x7]
  %v59 = vld [vmem:[%s0 + $0x28] sm:$0x7]
  %v60 = vld [vmem:[%s0 + $0x30] sm:$0x7]
  %v61 = vld [vmem:[%s0 + $0x38] sm:$0x7]
  %v62 = vpack.c.bf16 %v58, %v54
  %v63 = vpack.c.bf16 %v59, %v55
  %v64 = vpack.c.bf16 %v60, %v56
  %v65 = vpack.c.bf16 %v61, %v57
  %v66 = vld [vmem:[%s1] sm:$0xff]
  %v67 = vld [vmem:[%s1 + $0x8] sm:$0xff]
  %v68 = vld [vmem:[%s1 + $0x10] sm:$0xff]
  %v69 = vld [vmem:[%s1 + $0x18] sm:$0xff]
  %v70 = vld [vmem:[%s1 + $0x20] sm:$0xff]
  %v71 = vld [vmem:[%s1 + $0x28] sm:$0xff]
  %v72 = vld [vmem:[%s1 + $0x30] sm:$0xff]
  %v73 = vld [vmem:[%s1 + $0x38] sm:$0xff]
  %v74 = vld [vmem:[%s1 + $0x40] sm:$0xff]
  %v75 = vld [vmem:[%s1 + $0x48] sm:$0xff]
  %v76 = vld [vmem:[%s1 + $0x50] sm:$0xff]
  %v77 = vld [vmem:[%s1 + $0x58] sm:$0xff]
  %v78 = vld [vmem:[%s1 + $0x60] sm:$0xff]
  %v79 = vld [vmem:[%s1 + $0x68] sm:$0xff]
  %v80 = vld [vmem:[%s1 + $0x70] sm:$0xff]
  %v81 = vld [vmem:[%s1 + $0x78] sm:$0xff]
  %v82 = vld [vmem:[%s1 + $0x80] sm:$0xff]
  %v83 = vld [vmem:[%s1 + $0x88] sm:$0xff]
  %v84 = vld [vmem:[%s1 + $0x90] sm:$0xff]
  %v85 = vld [vmem:[%s1 + $0x98] sm:$0xff]
  %v86 = vld [vmem:[%s1 + $0xa0] sm:$0xff]
  %v87 = vld [vmem:[%s1 + $0xa8] sm:$0xff]
  %v88 = vld [vmem:[%s1 + $0xb0] sm:$0xff]
  %v89 = vld [vmem:[%s1 + $0xb8] sm:$0xff]
  %v90 = vld [vmem:[%s1 + $0xc0] sm:$0xff]
  %v91 = vld [vmem:[%s1 + $0xc8] sm:$0xff]
  %v92 = vld [vmem:[%s1 + $0xd0] sm:$0xff]
  %v93 = vld [vmem:[%s1 + $0xd8] sm:$0xff]
  %v94 = vld [vmem:[%s1 + $0xe0] sm:$0xff]
  %v95 = vld [vmem:[%s1 + $0xe8] sm:$0xff]
  %v96 = vld [vmem:[%s1 + $0xf0] sm:$0xff]
  %v97 = vld [vmem:[%s1 + $0xf8] sm:$0xff]
  %v98 = vld [vmem:[%s1 + $0x100] sm:$0xff]
  %v99 = vld [vmem:[%s1 + $0x108] sm:$0xff]
  %v100 = vld [vmem:[%s1 + $0x110] sm:$0xff]
  %v101 = vld [vmem:[%s1 + $0x118] sm:$0xff]
  %v102 = vld [vmem:[%s1 + $0x120] sm:$0xff]
  %v103 = vld [vmem:[%s1 + $0x128] sm:$0xff]
  %v104 = vld [vmem:[%s1 + $0x130] sm:$0xff]
  %v105 = vld [vmem:[%s1 + $0x138] sm:$0xff]
  %v106 = vld [vmem:[%s1 + $0x140] sm:$0xff]
  %v107 = vld [vmem:[%s1 + $0x148] sm:$0xff]
  %v108 = vld [vmem:[%s1 + $0x150] sm:$0xff]
  %v109 = vld [vmem:[%s1 + $0x158] sm:$0xff]
  %v110 = vld [vmem:[%s1 + $0x160] sm:$0xff]
  %v111 = vld [vmem:[%s1 + $0x168] sm:$0xff]
  %v112 = vld [vmem:[%s1 + $0x170] sm:$0xff]
  %v113 = vld [vmem:[%s1 + $0x178] sm:$0xff]
  %v114 = vld [vmem:[%s1 + $0x180] sm:$0xff]
  %v115 = vld [vmem:[%s1 + $0x188] sm:$0xff]
  %v116 = vld [vmem:[%s1 + $0x190] sm:$0xff]
  %v117 = vld [vmem:[%s1 + $0x198] sm:$0xff]
  %v118 = vld [vmem:[%s1 + $0x1a0] sm:$0xff]
  %v119 = vld [vmem:[%s1 + $0x1a8] sm:$0xff]
  %v120 = vld [vmem:[%s1 + $0x1b0] sm:$0xff]
  %v121 = vld [vmem:[%s1 + $0x1b8] sm:$0xff]
  %v122 = vld [vmem:[%s1 + $0x1c0] sm:$0xff]
  %v123 = vld [vmem:[%s1 + $0x1c8] sm:$0xff]
  %v124 = vld [vmem:[%s1 + $0x1d0] sm:$0xff]
  %v125 = vld [vmem:[%s1 + $0x1d8] sm:$0xff]
  %v126 = vld [vmem:[%s1 + $0x1e0] sm:$0xff]
  %v127 = vld [vmem:[%s1 + $0x1e8] sm:$0xff]
  %v128 = vld [vmem:[%s1 + $0x1f0] sm:$0xff]
  %v129 = vld [vmem:[%s1 + $0x1f8] sm:$0xff]
  %v130 = vld [vmem:[%s1 + $0x200] sm:$0xff]
  %v131 = vld [vmem:[%s1 + $0x208] sm:$0xff]
  %v132 = vld [vmem:[%s1 + $0x210] sm:$0xff]
  %v133 = vld [vmem:[%s1 + $0x218] sm:$0xff]
  %v134 = vld [vmem:[%s1 + $0x220] sm:$0xff]
  %v135 = vld [vmem:[%s1 + $0x228] sm:$0xff]
  %v136 = vld [vmem:[%s1 + $0x230] sm:$0xff]
  %v137 = vld [vmem:[%s1 + $0x238] sm:$0xff]
  %v138 = vld [vmem:[%s1 + $0x240] sm:$0xff]
  %v139 = vld [vmem:[%s1 + $0x248] sm:$0xff]
  %v140 = vld [vmem:[%s1 + $0x250] sm:$0xff]
  %v141 = vld [vmem:[%s1 + $0x258] sm:$0xff]
  %v142 = vld [vmem:[%s1 + $0x260] sm:$0xff]
  %v143 = vld [vmem:[%s1 + $0x268] sm:$0xff]
  %v144 = vld [vmem:[%s1 + $0x270] sm:$0xff]
  %v145 = vld [vmem:[%s1 + $0x278] sm:$0xff]
  %v146 = vld [vmem:[%s1 + $0x280] sm:$0xff]
  %v147 = vld [vmem:[%s1 + $0x288] sm:$0xff]
  %v148 = vld [vmem:[%s1 + $0x290] sm:$0xff]
  %v149 = vld [vmem:[%s1 + $0x298] sm:$0xff]
  %v150 = vld [vmem:[%s1 + $0x2a0] sm:$0xff]
  %v151 = vld [vmem:[%s1 + $0x2a8] sm:$0xff]
  %v152 = vld [vmem:[%s1 + $0x2b0] sm:$0xff]
  %v153 = vld [vmem:[%s1 + $0x2b8] sm:$0xff]
  %v154 = vld [vmem:[%s1 + $0x2c0] sm:$0xff]
  %v155 = vld [vmem:[%s1 + $0x2c8] sm:$0xff]
  %v156 = vld [vmem:[%s1 + $0x2d0] sm:$0xff]
  %v157 = vld [vmem:[%s1 + $0x2d8] sm:$0xff]
  %v158 = vld [vmem:[%s1 + $0x2e0] sm:$0xff]
  %v159 = vld [vmem:[%s1 + $0x2e8] sm:$0xff]
  %v160 = vld [vmem:[%s1 + $0x2f0] sm:$0xff]
  %v161 = vld [vmem:[%s1 + $0x2f8] sm:$0xff]
  %v162 = vld [vmem:[%s1 + $0x300] sm:$0xff]
  %v163 = vld [vmem:[%s1 + $0x308] sm:$0xff]
  %v164 = vld [vmem:[%s1 + $0x310] sm:$0xff]
  %v165 = vld [vmem:[%s1 + $0x318] sm:$0xff]
  %v266 = vunpack.c.l.b16 %v66
  %v267 = vunpack.c.h.b16 %v66
  %v268 = vunpack.c.l.b16 %v67
  %v269 = vunpack.c.h.b16 %v67
  %v270 = vunpack.c.l.b16 %v68
  %v271 = vunpack.c.h.b16 %v68
  %v272 = vunpack.c.l.b16 %v69
  %v273 = vunpack.c.h.b16 %v69
  %v274 = vunpack.c.l.b16 %v70
  %v275 = vunpack.c.h.b16 %v70
  %v276 = vunpack.c.l.b16 %v71
  %v277 = vunpack.c.h.b16 %v71
  %v278 = vunpack.c.l.b16 %v72
  %v279 = vunpack.c.h.b16 %v72
  %v280 = vunpack.c.l.b16 %v73
  %v281 = vunpack.c.h.b16 %v73
  %v282 = vunpack.c.l.b16 %v74
  %v283 = vunpack.c.h.b16 %v74
  %v284 = vunpack.c.l.b16 %v75
  %v285 = vunpack.c.h.b16 %v75
  %v286 = vunpack.c.l.b16 %v76
  %v287 = vunpack.c.h.b16 %v76
  %v288 = vunpack.c.l.b16 %v77
  %v289 = vunpack.c.h.b16 %v77
  %v290 = vunpack.c.l.b16 %v78
  %v291 = vunpack.c.h.b16 %v78
  %v292 = vunpack.c.l.b16 %v79
  %v293 = vunpack.c.h.b16 %v79
  %v294 = vunpack.c.l.b16 %v80
  %v295 = vunpack.c.h.b16 %v80
  %v296 = vunpack.c.l.b16 %v81
  %v297 = vunpack.c.h.b16 %v81
  %v298 = vunpack.c.l.b16 %v82
  %v299 = vunpack.c.h.b16 %v82
  %v300 = vunpack.c.l.b16 %v83
  %v301 = vunpack.c.h.b16 %v83
  %v302 = vunpack.c.l.b16 %v84
  %v303 = vunpack.c.h.b16 %v84
  %v304 = vunpack.c.l.b16 %v85
  %v305 = vunpack.c.h.b16 %v85
  %v306 = vunpack.c.l.b16 %v86
  %v307 = vunpack.c.h.b16 %v86
  %v308 = vunpack.c.l.b16 %v87
  %v309 = vunpack.c.h.b16 %v87
  %v310 = vunpack.c.l.b16 %v88
  %v311 = vunpack.c.h.b16 %v88
  %v312 = vunpack.c.l.b16 %v89
  %v313 = vunpack.c.h.b16 %v89
  %v314 = vunpack.c.l.b16 %v90
  %v315 = vunpack.c.h.b16 %v90
  %v316 = vunpack.c.l.b16 %v91
  %v317 = vunpack.c.h.b16 %v91
  %v318 = vunpack.c.l.b16 %v92
  %v319 = vunpack.c.h.b16 %v92
  %v320 = vunpack.c.l.b16 %v93
  %v321 = vunpack.c.h.b16 %v93
  %v322 = vunpack.c.l.b16 %v94
  %v323 = vunpack.c.h.b16 %v94
  %v324 = vunpack.c.l.b16 %v95
  %v325 = vunpack.c.h.b16 %v95
  %v326 = vunpack.c.l.b16 %v96
  %v327 = vunpack.c.h.b16 %v96
  %v328 = vunpack.c.l.b16 %v97
  %v329 = vunpack.c.h.b16 %v97
  %v330 = vunpack.c.l.b16 %v98
  %v331 = vunpack.c.h.b16 %v98
  %v332 = vunpack.c.l.b16 %v99
  %v333 = vunpack.c.h.b16 %v99
  %v334 = vunpack.c.l.b16 %v100
  %v335 = vunpack.c.h.b16 %v100
  %v336 = vunpack.c.l.b16 %v101
  %v337 = vunpack.c.h.b16 %v101
  %v338 = vunpack.c.l.b16 %v102
  %v339 = vunpack.c.h.b16 %v102
  %v340 = vunpack.c.l.b16 %v103
  %v341 = vunpack.c.h.b16 %v103
  %v342 = vunpack.c.l.b16 %v104
  %v343 = vunpack.c.h.b16 %v104
  %v344 = vunpack.c.l.b16 %v105
  %v345 = vunpack.c.h.b16 %v105
  %v346 = vunpack.c.l.b16 %v106
  %v347 = vunpack.c.h.b16 %v106
  %v348 = vunpack.c.l.b16 %v107
  %v349 = vunpack.c.h.b16 %v107
  %v350 = vunpack.c.l.b16 %v108
  %v351 = vunpack.c.h.b16 %v108
  %v352 = vunpack.c.l.b16 %v109
  %v353 = vunpack.c.h.b16 %v109
  %v354 = vunpack.c.l.b16 %v110
  %v355 = vunpack.c.h.b16 %v110
  %v356 = vunpack.c.l.b16 %v111
  %v357 = vunpack.c.h.b16 %v111
  %v358 = vunpack.c.l.b16 %v112
  %v359 = vunpack.c.h.b16 %v112
  %v360 = vunpack.c.l.b16 %v113
  %v361 = vunpack.c.h.b16 %v113
  %v362 = vunpack.c.l.b16 %v114
  %v363 = vunpack.c.h.b16 %v114
  %v364 = vunpack.c.l.b16 %v115
  %v365 = vunpack.c.h.b16 %v115
  %v366 = vunpack.c.l.b16 %v116
  %v367 = vunpack.c.h.b16 %v116
  %v368 = vunpack.c.l.b16 %v117
  %v369 = vunpack.c.h.b16 %v117
  %v370 = vunpack.c.l.b16 %v118
  %v371 = vunpack.c.h.b16 %v118
  %v372 = vunpack.c.l.b16 %v119
  %v373 = vunpack.c.h.b16 %v119
  %v374 = vunpack.c.l.b16 %v120
  %v375 = vunpack.c.h.b16 %v120
  %v376 = vunpack.c.l.b16 %v121
  %v377 = vunpack.c.h.b16 %v121
  %v378 = vunpack.c.l.b16 %v122
  %v379 = vunpack.c.h.b16 %v122
  %v380 = vunpack.c.l.b16 %v123
  %v381 = vunpack.c.h.b16 %v123
  %v382 = vunpack.c.l.b16 %v124
  %v383 = vunpack.c.h.b16 %v124
  %v384 = vunpack.c.l.b16 %v125
  %v385 = vunpack.c.h.b16 %v125
  %v386 = vunpack.c.l.b16 %v126
  %v387 = vunpack.c.h.b16 %v126
  %v388 = vunpack.c.l.b16 %v127
  %v389 = vunpack.c.h.b16 %v127
  %v390 = vunpack.c.l.b16 %v128
  %v391 = vunpack.c.h.b16 %v128
  %v392 = vunpack.c.l.b16 %v129
  %v393 = vunpack.c.h.b16 %v129
  %v394 = vunpack.c.l.b16 %v130
  %v395 = vunpack.c.h.b16 %v130
  %v396 = vunpack.c.l.b16 %v131
  %v397 = vunpack.c.h.b16 %v131
  %v398 = vunpack.c.l.b16 %v132
  %v399 = vunpack.c.h.b16 %v132
  %v400 = vunpack.c.l.b16 %v133
  %v401 = vunpack.c.h.b16 %v133
  %v402 = vunpack.c.l.b16 %v134
  %v403 = vunpack.c.h.b16 %v134
  %v404 = vunpack.c.l.b16 %v135
  %v405 = vunpack.c.h.b16 %v135
  %v406 = vunpack.c.l.b16 %v136
  %v407 = vunpack.c.h.b16 %v136
  %v408 = vunpack.c.l.b16 %v137
  %v409 = vunpack.c.h.b16 %v137
  %v410 = vunpack.c.l.b16 %v138
  %v411 = vunpack.c.h.b16 %v138
  %v412 = vunpack.c.l.b16 %v139
  %v413 = vunpack.c.h.b16 %v139
  %v414 = vunpack.c.l.b16 %v140
  %v415 = vunpack.c.h.b16 %v140
  %v416 = vunpack.c.l.b16 %v141
  %v417 = vunpack.c.h.b16 %v141
  %v418 = vunpack.c.l.b16 %v142
  %v419 = vunpack.c.h.b16 %v142
  %v420 = vunpack.c.l.b16 %v143
  %v421 = vunpack.c.h.b16 %v143
  %v422 = vunpack.c.l.b16 %v144
  %v423 = vunpack.c.h.b16 %v144
  %v424 = vunpack.c.l.b16 %v145
  %v425 = vunpack.c.h.b16 %v145
  %v426 = vunpack.c.l.b16 %v146
  %v427 = vunpack.c.h.b16 %v146
  %v428 = vunpack.c.l.b16 %v147
  %v429 = vunpack.c.h.b16 %v147
  %v430 = vunpack.c.l.b16 %v148
  %v431 = vunpack.c.h.b16 %v148
  %v432 = vunpack.c.l.b16 %v149
  %v433 = vunpack.c.h.b16 %v149
  %v434 = vunpack.c.l.b16 %v150
  %v435 = vunpack.c.h.b16 %v150
  %v436 = vunpack.c.l.b16 %v151
  %v437 = vunpack.c.h.b16 %v151
  %v438 = vunpack.c.l.b16 %v152
  %v439 = vunpack.c.h.b16 %v152
  %v440 = vunpack.c.l.b16 %v153
  %v441 = vunpack.c.h.b16 %v153
  %v442 = vunpack.c.l.b16 %v154
  %v443 = vunpack.c.h.b16 %v154
  %v444 = vunpack.c.l.b16 %v155
  %v445 = vunpack.c.h.b16 %v155
  %v446 = vunpack.c.l.b16 %v156
  %v447 = vunpack.c.h.b16 %v156
  %v448 = vunpack.c.l.b16 %v157
  %v449 = vunpack.c.h.b16 %v157
  %v450 = vunpack.c.l.b16 %v158
  %v451 = vunpack.c.h.b16 %v158
  %v452 = vunpack.c.l.b16 %v159
  %v453 = vunpack.c.h.b16 %v159
  %v454 = vunpack.c.l.b16 %v160
  %v455 = vunpack.c.h.b16 %v160
  %v456 = vunpack.c.l.b16 %v161
  %v457 = vunpack.c.h.b16 %v161
  %v458 = vunpack.c.l.b16 %v162
  %v459 = vunpack.c.h.b16 %v162
  %v460 = vunpack.c.l.b16 %v163
  %v461 = vunpack.c.h.b16 %v163
  %v462 = vunpack.c.l.b16 %v164
  %v463 = vunpack.c.h.b16 %v164
  %v464 = vunpack.c.l.b16 %v165
  %v465 = vunpack.c.h.b16 %v165
  %v466 = vpack.c.b16 %v270, %v266
  %v467 = vpack.c.b16 %v271, %v267
  %v468 = vpack.c.b16 %v272, %v268
  %v469 = vpack.c.b16 %v273, %v269
  %v470 = vpack.c.b16 %v278, %v274
  %v471 = vpack.c.b16 %v279, %v275
  %v472 = vpack.c.b16 %v280, %v276
  %v473 = vpack.c.b16 %v281, %v277
  %v474 = vpack.c.b16 %v286, %v282
  %v475 = vpack.c.b16 %v287, %v283
  %v476 = vpack.c.b16 %v288, %v284
  %v477 = vpack.c.b16 %v289, %v285
  %v478 = vpack.c.b16 %v294, %v290
  %v479 = vpack.c.b16 %v295, %v291
  %v480 = vpack.c.b16 %v296, %v292
  %v481 = vpack.c.b16 %v297, %v293
  %v482 = vpack.c.b16 %v302, %v298
  %v483 = vpack.c.b16 %v303, %v299
  %v484 = vpack.c.b16 %v304, %v300
  %v485 = vpack.c.b16 %v305, %v301
  %v486 = vpack.c.b16 %v310, %v306
  %v487 = vpack.c.b16 %v311, %v307
  %v488 = vpack.c.b16 %v312, %v308
  %v489 = vpack.c.b16 %v313, %v309
  %v490 = vpack.c.b16 %v318, %v314
  %v491 = vpack.c.b16 %v319, %v315
  %v492 = vpack.c.b16 %v320, %v316
  %v493 = vpack.c.b16 %v321, %v317
  %v494 = vpack.c.b16 %v326, %v322
  %v495 = vpack.c.b16 %v327, %v323
  %v496 = vpack.c.b16 %v328, %v324
  %v497 = vpack.c.b16 %v329, %v325
  %v498 = vpack.c.b16 %v334, %v330
  %v499 = vpack.c.b16 %v335, %v331
  %v500 = vpack.c.b16 %v336, %v332
  %v501 = vpack.c.b16 %v337, %v333
  %v502 = vpack.c.b16 %v342, %v338
  %v503 = vpack.c.b16 %v343, %v339
  %v504 = vpack.c.b16 %v344, %v340
  %v505 = vpack.c.b16 %v345, %v341
  %v506 = vpack.c.b16 %v350, %v346
  %v507 = vpack.c.b16 %v351, %v347
  %v508 = vpack.c.b16 %v352, %v348
  %v509 = vpack.c.b16 %v353, %v349
  %v510 = vpack.c.b16 %v358, %v354
  %v511 = vpack.c.b16 %v359, %v355
  %v512 = vpack.c.b16 %v360, %v356
  %v513 = vpack.c.b16 %v361, %v357
  %v514 = vpack.c.b16 %v366, %v362
  %v515 = vpack.c.b16 %v367, %v363
  %v516 = vpack.c.b16 %v368, %v364
  %v517 = vpack.c.b16 %v369, %v365
  %v518 = vpack.c.b16 %v374, %v370
  %v519 = vpack.c.b16 %v375, %v371
  %v520 = vpack.c.b16 %v376, %v372
  %v521 = vpack.c.b16 %v377, %v373
  %v522 = vpack.c.b16 %v382, %v378
  %v523 = vpack.c.b16 %v383, %v379
  %v524 = vpack.c.b16 %v384, %v380
  %v525 = vpack.c.b16 %v385, %v381
  %v526 = vpack.c.b16 %v390, %v386
  %v527 = vpack.c.b16 %v391, %v387
  %v528 = vpack.c.b16 %v392, %v388
  %v529 = vpack.c.b16 %v393, %v389
  %v530 = vpack.c.b16 %v398, %v394
  %v531 = vpack.c.b16 %v399, %v395
  %v532 = vpack.c.b16 %v400, %v396
  %v533 = vpack.c.b16 %v401, %v397
  %v534 = vpack.c.b16 %v406, %v402
  %v535 = vpack.c.b16 %v407, %v403
  %v536 = vpack.c.b16 %v408, %v404
  %v537 = vpack.c.b16 %v409, %v405
  %v538 = vpack.c.b16 %v414, %v410
  %v539 = vpack.c.b16 %v415, %v411
  %v540 = vpack.c.b16 %v416, %v412
  %v541 = vpack.c.b16 %v417, %v413
  %v542 = vpack.c.b16 %v422, %v418
  %v543 = vpack.c.b16 %v423, %v419
  %v544 = vpack.c.b16 %v424, %v420
  %v545 = vpack.c.b16 %v425, %v421
  %v546 = vpack.c.b16 %v430, %v426
  %v547 = vpack.c.b16 %v431, %v427
  %v548 = vpack.c.b16 %v432, %v428
  %v549 = vpack.c.b16 %v433, %v429
  %v550 = vpack.c.b16 %v438, %v434
  %v551 = vpack.c.b16 %v439, %v435
  %v552 = vpack.c.b16 %v440, %v436
  %v553 = vpack.c.b16 %v441, %v437
  %v554 = vpack.c.b16 %v446, %v442
  %v555 = vpack.c.b16 %v447, %v443
  %v556 = vpack.c.b16 %v448, %v444
  %v557 = vpack.c.b16 %v449, %v445
  %v558 = vpack.c.b16 %v454, %v450
  %v559 = vpack.c.b16 %v455, %v451
  %v560 = vpack.c.b16 %v456, %v452
  %v561 = vpack.c.b16 %v457, %v453
  %v562 = vpack.c.b16 %v462, %v458
  %v563 = vpack.c.b16 %v463, %v459
  %v564 = vpack.c.b16 %v464, %v460
  %v565 = vpack.c.b16 %v465, %v461
  %vm666 = vcmask 130048
  %v668 = vsel %vm666, %v65, 0
  %670 = vmatprep.subr.bf16.mxu0 %v495
  %671 = vmatpush1.bf16.msra.mxu0 %v494
  %672 = vmatprep.subr.bf16.mxu0 %v491
  %673 = vmatpush1.bf16.msra.mxu0 %v490
  %674 = vmatprep.subr.bf16.mxu0 %v487
  %675 = vmatpush1.bf16.msra.mxu0 %v486
  %676 = vmatprep.subr.bf16.mxu0 %v483
  %677 = vmatpush1.bf16.msra.mxu0 %v482
  %678 = vmatprep.subr.bf16.mxu0 %v479
  %679 = vmatpush1.bf16.msra.mxu0 %v478
  %680 = vmatprep.subr.bf16.mxu0 %v475
  %681 = vmatpush1.bf16.msra.mxu0 %v474
  %682 = vmatprep.subr.bf16.mxu0 %v471
  %683 = vmatpush1.bf16.msra.mxu0 %v470
  %684 = vmatprep.subr.bf16.mxu0 %v467
  %685 = vmatpush1.bf16.msra.mxu0 %v466
  %686 = vmatprep.subr.bf16.mxu0 %v527
  %687 = vmatpush2.bf16.msra.mxu0 %v526
  %688 = vmatprep.subr.bf16.mxu0 %v523
  %689 = vmatpush2.bf16.msra.mxu0 %v522
  %690 = vmatprep.subr.bf16.mxu0 %v519
  %691 = vmatpush2.bf16.msra.mxu0 %v518
  %692 = vmatprep.subr.bf16.mxu0 %v515
  %693 = vmatpush2.bf16.msra.mxu0 %v514
  %694 = vmatprep.subr.bf16.mxu0 %v511
  %695 = vmatpush2.bf16.msra.mxu0 %v510
  %696 = vmatprep.subr.bf16.mxu0 %v507
  %697 = vmatpush2.bf16.msra.mxu0 %v506
  %698 = vmatprep.subr.bf16.mxu0 %v503
  %699 = vmatpush2.bf16.msra.mxu0 %v502
  %700 = vmatprep.subr.bf16.mxu0 %v499
  %701 = vmatpush2.bf16.msra.mxu0 %v498
  %702 = vmatprep.mubr.bf16.mxu0 %v63
  %703 = vmatmul.mubr.bf16.gmra.mxu0 %v62
  %v704 = vpop.f32.mrf.mxu0
  %v705 = vadd.f32 0.0, %v704
  %v706 = vpop.f32.mrf.mxu0
  %v707 = vadd.f32 0.0, %v706
  %v708 = vpop.f32.mrf.mxu0
  %v709 = vadd.f32 0.0, %v708
  %v710 = vpop.f32.mrf.mxu0
  %v711 = vadd.f32 0.0, %v710
  %712 = vdwg.mxu0
  %713 = vmatprep.subr.bf16.mxu0 %v559
  %714 = vmatpush1.bf16.msra.mxu0 %v558
  %715 = vmatprep.subr.bf16.mxu0 %v555
  %716 = vmatpush1.bf16.msra.mxu0 %v554
  %717 = vmatprep.subr.bf16.mxu0 %v551
  %718 = vmatpush1.bf16.msra.mxu0 %v550
  %719 = vmatprep.subr.bf16.mxu0 %v547
  %720 = vmatpush1.bf16.msra.mxu0 %v546
  %721 = vmatprep.subr.bf16.mxu0 %v543
  %722 = vmatpush1.bf16.msra.mxu0 %v542
  %723 = vmatprep.subr.bf16.mxu0 %v539
  %724 = vmatpush1.bf16.msra.mxu0 %v538
  %725 = vmatprep.subr.bf16.mxu0 %v535
  %726 = vmatpush1.bf16.msra.mxu0 %v534
  %727 = vmatprep.subr.bf16.mxu0 %v531
  %728 = vmatpush1.bf16.msra.mxu0 %v530
  %729 = vmatprep.subr.bf16.mxu0 0
  %730 = vmatpush2.bf16.msra.mxu0 0
  %731 = vmatprep.subr.bf16.mxu0 0
  %732 = vmatpush2.bf16.msra.mxu0 0
  %733 = vmatprep.subr.bf16.mxu0 0
  %734 = vmatpush2.bf16.msra.mxu0 0
  %735 = vmatprep.subr.bf16.mxu0 0
  %736 = vmatpush2.bf16.msra.mxu0 0
  %737 = vmatprep.subr.bf16.mxu0 0
  %738 = vmatpush2.bf16.msra.mxu0 0
  %739 = vmatprep.subr.bf16.mxu0 0
  %740 = vmatpush2.bf16.msra.mxu0 0
  %741 = vmatprep.subr.bf16.mxu0 0
  %742 = vmatpush2.bf16.msra.mxu0 0
  %743 = vmatprep.subr.bf16.mxu0 %v563
  %744 = vmatpush2.bf16.msra.mxu0 %v562
  %745 = vmatprep.mubr.bf16.mxu0 %v668
  %746 = vmatmul.mubr.bf16.gmra.mxu0 %v64
  %v747 = vpop.f32.mrf.mxu0
  %v748 = vadd.f32 %v705, %v747
  %v749 = vpop.f32.mrf.mxu0
  %v750 = vadd.f32 %v707, %v749
  %v751 = vpop.f32.mrf.mxu0
  %v752 = vadd.f32 %v709, %v751
  %v753 = vpop.f32.mrf.mxu0
  %v754 = vadd.f32 %v711, %v753
  %755 = vdwg.mxu0
  %756 = vmatprep.subr.bf16.mxu0 %v497
  %757 = vmatpush1.bf16.msra.mxu0 %v496
  %758 = vmatprep.subr.bf16.mxu0 %v493
  %759 = vmatpush1.bf16.msra.mxu0 %v492
  %760 = vmatprep.subr.bf16.mxu0 %v489
  %761 = vmatpush1.bf16.msra.mxu0 %v488
  %762 = vmatprep.subr.bf16.mxu0 %v485
  %763 = vmatpush1.bf16.msra.mxu0 %v484
  %764 = vmatprep.subr.bf16.mxu0 %v481
  %765 = vmatpush1.bf16.msra.mxu0 %v480
  %766 = vmatprep.subr.bf16.mxu0 %v477
  %767 = vmatpush1.bf16.msra.mxu0 %v476
  %768 = vmatprep.subr.bf16.mxu0 %v473
  %769 = vmatpush1.bf16.msra.mxu0 %v472
  %770 = vmatprep.subr.bf16.mxu0 %v469
  %771 = vmatpush1.bf16.msra.mxu0 %v468
  %772 = vmatprep.subr.bf16.mxu0 %v529
  %773 = vmatpush2.bf16.msra.mxu0 %v528
  %774 = vmatprep.subr.bf16.mxu0 %v525
  %775 = vmatpush2.bf16.msra.mxu0 %v524
  %776 = vmatprep.subr.bf16.mxu0 %v521
  %777 = vmatpush2.bf16.msra.mxu0 %v520
  %778 = vmatprep.subr.bf16.mxu0 %v517
  %779 = vmatpush2.bf16.msra.mxu0 %v516
  %780 = vmatprep.subr.bf16.mxu0 %v513
  %781 = vmatpush2.bf16.msra.mxu0 %v512
  %782 = vmatprep.subr.bf16.mxu0 %v509
  %783 = vmatpush2.bf16.msra.mxu0 %v508
  %784 = vmatprep.subr.bf16.mxu0 %v505
  %785 = vmatpush2.bf16.msra.mxu0 %v504
  %786 = vmatprep.subr.bf16.mxu0 %v501
  %787 = vmatpush2.bf16.msra.mxu0 %v500
  %788 = vmatprep.mubr.bf16.mxu0 %v63
  %789 = vmatmul.mubr.bf16.gmra.mxu0 %v62
  %v790 = vpop.f32.mrf.mxu0
  %v791 = vadd.f32 0.0, %v790
  %v792 = vpop.f32.mrf.mxu0
  %v793 = vadd.f32 0.0, %v792
  %v794 = vpop.f32.mrf.mxu0
  %v795 = vadd.f32 0.0, %v794
  %v796 = vpop.f32.mrf.mxu0
  %v797 = vadd.f32 0.0, %v796
  %798 = vdwg.mxu0
  %799 = vmatprep.subr.bf16.mxu0 %v561
  %800 = vmatpush1.bf16.msra.mxu0 %v560
  %801 = vmatprep.subr.bf16.mxu0 %v557
  %802 = vmatpush1.bf16.msra.mxu0 %v556
  %803 = vmatprep.subr.bf16.mxu0 %v553
  %804 = vmatpush1.bf16.msra.mxu0 %v552
  %805 = vmatprep.subr.bf16.mxu0 %v549
  %806 = vmatpush1.bf16.msra.mxu0 %v548
  %807 = vmatprep.subr.bf16.mxu0 %v545
  %808 = vmatpush1.bf16.msra.mxu0 %v544
  %809 = vmatprep.subr.bf16.mxu0 %v541
  %810 = vmatpush1.bf16.msra.mxu0 %v540
  %811 = vmatprep.subr.bf16.mxu0 %v537
  %812 = vmatpush1.bf16.msra.mxu0 %v536
  %813 = vmatprep.subr.bf16.mxu0 %v533
  %814 = vmatpush1.bf16.msra.mxu0 %v532
  %815 = vmatprep.subr.bf16.mxu0 0
  %816 = vmatpush2.bf16.msra.mxu0 0
  %817 = vmatprep.subr.bf16.mxu0 0
  %818 = vmatpush2.bf16.msra.mxu0 0
  %819 = vmatprep.subr.bf16.mxu0 0
  %820 = vmatpush2.bf16.msra.mxu0 0
  %821 = vmatprep.subr.bf16.mxu0 0
  %822 = vmatpush2.bf16.msra.mxu0 0
  %823 = vmatprep.subr.bf16.mxu0 0
  %824 = vmatpush2.bf16.msra.mxu0 0
  %825 = vmatprep.subr.bf16.mxu0 0
  %826 = vmatpush2.bf16.msra.mxu0 0
  %827 = vmatprep.subr.bf16.mxu0 0
  %828 = vmatpush2.bf16.msra.mxu0 0
  %829 = vmatprep.subr.bf16.mxu0 %v565
  %830 = vmatpush2.bf16.msra.mxu0 %v564
  %831 = vmatprep.mubr.bf16.mxu0 %v668
  %832 = vmatmul.mubr.bf16.gmra.mxu0 %v64
  %v833 = vpop.f32.mrf.mxu0
  %v834 = vadd.f32 %v791, %v833
  %v835 = vpop.f32.mrf.mxu0
  %v836 = vadd.f32 %v793, %v835
  %v837 = vpop.f32.mrf.mxu0
  %v838 = vadd.f32 %v795, %v837
  %v839 = vpop.f32.mrf.mxu0
  %v840 = vadd.f32 %v797, %v839
  %841 = vdwg.mxu0
  %v842 = vmul.f32 %v748, %v748
  %v843 = vmul.f32 %v750, %v750
  %v844 = vmul.f32 %v752, %v752
  %v845 = vmul.f32 %v754, %v754
  %v846 = vmul.f32 %v834, %v834
  %v847 = vmul.f32 %v836, %v836
  %v848 = vmul.f32 %v838, %v838
  %v849 = vmul.f32 %v840, %v840
  %v850 = vadd.f32 %v842, %v846
  %v851 = vadd.f32 %v843, %v847
  %v852 = vadd.f32 %v844, %v848
  %v853 = vadd.f32 %v845, %v849
  %v854 = vpack.c.bf16 %v852, %v850
  %v855 = vpack.c.bf16 %v853, %v851
  %v856 = vld [vmem:[%s2] sm:$0xf]
  %v857 = vld [vmem:[%s2 + $0x4] sm:$0xf]
  %v858 = vld [vmem:[%s2 + $0x8] sm:$0xf]
  %v859 = vld [vmem:[%s2 + $0xc] sm:$0xf]
  %v860 = vld [vmem:[%s2 + $0x10] sm:$0xf]
  %v861 = vld [vmem:[%s2 + $0x14] sm:$0xf]
  %v862 = vld [vmem:[%s2 + $0x18] sm:$0xf]
  %v863 = vld [vmem:[%s2 + $0x1c] sm:$0xf]
  %v864 = vld [vmem:[%s2 + $0x20] sm:$0xf]
  %v865 = vld [vmem:[%s2 + $0x24] sm:$0xf]
  %v866 = vld [vmem:[%s2 + $0x28] sm:$0xf]
  %v867 = vld [vmem:[%s2 + $0x2c] sm:$0xf]
  %v868 = vld [vmem:[%s2 + $0x30] sm:$0xf]
  %v869 = vld [vmem:[%s2 + $0x34] sm:$0xf]
  %v870 = vld [vmem:[%s2 + $0x38] sm:$0xf]
  %v871 = vld [vmem:[%s2 + $0x3c] sm:$0xf]
  %v872 = vld [vmem:[%s2 + $0x40] sm:$0xf]
  %v873 = vld [vmem:[%s2 + $0x44] sm:$0xf]
  %v874 = vld [vmem:[%s2 + $0x48] sm:$0xf]
  %v875 = vld [vmem:[%s2 + $0x4c] sm:$0xf]
  %v876 = vld [vmem:[%s2 + $0x50] sm:$0xf]
  %v877 = vld [vmem:[%s2 + $0x54] sm:$0xf]
  %v878 = vld [vmem:[%s2 + $0x58] sm:$0xf]
  %v879 = vld [vmem:[%s2 + $0x5c] sm:$0xf]
  %v880 = vld [vmem:[%s2 + $0x60] sm:$0xf]
  %v881 = vld [vmem:[%s2 + $0x64] sm:$0xf]
  %v882 = vld [vmem:[%s2 + $0x68] sm:$0xf]
  %v883 = vld [vmem:[%s2 + $0x6c] sm:$0xf]
  %v884 = vld [vmem:[%s2 + $0x70] sm:$0xf]
  %v885 = vld [vmem:[%s2 + $0x74] sm:$0xf]
  %v886 = vld [vmem:[%s2 + $0x78] sm:$0xf]
  %v887 = vld [vmem:[%s2 + $0x7c] sm:$0xf]
  %v920 = vunpack.c.l.b16 %v856
  %v921 = vunpack.c.l.b16 %v857
  %v922 = vunpack.c.l.b16 %v858
  %v923 = vunpack.c.l.b16 %v859
  %v924 = vunpack.c.l.b16 %v860
  %v925 = vunpack.c.l.b16 %v861
  %v926 = vunpack.c.l.b16 %v862
  %v927 = vunpack.c.l.b16 %v863
  %v928 = vunpack.c.l.b16 %v864
  %v929 = vunpack.c.l.b16 %v865
  %v930 = vunpack.c.l.b16 %v866
  %v931 = vunpack.c.l.b16 %v867
  %v932 = vunpack.c.l.b16 %v868
  %v933 = vunpack.c.l.b16 %v869
  %v934 = vunpack.c.l.b16 %v870
  %v935 = vunpack.c.l.b16 %v871
  %v936 = vunpack.c.l.b16 %v872
  %v937 = vunpack.c.l.b16 %v873
  %v938 = vunpack.c.l.b16 %v874
  %v939 = vunpack.c.l.b16 %v875
  %v940 = vunpack.c.l.b16 %v876
  %v941 = vunpack.c.l.b16 %v877
  %v942 = vunpack.c.l.b16 %v878
  %v943 = vunpack.c.l.b16 %v879
  %v944 = vunpack.c.l.b16 %v880
  %v945 = vunpack.c.l.b16 %v881
  %v946 = vunpack.c.l.b16 %v882
  %v947 = vunpack.c.l.b16 %v883
  %v948 = vunpack.c.l.b16 %v884
  %v949 = vunpack.c.l.b16 %v885
  %v950 = vunpack.c.l.b16 %v886
  %v951 = vunpack.c.l.b16 %v887
  %v952 = vpack.c.b16 %v921, %v920
  %v953 = vpack.c.b16 %v923, %v922
  %v954 = vpack.c.b16 %v925, %v924
  %v955 = vpack.c.b16 %v927, %v926
  %v956 = vpack.c.b16 %v929, %v928
  %v957 = vpack.c.b16 %v931, %v930
  %v958 = vpack.c.b16 %v933, %v932
  %v959 = vpack.c.b16 %v935, %v934
  %v960 = vpack.c.b16 %v937, %v936
  %v961 = vpack.c.b16 %v939, %v938
  %v962 = vpack.c.b16 %v941, %v940
  %v963 = vpack.c.b16 %v943, %v942
  %v964 = vpack.c.b16 %v945, %v944
  %v965 = vpack.c.b16 %v947, %v946
  %v966 = vpack.c.b16 %v949, %v948
  %v967 = vpack.c.b16 %v951, %v950
  %984 = vmatprep.subr.bf16.mxu0 0
  %985 = vmatpush1.bf16.msra.mxu0 %v959
  %986 = vmatprep.subr.bf16.mxu0 0
  %987 = vmatpush1.bf16.msra.mxu0 %v958
  %988 = vmatprep.subr.bf16.mxu0 0
  %989 = vmatpush1.bf16.msra.mxu0 %v957
  %990 = vmatprep.subr.bf16.mxu0 0
  %991 = vmatpush1.bf16.msra.mxu0 %v956
  %992 = vmatprep.subr.bf16.mxu0 0
  %993 = vmatpush1.bf16.msra.mxu0 %v955
  %994 = vmatprep.subr.bf16.mxu0 0
  %995 = vmatpush1.bf16.msra.mxu0 %v954
  %996 = vmatprep.subr.bf16.mxu0 0
  %997 = vmatpush1.bf16.msra.mxu0 %v953
  %998 = vmatprep.subr.bf16.mxu0 0
  %999 = vmatpush1.bf16.msra.mxu0 %v952
  %1000 = vmatprep.subr.bf16.mxu0 0
  %1001 = vmatpush2.bf16.msra.mxu0 %v967
  %1002 = vmatprep.subr.bf16.mxu0 0
  %1003 = vmatpush2.bf16.msra.mxu0 %v966
  %1004 = vmatprep.subr.bf16.mxu0 0
  %1005 = vmatpush2.bf16.msra.mxu0 %v965
  %1006 = vmatprep.subr.bf16.mxu0 0
  %1007 = vmatpush2.bf16.msra.mxu0 %v964
  %1008 = vmatprep.subr.bf16.mxu0 0
  %1009 = vmatpush2.bf16.msra.mxu0 %v963
  %1010 = vmatprep.subr.bf16.mxu0 0
  %1011 = vmatpush2.bf16.msra.mxu0 %v962
  %1012 = vmatprep.subr.bf16.mxu0 0
  %1013 = vmatpush2.bf16.msra.mxu0 %v961
  %1014 = vmatprep.subr.bf16.mxu0 0
  %1015 = vmatpush2.bf16.msra.mxu0 %v960
  %1016 = vmatprep.mubr.bf16.mxu0 %v855
  %1017 = vmatmul.mubr.bf16.gmra.mxu0 %v854
  %v1018 = vpop.f32.mrf.mxu0
  %v1019 = vadd.f32 0.0, %v1018
  %v1020 = vpop.f32.mrf.mxu0
  %v1021 = vpop.f32.mrf.mxu0
  %v1022 = vadd.f32 0.0, %v1021
  %v1023 = vpop.f32.mrf.mxu0
  %1024 = vdwg.mxu0
  %v1025 = vmax.f32 %v1019, 1e-09
  %v1026 = vmax.f32 %v1022, 1e-09
  %v1027 = vmin.f32 %v1025, 1e+09
  %v1028 = vmin.f32 %v1026, 1e+09
  %v1029 = vlog2.pop %v1027
  %v1030 = vmul.f32 %v1029, 0.6931472
  %v1031 = vlog2.pop %v1028
  %v1032 = vmul.f32 %v1031, 0.6931472
  %vm1035 = vcmask 1041408
  %v1036 = vrot.slane %v1030, 6
  %v1037 = vrot.slane %v1032, 6
  %v1038 = vsel %vm1035, %v1036, %v1037
  %v1041 = vsel %vm1035, %v53, %v1036
  %vm1042 = vcmask 326656
  %1043 = vst.msk [vmem:[%s11] sm:$0xff] %vm1042, %v42
  %1044 = vst.msk [vmem:[%s11 + $0x8] sm:$0xff] %vm1042, %v43
  %1045 = vst.msk [vmem:[%s11 + $0x10] sm:$0xff] %vm1042, %v44
  %1046 = vst.msk [vmem:[%s11 + $0x18] sm:$0xff] %vm1042, %v45
  %1047 = vst.msk [vmem:[%s11 + $0x20] sm:$0xff] %vm1042, %v46
  %1048 = vst.msk [vmem:[%s11 + $0x28] sm:$0xff] %vm1042, %v47
  %1049 = vst.msk [vmem:[%s11 + $0x30] sm:$0xff] %vm1042, %v48
  %1050 = vst.msk [vmem:[%s11 + $0x38] sm:$0xff] %vm1042, %v49
  %1051 = vst.msk [vmem:[%s11 + $0x40] sm:$0xff] %vm1042, %v50
  %1052 = vst.msk [vmem:[%s11 + $0x48] sm:$0xff] %vm1042, %v51
  %1053 = vst.msk [vmem:[%s11 + $0x50] sm:$0xff] %vm1042, %v52
  %1054 = vst.msk [vmem:[%s11 + $0x58] sm:$0xff] %vm1042, %v1041
  %vm1055 = vcmask 323584
  %1056 = vst.msk [vmem:[%s11 + $0x60] sm:$0x1f] %vm1055, %v1038
  %v1057 = vld [vmem:[%s3] sm:$0xf]
  %v1058 = vld [vmem:[%s3 + $0x4] sm:$0xf]
  %v1059 = vld [vmem:[%s3 + $0x8] sm:$0xf]
  %v1060 = vld [vmem:[%s3 + $0xc] sm:$0xf]
  %v1061 = vld [vmem:[%s3 + $0x10] sm:$0xf]
  %v1062 = vld [vmem:[%s3 + $0x14] sm:$0xf]
  %v1063 = vld [vmem:[%s3 + $0x18] sm:$0xf]
  %v1064 = vld [vmem:[%s3 + $0x1c] sm:$0xf]
  %v1065 = vld [vmem:[%s3 + $0x20] sm:$0xf]
  %v1066 = vld [vmem:[%s3 + $0x24] sm:$0xf]
  %v1067 = vld [vmem:[%s3 + $0x28] sm:$0xf]
  %v1068 = vld [vmem:[%s3 + $0x2c] sm:$0xf]
  %v1069 = vld [vmem:[%s3 + $0x30] sm:$0xf]
  %v1070 = vld [vmem:[%s3 + $0x34] sm:$0xf]
  %v1071 = vld [vmem:[%s3 + $0x38] sm:$0xf]
  %v1072 = vld [vmem:[%s3 + $0x3c] sm:$0xf]
  %v1073 = vld [vmem:[%s3 + $0x40] sm:$0xf]
  %v1074 = vld [vmem:[%s3 + $0x44] sm:$0xf]
  %v1075 = vld [vmem:[%s3 + $0x48] sm:$0xf]
  %v1076 = vld [vmem:[%s3 + $0x4c] sm:$0xf]
  %v1077 = vld [vmem:[%s3 + $0x50] sm:$0xf]
  %v1078 = vld [vmem:[%s3 + $0x54] sm:$0xf]
  %v1079 = vld [vmem:[%s3 + $0x58] sm:$0xf]
  %v1080 = vld [vmem:[%s3 + $0x5c] sm:$0xf]
  %v1081 = vld [vmem:[%s3 + $0x60] sm:$0xf]
  %v1082 = vld [vmem:[%s3 + $0x64] sm:$0xf]
  %v1083 = vld [vmem:[%s3 + $0x68] sm:$0xf]
  %v1084 = vld [vmem:[%s3 + $0x6c] sm:$0x3]
  %v1085 = vpack.c.bf16 %v43, %v42
  %v1086 = vpack.c.bf16 %v45, %v44
  %v1087 = vpack.c.bf16 %v47, %v46
  %v1088 = vpack.c.bf16 %v49, %v48
  %v1089 = vpack.c.bf16 %v51, %v50
  %v1090 = vpack.c.bf16 %v1041, %v52
  %v1091 = vpack.c.bf16 %v1038, %v1038
  %v1120 = vunpack.c.l.b16 %v1057
  %v1121 = vunpack.c.l.b16 %v1058
  %v1122 = vunpack.c.l.b16 %v1059
  %v1123 = vunpack.c.l.b16 %v1060
  %v1124 = vunpack.c.l.b16 %v1061
  %v1125 = vunpack.c.l.b16 %v1062
  %v1126 = vunpack.c.l.b16 %v1063
  %v1127 = vunpack.c.l.b16 %v1064
  %v1128 = vunpack.c.l.b16 %v1065
  %v1129 = vunpack.c.l.b16 %v1066
  %v1130 = vunpack.c.l.b16 %v1067
  %v1131 = vunpack.c.l.b16 %v1068
  %v1132 = vunpack.c.l.b16 %v1069
  %v1133 = vunpack.c.l.b16 %v1070
  %v1134 = vunpack.c.l.b16 %v1071
  %v1135 = vunpack.c.l.b16 %v1072
  %v1136 = vunpack.c.l.b16 %v1073
  %v1137 = vunpack.c.l.b16 %v1074
  %v1138 = vunpack.c.l.b16 %v1075
  %v1139 = vunpack.c.l.b16 %v1076
  %v1140 = vunpack.c.l.b16 %v1077
  %v1141 = vunpack.c.l.b16 %v1078
  %v1142 = vunpack.c.l.b16 %v1079
  %v1143 = vunpack.c.l.b16 %v1080
  %v1144 = vunpack.c.l.b16 %v1081
  %v1145 = vunpack.c.l.b16 %v1082
  %v1146 = vunpack.c.l.b16 %v1083
  %v1147 = vunpack.c.l.b16 %v1084
  %v1148 = vpack.c.b16 %v1121, %v1120
  %v1149 = vpack.c.b16 %v1123, %v1122
  %v1150 = vpack.c.b16 %v1125, %v1124
  %v1151 = vpack.c.b16 %v1127, %v1126
  %v1152 = vpack.c.b16 %v1129, %v1128
  %v1153 = vpack.c.b16 %v1131, %v1130
  %v1154 = vpack.c.b16 %v1133, %v1132
  %v1155 = vpack.c.b16 %v1135, %v1134
  %v1156 = vpack.c.b16 %v1137, %v1136
  %v1157 = vpack.c.b16 %v1139, %v1138
  %v1158 = vpack.c.b16 %v1141, %v1140
  %v1159 = vpack.c.b16 %v1143, %v1142
  %v1160 = vpack.c.b16 %v1145, %v1144
  %v1161 = vpack.c.b16 %v1147, %v1146
  %vm1162 = vcmask 826368
  %v1164 = vsel %vm1162, %v1148, 0
  %v1167 = vsel %vm1162, %v1149, 0
  %v1170 = vsel %vm1162, %v1150, 0
  %v1173 = vsel %vm1162, %v1151, 0
  %v1176 = vsel %vm1162, %v1152, 0
  %v1179 = vsel %vm1162, %v1153, 0
  %v1182 = vsel %vm1162, %v1154, 0
  %v1185 = vsel %vm1162, %v1155, 0
  %v1188 = vsel %vm1162, %v1156, 0
  %v1191 = vsel %vm1162, %v1157, 0
  %v1194 = vsel %vm1162, %v1158, 0
  %v1197 = vsel %vm1162, %v1159, 0
  %v1200 = vsel %vm1162, %v1160, 0
  %v1203 = vsel %vm1162, %v1161, 0
  %vm1205 = vcmask 1042432
  %v1206 = vsel %vm1035, 4294967295, 65535
  %v1207 = vsel %vm1205, %v1206, 0
  %v1209 = vand.u32 %v1091, %v1207
  %1211 = vmatprep.subr.bf16.mxu0 0
  %1212 = vmatpush1.bf16.msra.mxu0 0
  %1213 = vmatprep.subr.bf16.mxu0 0
  %1214 = vmatpush1.bf16.msra.mxu0 %v1209
  %1215 = vmatprep.subr.bf16.mxu0 0
  %1216 = vmatpush1.bf16.msra.mxu0 %v1090
  %1217 = vmatprep.subr.bf16.mxu0 0
  %1218 = vmatpush1.bf16.msra.mxu0 %v1089
  %1219 = vmatprep.subr.bf16.mxu0 0
  %1220 = vmatpush1.bf16.msra.mxu0 %v1088
  %1221 = vmatprep.subr.bf16.mxu0 0
  %1222 = vmatpush1.bf16.msra.mxu0 %v1087
  %1223 = vmatprep.subr.bf16.mxu0 0
  %1224 = vmatpush1.bf16.msra.mxu0 %v1086
  %1225 = vmatprep.subr.bf16.mxu0 0
  %1226 = vmatpush1.bf16.msra.mxu0 %v1085
  %1227 = vmatprep.subr.bf16.mxu0 0
  %1228 = vmatpush2.bf16.msra.mxu0 0
  %1229 = vmatprep.subr.bf16.mxu0 0
  %1230 = vmatpush2.bf16.msra.mxu0 0
  %1231 = vmatprep.subr.bf16.mxu0 0
  %1232 = vmatpush2.bf16.msra.mxu0 0
  %1233 = vmatprep.subr.bf16.mxu0 0
  %1234 = vmatpush2.bf16.msra.mxu0 0
  %1235 = vmatprep.subr.bf16.mxu0 0
  %1236 = vmatpush2.bf16.msra.mxu0 0
  %1237 = vmatprep.subr.bf16.mxu0 0
  %1238 = vmatpush2.bf16.msra.mxu0 0
  %1239 = vmatprep.subr.bf16.mxu0 0
  %1240 = vmatpush2.bf16.msra.mxu0 0
  %1241 = vmatprep.subr.bf16.mxu0 0
  %1242 = vmatpush2.bf16.msra.mxu0 0
  %1243 = vmatprep.mubr.bf16.mxu0 0
  %1244 = vmatmul.mubr.bf16.gmra.mxu0 %v1164
  %v1245 = vpop.f32.mrf.mxu0
  %v1246 = vadd.f32 0.0, %v1245
  %v1247 = vpop.f32.mrf.mxu0
  %v1248 = vpop.f32.mrf.mxu0
  %v1249 = vadd.f32 0.0, %v1248
  %v1250 = vpop.f32.mrf.mxu0
  %1251 = vmatprep.mubr.bf16.mxu0 0
  %1252 = vmatmul.mubr.bf16.gmra.mxu0 %v1167
  %v1253 = vpop.f32.mrf.mxu0
  %v1254 = vadd.f32 0.0, %v1253
  %v1255 = vpop.f32.mrf.mxu0
  %v1256 = vpop.f32.mrf.mxu0
  %v1257 = vadd.f32 0.0, %v1256
  %v1258 = vpop.f32.mrf.mxu0
  %1259 = vmatprep.mubr.bf16.mxu0 0
  %1260 = vmatmul.mubr.bf16.gmra.mxu0 %v1170
  %v1261 = vpop.f32.mrf.mxu0
  %v1262 = vadd.f32 0.0, %v1261
  %v1263 = vpop.f32.mrf.mxu0
  %v1264 = vpop.f32.mrf.mxu0
  %v1265 = vadd.f32 0.0, %v1264
  %v1266 = vpop.f32.mrf.mxu0
  %1267 = vmatprep.mubr.bf16.mxu0 0
  %1268 = vmatmul.mubr.bf16.gmra.mxu0 %v1173
  %v1269 = vpop.f32.mrf.mxu0
  %v1270 = vadd.f32 0.0, %v1269
  %v1271 = vpop.f32.mrf.mxu0
  %v1272 = vpop.f32.mrf.mxu0
  %v1273 = vadd.f32 0.0, %v1272
  %v1274 = vpop.f32.mrf.mxu0
  %1275 = vmatprep.mubr.bf16.mxu0 0
  %1276 = vmatmul.mubr.bf16.gmra.mxu0 %v1176
  %v1277 = vpop.f32.mrf.mxu0
  %v1278 = vadd.f32 0.0, %v1277
  %v1279 = vpop.f32.mrf.mxu0
  %v1280 = vpop.f32.mrf.mxu0
  %v1281 = vadd.f32 0.0, %v1280
  %v1282 = vpop.f32.mrf.mxu0
  %1283 = vmatprep.mubr.bf16.mxu0 0
  %1284 = vmatmul.mubr.bf16.gmra.mxu0 %v1179
  %v1285 = vpop.f32.mrf.mxu0
  %v1286 = vadd.f32 0.0, %v1285
  %v1287 = vpop.f32.mrf.mxu0
  %v1288 = vpop.f32.mrf.mxu0
  %v1289 = vadd.f32 0.0, %v1288
  %v1290 = vpop.f32.mrf.mxu0
  %1291 = vmatprep.mubr.bf16.mxu0 0
  %1292 = vmatmul.mubr.bf16.gmra.mxu0 %v1182
  %v1293 = vpop.f32.mrf.mxu0
  %v1294 = vadd.f32 0.0, %v1293
  %v1295 = vpop.f32.mrf.mxu0
  %v1296 = vpop.f32.mrf.mxu0
  %v1297 = vadd.f32 0.0, %v1296
  %v1298 = vpop.f32.mrf.mxu0
  %1299 = vmatprep.mubr.bf16.mxu0 0
  %1300 = vmatmul.mubr.bf16.gmra.mxu0 %v1185
  %v1301 = vpop.f32.mrf.mxu0
  %v1302 = vadd.f32 0.0, %v1301
  %v1303 = vpop.f32.mrf.mxu0
  %v1304 = vpop.f32.mrf.mxu0
  %v1305 = vadd.f32 0.0, %v1304
  %v1306 = vpop.f32.mrf.mxu0
  %1307 = vmatprep.mubr.bf16.mxu0 0
  %1308 = vmatmul.mubr.bf16.gmra.mxu0 %v1188
  %v1309 = vpop.f32.mrf.mxu0
  %v1310 = vadd.f32 0.0, %v1309
  %v1311 = vpop.f32.mrf.mxu0
  %v1312 = vpop.f32.mrf.mxu0
  %v1313 = vadd.f32 0.0, %v1312
  %v1314 = vpop.f32.mrf.mxu0
  %1315 = vmatprep.mubr.bf16.mxu0 0
  %1316 = vmatmul.mubr.bf16.gmra.mxu0 %v1191
  %v1317 = vpop.f32.mrf.mxu0
  %v1318 = vadd.f32 0.0, %v1317
  %v1319 = vpop.f32.mrf.mxu0
  %v1320 = vpop.f32.mrf.mxu0
  %v1321 = vadd.f32 0.0, %v1320
  %v1322 = vpop.f32.mrf.mxu0
  %1323 = vmatprep.mubr.bf16.mxu0 0
  %1324 = vmatmul.mubr.bf16.gmra.mxu0 %v1194
  %v1325 = vpop.f32.mrf.mxu0
  %v1326 = vadd.f32 0.0, %v1325
  %v1327 = vpop.f32.mrf.mxu0
  %v1328 = vpop.f32.mrf.mxu0
  %v1329 = vadd.f32 0.0, %v1328
  %v1330 = vpop.f32.mrf.mxu0
  %1331 = vmatprep.mubr.bf16.mxu0 0
  %1332 = vmatmul.mubr.bf16.gmra.mxu0 %v1197
  %v1333 = vpop.f32.mrf.mxu0
  %v1334 = vadd.f32 0.0, %v1333
  %v1335 = vpop.f32.mrf.mxu0
  %v1336 = vpop.f32.mrf.mxu0
  %v1337 = vadd.f32 0.0, %v1336
  %v1338 = vpop.f32.mrf.mxu0
  %1339 = vmatprep.mubr.bf16.mxu0 0
  %1340 = vmatmul.mubr.bf16.gmra.mxu0 %v1200
  %v1341 = vpop.f32.mrf.mxu0
  %v1342 = vadd.f32 0.0, %v1341
  %v1343 = vpop.f32.mrf.mxu0
  %v1344 = vpop.f32.mrf.mxu0
  %v1345 = vadd.f32 0.0, %v1344
  %v1346 = vpop.f32.mrf.mxu0
  %1347 = vmatprep.mubr.bf16.mxu0 0
  %1348 = vmatmul.mubr.bf16.gmra.mxu0 %v1203
  %v1349 = vpop.f32.mrf.mxu0
  %v1350 = vadd.f32 0.0, %v1349
  %v1351 = vpop.f32.mrf.mxu0
  %v1352 = vpop.f32.mrf.mxu0
  %v1353 = vadd.f32 0.0, %v1352
  %v1354 = vpop.f32.mrf.mxu0
  %1355 = vdwg.mxu0
  %vm1358 = vcmask 1044480
  %v1359 = vrot.slane %v1249, 3
  %v1360 = vrot.slane %v1254, 3
  %v1361 = vsel %vm1358, %v1359, %v1360
  %1362 = vrot.lane.b32.xlu0 %v1361, 40
  %v1363 = vpop.permute.xlu0 %1362
  %1364 = vrot.lane.b32.xlu0 %v1360, 40
  %v1365 = vpop.permute.xlu0 %1364
  %v1370 = vrot.slane %v1254, 6
  %v1371 = vrot.slane %v1257, 6
  %v1372 = vsel %vm1035, %v1370, %v1371
  %v1373 = vrot.slane %v1262, 6
  %v1374 = vsel %vm1035, %v1371, %v1373
  %1375 = vrot.lane.b32.xlu0 %v1372, 80
  %v1376 = vpop.permute.xlu0 %1375
  %1377 = vrot.lane.b32.xlu0 %v1374, 80
  %v1378 = vpop.permute.xlu0 %1377
  %vm1382 = vcmask 1046528
  %v1383 = vrot.slane %v1262, 1
  %v1384 = vrot.slane %v1265, 1
  %v1385 = vsel %vm1382, %v1383, %v1384
  %1386 = vrot.lane.b32.xlu0 %v1385, 120
  %v1387 = vpop.permute.xlu0 %1386
  %1388 = vrot.lane.b32.xlu0 %v1384, 120
  %v1389 = vpop.permute.xlu0 %1388
  %v1392 = vsel %vm1042, %v1246, %v1363
  %v1393 = vsel %vm1042, %v1249, %v1365
  %vm1394 = vcmask 654336
  %v1395 = vsel %vm1394, %v1392, %v1376
  %v1396 = vsel %vm1394, %v1393, %v1378
  %vm1397 = vcmask 982016
  %v1398 = vsel %vm1397, %v1395, %v1387
  %v1399 = vsel %vm1397, %v1396, %v1389
  %v1400 = vpack.c.bf16 %v1399, %v1398
  %v1401 = vpack.c.bf16 %v1389, %v1387
  %v1402 = vld [vmem:[%s5] sm:$0xf]
  %v1403 = vld [vmem:[%s5 + $0x4] sm:$0xf]
  %v1404 = vld [vmem:[%s5 + $0x8] sm:$0xf]
  %v1405 = vld [vmem:[%s5 + $0xc] sm:$0xf]
  %v1406 = vld [vmem:[%s5 + $0x10] sm:$0xf]
  %v1407 = vld [vmem:[%s5 + $0x14] sm:$0xf]
  %v1408 = vld [vmem:[%s5 + $0x18] sm:$0xf]
  %v1409 = vld [vmem:[%s5 + $0x1c] sm:$0xf]
  %v1410 = vld [vmem:[%s5 + $0x20] sm:$0xf]
  %v1411 = vld [vmem:[%s5 + $0x24] sm:$0xf]
  %v1412 = vld [vmem:[%s5 + $0x28] sm:$0xf]
  %v1413 = vld [vmem:[%s5 + $0x2c] sm:$0xf]
  %v1414 = vld [vmem:[%s5 + $0x30] sm:$0xf]
  %v1415 = vld [vmem:[%s5 + $0x34] sm:$0xf]
  %v1416 = vld [vmem:[%s5 + $0x38] sm:$0xf]
  %v1417 = vld [vmem:[%s5 + $0x3c] sm:$0xf]
  %v1418 = vld [vmem:[%s5 + $0x40] sm:$0xf]
  %v1419 = vld [vmem:[%s5 + $0x44] sm:$0xf]
  %v1420 = vld [vmem:[%s5 + $0x48] sm:$0xf]
  %v1421 = vld [vmem:[%s5 + $0x4c] sm:$0xf]
  %v1425 = vrot.slane %v1270, 3
  %v1426 = vrot.slane %v1273, 3
  %v1427 = vsel %vm1358, %v1425, %v1426
  %v1428 = vrot.slane %v1278, 3
  %v1429 = vsel %vm1358, %v1426, %v1428
  %1430 = vrot.lane.b32.xlu0 %v1427, 40
  %v1431 = vpop.permute.xlu0 %1430
  %1432 = vrot.lane.b32.xlu0 %v1429, 40
  %v1433 = vpop.permute.xlu0 %1432
  %v1437 = vrot.slane %v1278, 6
  %v1438 = vrot.slane %v1281, 6
  %v1439 = vsel %vm1035, %v1437, %v1438
  %1440 = vrot.lane.b32.xlu0 %v1437, 80
  %v1441 = vpop.permute.xlu0 %1440
  %1442 = vrot.lane.b32.xlu0 %v1439, 80
  %v1443 = vpop.permute.xlu0 %1442
  %v1447 = vrot.slane %v1281, 1
  %v1448 = vrot.slane %v1286, 1
  %v1449 = vsel %vm1382, %v1447, %v1448
  %1450 = vrot.lane.b32.xlu0 %v1449, 120
  %v1451 = vpop.permute.xlu0 %1450
  %1452 = vrot.lane.b32.xlu0 %v1448, 120
  %v1453 = vpop.permute.xlu0 %1452
  %v1456 = vsel %vm1042, %v1265, %v1431
  %v1457 = vsel %vm1042, %v1270, %v1433
  %v1458 = vsel %vm1394, %v1456, %v1441
  %v1459 = vsel %vm1394, %v1457, %v1443
  %v1460 = vsel %vm1397, %v1458, %v1451
  %v1461 = vsel %vm1397, %v1459, %v1453
  %v1462 = vpack.c.bf16 %v1461, %v1460
  %v1463 = vpack.c.bf16 %v1453, %v1451
  %v1464 = vld [vmem:[%s5 + $0x50] sm:$0xf]
  %v1465 = vld [vmem:[%s5 + $0x54] sm:$0xf]
  %v1466 = vld [vmem:[%s5 + $0x58] sm:$0xf]
  %v1467 = vld [vmem:[%s5 + $0x5c] sm:$0xf]
  %v1468 = vld [vmem:[%s5 + $0x60] sm:$0xf]
  %v1469 = vld [vmem:[%s5 + $0x64] sm:$0xf]
  %v1470 = vld [vmem:[%s5 + $0x68] sm:$0xf]
  %v1471 = vld [vmem:[%s5 + $0x6c] sm:$0xf]
  %v1472 = vld [vmem:[%s5 + $0x70] sm:$0xf]
  %v1473 = vld [vmem:[%s5 + $0x74] sm:$0xf]
  %v1474 = vld [vmem:[%s5 + $0x78] sm:$0xf]
  %v1475 = vld [vmem:[%s5 + $0x7c] sm:$0xf]
  %v1476 = vld [vmem:[%s5 + $0x80] sm:$0xf]
  %v1477 = vld [vmem:[%s5 + $0x84] sm:$0xf]
  %v1478 = vld [vmem:[%s5 + $0x88] sm:$0xf]
  %v1479 = vld [vmem:[%s5 + $0x8c] sm:$0xf]
  %v1480 = vld [vmem:[%s5 + $0x90] sm:$0xf]
  %v1481 = vld [vmem:[%s5 + $0x94] sm:$0xf]
  %v1482 = vld [vmem:[%s5 + $0x98] sm:$0xf]
  %v1483 = vld [vmem:[%s5 + $0x9c] sm:$0xf]
  %v1486 = vrot.slane %v1462, 2
  %v1487 = vrot.slane %v1463, 2
  %v1509 = vunpack.c.l.b16 %v1464
  %v1510 = vunpack.c.l.b16 %v1465
  %v1511 = vunpack.c.l.b16 %v1466
  %v1512 = vunpack.c.l.b16 %v1467
  %v1513 = vunpack.c.l.b16 %v1468
  %v1514 = vunpack.c.l.b16 %v1469
  %v1515 = vunpack.c.l.b16 %v1470
  %v1516 = vunpack.c.l.b16 %v1471
  %v1517 = vunpack.c.l.b16 %v1472
  %v1518 = vunpack.c.l.b16 %v1473
  %v1519 = vunpack.c.l.b16 %v1474
  %v1520 = vunpack.c.l.b16 %v1475
  %v1521 = vunpack.c.l.b16 %v1476
  %v1522 = vunpack.c.l.b16 %v1477
  %v1523 = vunpack.c.l.b16 %v1478
  %v1524 = vunpack.c.l.b16 %v1479
  %v1525 = vunpack.c.l.b16 %v1480
  %v1526 = vunpack.c.l.b16 %v1481
  %v1527 = vunpack.c.l.b16 %v1482
  %v1528 = vunpack.c.l.b16 %v1483
  %v1529 = vpack.c.b16 %v1510, %v1509
  %v1530 = vpack.c.b16 %v1512, %v1511
  %v1531 = vpack.c.b16 %v1514, %v1513
  %v1532 = vpack.c.b16 %v1516, %v1515
  %v1533 = vpack.c.b16 %v1518, %v1517
  %v1534 = vpack.c.b16 %v1520, %v1519
  %v1535 = vpack.c.b16 %v1522, %v1521
  %v1536 = vpack.c.b16 %v1524, %v1523
  %v1537 = vpack.c.b16 %v1526, %v1525
  %v1538 = vpack.c.b16 %v1528, %v1527
  %vm1549 = vcmask 261120
  %v1551 = vsel %vm1549, %v1487, 0
  %1553 = vmatprep.subr.bf16.mxu0 0
  %1554 = vmatpush1.bf16.msra.mxu0 %v1536
  %1555 = vmatprep.subr.bf16.mxu0 0
  %1556 = vmatpush1.bf16.msra.mxu0 %v1535
  %1557 = vmatprep.subr.bf16.mxu0 0
  %1558 = vmatpush1.bf16.msra.mxu0 %v1534
  %1559 = vmatprep.subr.bf16.mxu0 0
  %1560 = vmatpush1.bf16.msra.mxu0 %v1533
  %1561 = vmatprep.subr.bf16.mxu0 0
  %1562 = vmatpush1.bf16.msra.mxu0 %v1532
  %1563 = vmatprep.subr.bf16.mxu0 0
  %1564 = vmatpush1.bf16.msra.mxu0 %v1531
  %1565 = vmatprep.subr.bf16.mxu0 0
  %1566 = vmatpush1.bf16.msra.mxu0 %v1530
  %1567 = vmatprep.subr.bf16.mxu0 0
  %1568 = vmatpush1.bf16.msra.mxu0 %v1529
  %1569 = vmatprep.subr.bf16.mxu0 0
  %1570 = vmatpush2.bf16.msra.mxu0 0
  %1571 = vmatprep.subr.bf16.mxu0 0
  %1572 = vmatpush2.bf16.msra.mxu0 0
  %1573 = vmatprep.subr.bf16.mxu0 0
  %1574 = vmatpush2.bf16.msra.mxu0 0
  %1575 = vmatprep.subr.bf16.mxu0 0
  %1576 = vmatpush2.bf16.msra.mxu0 0
  %1577 = vmatprep.subr.bf16.mxu0 0
  %1578 = vmatpush2.bf16.msra.mxu0 0
  %1579 = vmatprep.subr.bf16.mxu0 0
  %1580 = vmatpush2.bf16.msra.mxu0 0
  %1581 = vmatprep.subr.bf16.mxu0 0
  %1582 = vmatpush2.bf16.msra.mxu0 %v1538
  %1583 = vmatprep.subr.bf16.mxu0 0
  %1584 = vmatpush2.bf16.msra.mxu0 %v1537
  %1585 = vmatprep.mubr.bf16.mxu0 %v1551
  %1586 = vmatmul.mubr.bf16.gmra.mxu0 %v1486
  %v1587 = vpop.f32.mrf.mxu0
  %v1588 = vadd.f32 0.0, %v1587
  %v1589 = vpop.f32.mrf.mxu0
  %v1590 = vpop.f32.mrf.mxu0
  %v1591 = vadd.f32 0.0, %v1590
  %v1592 = vpop.f32.mrf.mxu0
  %1593 = vdwg.mxu0
  %v1596 = vrot.slane %v1294, 3
  %v1597 = vrot.slane %v1297, 3
  %v1598 = vsel %vm1358, %v1596, %v1597
  %1599 = vrot.lane.b32.xlu0 %v1598, 40
  %v1600 = vpop.permute.xlu0 %1599
  %1601 = vrot.lane.b32.xlu0 %v1597, 40
  %v1602 = vpop.permute.xlu0 %1601
  %v1607 = vrot.slane %v1297, 6
  %v1608 = vrot.slane %v1302, 6
  %v1609 = vsel %vm1035, %v1607, %v1608
  %v1610 = vrot.slane %v1305, 6
  %v1611 = vsel %vm1035, %v1608, %v1610
  %1612 = vrot.lane.b32.xlu0 %v1609, 80
  %v1613 = vpop.permute.xlu0 %1612
  %1614 = vrot.lane.b32.xlu0 %v1611, 80
  %v1615 = vpop.permute.xlu0 %1614
  %v1619 = vrot.slane %v1305, 1
  %v1620 = vrot.slane %v1310, 1
  %v1621 = vsel %vm1382, %v1619, %v1620
  %1622 = vrot.lane.b32.xlu0 %v1621, 120
  %v1623 = vpop.permute.xlu0 %1622
  %1624 = vrot.lane.b32.xlu0 %v1620, 120
  %v1625 = vpop.permute.xlu0 %1624
  %v1628 = vsel %vm1042, %v1289, %v1600
  %v1629 = vsel %vm1042, %v1294, %v1602
  %v1630 = vsel %vm1394, %v1628, %v1613
  %v1631 = vsel %vm1394, %v1629, %v1615
  %v1632 = vsel %vm1397, %v1630, %v1623
  %v1633 = vsel %vm1397, %v1631, %v1625
  %v1634 = vpack.c.bf16 %v1633, %v1632
  %v1635 = vpack.c.bf16 %v1625, %v1623
  %v1636 = vld [vmem:[%s5 + $0xa0] sm:$0xf]
  %v1637 = vld [vmem:[%s5 + $0xa4] sm:$0xf]
  %v1638 = vld [vmem:[%s5 + $0xa8] sm:$0xf]
  %v1639 = vld [vmem:[%s5 + $0xac] sm:$0xf]
  %v1640 = vld [vmem:[%s5 + $0xb0] sm:$0xf]
  %v1641 = vld [vmem:[%s5 + $0xb4] sm:$0xf]
  %v1642 = vld [vmem:[%s5 + $0xb8] sm:$0xf]
  %v1643 = vld [vmem:[%s5 + $0xbc] sm:$0xf]
  %v1644 = vld [vmem:[%s5 + $0xc0] sm:$0xf]
  %v1645 = vld [vmem:[%s5 + $0xc4] sm:$0xf]
  %v1646 = vld [vmem:[%s5 + $0xc8] sm:$0xf]
  %v1647 = vld [vmem:[%s5 + $0xcc] sm:$0xf]
  %v1648 = vld [vmem:[%s5 + $0xd0] sm:$0xf]
  %v1649 = vld [vmem:[%s5 + $0xd4] sm:$0xf]
  %v1650 = vld [vmem:[%s5 + $0xd8] sm:$0xf]
  %v1651 = vld [vmem:[%s5 + $0xdc] sm:$0xf]
  %v1652 = vld [vmem:[%s5 + $0xe0] sm:$0xf]
  %v1653 = vld [vmem:[%s5 + $0xe4] sm:$0xf]
  %v1654 = vld [vmem:[%s5 + $0xe8] sm:$0xf]
  %v1655 = vld [vmem:[%s5 + $0xec] sm:$0xf]
  %v1659 = vrot.slane %v1313, 3
  %v1660 = vrot.slane %v1318, 3
  %v1661 = vsel %vm1358, %v1659, %v1660
  %v1662 = vrot.slane %v1321, 3
  %v1663 = vsel %vm1358, %v1660, %v1662
  %1664 = vrot.lane.b32.xlu0 %v1661, 40
  %v1665 = vpop.permute.xlu0 %1664
  %1666 = vrot.lane.b32.xlu0 %v1663, 40
  %v1667 = vpop.permute.xlu0 %1666
  %v1671 = vrot.slane %v1321, 6
  %v1672 = vrot.slane %v1326, 6
  %v1673 = vsel %vm1035, %v1671, %v1672
  %1674 = vrot.lane.b32.xlu0 %v1671, 80
  %v1675 = vpop.permute.xlu0 %1674
  %1676 = vrot.lane.b32.xlu0 %v1673, 80
  %v1677 = vpop.permute.xlu0 %1676
  %v1681 = vrot.slane %v1326, 1
  %v1682 = vrot.slane %v1329, 1
  %v1683 = vsel %vm1382, %v1681, %v1682
  %1684 = vrot.lane.b32.xlu0 %v1683, 120
  %v1685 = vpop.permute.xlu0 %1684
  %1686 = vrot.lane.b32.xlu0 %v1682, 120
  %v1687 = vpop.permute.xlu0 %1686
  %v1690 = vsel %vm1042, %v1310, %v1665
  %v1691 = vsel %vm1042, %v1313, %v1667
  %v1692 = vsel %vm1394, %v1690, %v1675
  %v1693 = vsel %vm1394, %v1691, %v1677
  %v1694 = vsel %vm1397, %v1692, %v1685
  %v1695 = vsel %vm1397, %v1693, %v1687
  %v1696 = vpack.c.bf16 %v1695, %v1694
  %v1697 = vpack.c.bf16 %v1687, %v1685
  %v1698 = vld [vmem:[%s5 + $0xf0] sm:$0xf]
  %v1699 = vld [vmem:[%s5 + $0xf4] sm:$0xf]
  %v1700 = vld [vmem:[%s5 + $0xf8] sm:$0xf]
  %v1701 = vld [vmem:[%s5 + $0xfc] sm:$0xf]
  %v1702 = vld [vmem:[%s5 + $0x100] sm:$0xf]
  %v1703 = vld [vmem:[%s5 + $0x104] sm:$0xf]
  %v1704 = vld [vmem:[%s5 + $0x108] sm:$0xf]
  %v1705 = vld [vmem:[%s5 + $0x10c] sm:$0xf]
  %v1706 = vld [vmem:[%s5 + $0x110] sm:$0xf]
  %v1707 = vld [vmem:[%s5 + $0x114] sm:$0xf]
  %v1708 = vld [vmem:[%s5 + $0x118] sm:$0xf]
  %v1709 = vld [vmem:[%s5 + $0x11c] sm:$0xf]
  %v1710 = vld [vmem:[%s5 + $0x120] sm:$0xf]
  %v1711 = vld [vmem:[%s5 + $0x124] sm:$0xf]
  %v1712 = vld [vmem:[%s5 + $0x128] sm:$0xf]
  %v1713 = vld [vmem:[%s5 + $0x12c] sm:$0xf]
  %v1714 = vld [vmem:[%s5 + $0x130] sm:$0xf]
  %v1715 = vld [vmem:[%s5 + $0x134] sm:$0xf]
  %v1716 = vld [vmem:[%s5 + $0x138] sm:$0xf]
  %v1717 = vld [vmem:[%s5 + $0x13c] sm:$0xf]
  %v1720 = vrot.slane %v1696, 2
  %v1721 = vrot.slane %v1697, 2
  %v1743 = vunpack.c.l.b16 %v1698
  %v1744 = vunpack.c.l.b16 %v1699
  %v1745 = vunpack.c.l.b16 %v1700
  %v1746 = vunpack.c.l.b16 %v1701
  %v1747 = vunpack.c.l.b16 %v1702
  %v1748 = vunpack.c.l.b16 %v1703
  %v1749 = vunpack.c.l.b16 %v1704
  %v1750 = vunpack.c.l.b16 %v1705
  %v1751 = vunpack.c.l.b16 %v1706
  %v1752 = vunpack.c.l.b16 %v1707
  %v1753 = vunpack.c.l.b16 %v1708
  %v1754 = vunpack.c.l.b16 %v1709
  %v1755 = vunpack.c.l.b16 %v1710
  %v1756 = vunpack.c.l.b16 %v1711
  %v1757 = vunpack.c.l.b16 %v1712
  %v1758 = vunpack.c.l.b16 %v1713
  %v1759 = vunpack.c.l.b16 %v1714
  %v1760 = vunpack.c.l.b16 %v1715
  %v1761 = vunpack.c.l.b16 %v1716
  %v1762 = vunpack.c.l.b16 %v1717
  %v1763 = vpack.c.b16 %v1744, %v1743
  %v1764 = vpack.c.b16 %v1746, %v1745
  %v1765 = vpack.c.b16 %v1748, %v1747
  %v1766 = vpack.c.b16 %v1750, %v1749
  %v1767 = vpack.c.b16 %v1752, %v1751
  %v1768 = vpack.c.b16 %v1754, %v1753
  %v1769 = vpack.c.b16 %v1756, %v1755
  %v1770 = vpack.c.b16 %v1758, %v1757
  %v1771 = vpack.c.b16 %v1760, %v1759
  %v1772 = vpack.c.b16 %v1762, %v1761
  %v1784 = vsel %vm1549, %v1721, 0
  %1786 = vmatprep.subr.bf16.mxu0 0
  %1787 = vmatpush1.bf16.msra.mxu0 %v1770
  %1788 = vmatprep.subr.bf16.mxu0 0
  %1789 = vmatpush1.bf16.msra.mxu0 %v1769
  %1790 = vmatprep.subr.bf16.mxu0 0
  %1791 = vmatpush1.bf16.msra.mxu0 %v1768
  %1792 = vmatprep.subr.bf16.mxu0 0
  %1793 = vmatpush1.bf16.msra.mxu0 %v1767
  %1794 = vmatprep.subr.bf16.mxu0 0
  %1795 = vmatpush1.bf16.msra.mxu0 %v1766
  %1796 = vmatprep.subr.bf16.mxu0 0
  %1797 = vmatpush1.bf16.msra.mxu0 %v1765
  %1798 = vmatprep.subr.bf16.mxu0 0
  %1799 = vmatpush1.bf16.msra.mxu0 %v1764
  %1800 = vmatprep.subr.bf16.mxu0 0
  %1801 = vmatpush1.bf16.msra.mxu0 %v1763
  %1802 = vmatprep.subr.bf16.mxu0 0
  %1803 = vmatpush2.bf16.msra.mxu0 0
  %1804 = vmatprep.subr.bf16.mxu0 0
  %1805 = vmatpush2.bf16.msra.mxu0 0
  %1806 = vmatprep.subr.bf16.mxu0 0
  %1807 = vmatpush2.bf16.msra.mxu0 0
  %1808 = vmatprep.subr.bf16.mxu0 0
  %1809 = vmatpush2.bf16.msra.mxu0 0
  %1810 = vmatprep.subr.bf16.mxu0 0
  %1811 = vmatpush2.bf16.msra.mxu0 0
  %1812 = vmatprep.subr.bf16.mxu0 0
  %1813 = vmatpush2.bf16.msra.mxu0 0
  %1814 = vmatprep.subr.bf16.mxu0 0
  %1815 = vmatpush2.bf16.msra.mxu0 %v1772
  %1816 = vmatprep.subr.bf16.mxu0 0
  %1817 = vmatpush2.bf16.msra.mxu0 %v1771
  %1818 = vmatprep.mubr.bf16.mxu0 %v1784
  %1819 = vmatmul.mubr.bf16.gmra.mxu0 %v1720
  %v1820 = vpop.f32.mrf.mxu0
  %v1821 = vadd.f32 0.0, %v1820
  %v1822 = vpop.f32.mrf.mxu0
  %v1823 = vpop.f32.mrf.mxu0
  %v1824 = vadd.f32 0.0, %v1823
  %v1825 = vpop.f32.mrf.mxu0
  %1826 = vdwg.mxu0
  %v1829 = vrot.slane %v1337, 3
  %v1830 = vrot.slane %v1342, 3
  %v1831 = vsel %vm1358, %v1829, %v1830
  %1832 = vrot.lane.b32.xlu0 %v1831, 40
  %v1833 = vpop.permute.xlu0 %1832
  %1834 = vrot.lane.b32.xlu0 %v1830, 40
  %v1835 = vpop.permute.xlu0 %1834
  %v1840 = vrot.slane %v1342, 6
  %v1841 = vrot.slane %v1345, 6
  %v1842 = vsel %vm1035, %v1840, %v1841
  %v1843 = vrot.slane %v1350, 6
  %v1844 = vsel %vm1035, %v1841, %v1843
  %1845 = vrot.lane.b32.xlu0 %v1842, 80
  %v1846 = vpop.permute.xlu0 %1845
  %1847 = vrot.lane.b32.xlu0 %v1844, 80
  %v1848 = vpop.permute.xlu0 %1847
  %v1852 = vrot.slane %v1350, 1
  %v1853 = vrot.slane %v1353, 1
  %v1854 = vsel %vm1382, %v1852, %v1853
  %1855 = vrot.lane.b32.xlu0 %v1854, 120
  %v1856 = vpop.permute.xlu0 %1855
  %1857 = vrot.lane.b32.xlu0 %v1853, 120
  %v1858 = vpop.permute.xlu0 %1857
  %v1861 = vsel %vm1042, %v1334, %v1833
  %v1862 = vsel %vm1042, %v1337, %v1835
  %v1863 = vsel %vm1394, %v1861, %v1846
  %v1864 = vsel %vm1394, %v1862, %v1848
  %v1865 = vsel %vm1397, %v1863, %v1856
  %v1866 = vsel %vm1397, %v1864, %v1858
  %v1867 = vpack.c.bf16 %v1866, %v1865
  %v1868 = vpack.c.bf16 %v1858, %v1856
  %v1869 = vld [vmem:[%s5 + $0x140] sm:$0xf]
  %v1870 = vld [vmem:[%s5 + $0x144] sm:$0xf]
  %v1871 = vld [vmem:[%s5 + $0x148] sm:$0xf]
  %v1872 = vld [vmem:[%s5 + $0x14c] sm:$0xf]
  %v1873 = vld [vmem:[%s5 + $0x150] sm:$0xf]
  %v1874 = vld [vmem:[%s5 + $0x154] sm:$0xf]
  %v1875 = vld [vmem:[%s5 + $0x158] sm:$0xf]
  %v1876 = vld [vmem:[%s5 + $0x15c] sm:$0xf]
  %v1877 = vld [vmem:[%s5 + $0x160] sm:$0xf]
  %v1878 = vld [vmem:[%s5 + $0x164] sm:$0xf]
  %v1879 = vld [vmem:[%s5 + $0x168] sm:$0xf]
  %v1880 = vld [vmem:[%s5 + $0x16c] sm:$0xf]
  %v1881 = vld [vmem:[%s5 + $0x170] sm:$0xf]
  %v1882 = vld [vmem:[%s5 + $0x174] sm:$0xf]
  %v1883 = vld [vmem:[%s5 + $0x178] sm:$0xf]
  %v1884 = vld [vmem:[%s5 + $0x17c] sm:$0xf]
  %v1885 = vld [vmem:[%s5 + $0x180] sm:$0xf]
  %v1886 = vld [vmem:[%s5 + $0x184] sm:$0xf]
  %v1887 = vld [vmem:[%s5 + $0x188] sm:$0xf]
  %v1888 = vld [vmem:[%s5 + $0x18c] sm:$0xf]
  %v1909 = vunpack.c.l.b16 %v1869
  %v1910 = vunpack.c.l.b16 %v1870
  %v1911 = vunpack.c.l.b16 %v1871
  %v1912 = vunpack.c.l.b16 %v1872
  %v1913 = vunpack.c.l.b16 %v1873
  %v1914 = vunpack.c.l.b16 %v1874
  %v1915 = vunpack.c.l.b16 %v1875
  %v1916 = vunpack.c.l.b16 %v1876
  %v1917 = vunpack.c.l.b16 %v1877
  %v1918 = vunpack.c.l.b16 %v1878
  %v1919 = vunpack.c.l.b16 %v1879
  %v1920 = vunpack.c.l.b16 %v1880
  %v1921 = vunpack.c.l.b16 %v1881
  %v1922 = vunpack.c.l.b16 %v1882
  %v1923 = vunpack.c.l.b16 %v1883
  %v1924 = vunpack.c.l.b16 %v1884
  %v1925 = vunpack.c.l.b16 %v1885
  %v1926 = vunpack.c.l.b16 %v1886
  %v1927 = vunpack.c.l.b16 %v1887
  %v1928 = vunpack.c.l.b16 %v1888
  %v1929 = vpack.c.b16 %v1910, %v1909
  %v1930 = vpack.c.b16 %v1912, %v1911
  %v1931 = vpack.c.b16 %v1914, %v1913
  %v1932 = vpack.c.b16 %v1916, %v1915
  %v1933 = vpack.c.b16 %v1918, %v1917
  %v1934 = vpack.c.b16 %v1920, %v1919
  %v1935 = vpack.c.b16 %v1922, %v1921
  %v1936 = vpack.c.b16 %v1924, %v1923
  %v1937 = vpack.c.b16 %v1926, %v1925
  %v1938 = vpack.c.b16 %v1928, %v1927
  %v1950 = vsel %vm1549, %v1868, 0
  %1952 = vmatprep.subr.bf16.mxu0 0
  %1953 = vmatpush1.bf16.msra.mxu0 %v1936
  %1954 = vmatprep.subr.bf16.mxu0 0
  %1955 = vmatpush1.bf16.msra.mxu0 %v1935
  %1956 = vmatprep.subr.bf16.mxu0 0
  %1957 = vmatpush1.bf16.msra.mxu0 %v1934
  %1958 = vmatprep.subr.bf16.mxu0 0
  %1959 = vmatpush1.bf16.msra.mxu0 %v1933
  %1960 = vmatprep.subr.bf16.mxu0 0
  %1961 = vmatpush1.bf16.msra.mxu0 %v1932
  %1962 = vmatprep.subr.bf16.mxu0 0
  %1963 = vmatpush1.bf16.msra.mxu0 %v1931
  %1964 = vmatprep.subr.bf16.mxu0 0
  %1965 = vmatpush1.bf16.msra.mxu0 %v1930
  %1966 = vmatprep.subr.bf16.mxu0 0
  %1967 = vmatpush1.bf16.msra.mxu0 %v1929
  %1968 = vmatprep.subr.bf16.mxu0 0
  %1969 = vmatpush2.bf16.msra.mxu0 0
  %1970 = vmatprep.subr.bf16.mxu0 0
  %1971 = vmatpush2.bf16.msra.mxu0 0
  %1972 = vmatprep.subr.bf16.mxu0 0
  %1973 = vmatpush2.bf16.msra.mxu0 0
  %1974 = vmatprep.subr.bf16.mxu0 0
  %1975 = vmatpush2.bf16.msra.mxu0 0
  %1976 = vmatprep.subr.bf16.mxu0 0
  %1977 = vmatpush2.bf16.msra.mxu0 0
  %1978 = vmatprep.subr.bf16.mxu0 0
  %1979 = vmatpush2.bf16.msra.mxu0 0
  %1980 = vmatprep.subr.bf16.mxu0 0
  %1981 = vmatpush2.bf16.msra.mxu0 %v1938
  %1982 = vmatprep.subr.bf16.mxu0 0
  %1983 = vmatpush2.bf16.msra.mxu0 %v1937
  %1984 = vmatprep.mubr.bf16.mxu0 %v1950
  %1985 = vmatmul.mubr.bf16.gmra.mxu0 %v1867
  %v1986 = vpop.f32.mrf.mxu0
  %v1987 = vadd.f32 0.0, %v1986
  %v1988 = vpop.f32.mrf.mxu0
  %v1989 = vpop.f32.mrf.mxu0
  %v1990 = vadd.f32 0.0, %v1989
  %v1991 = vpop.f32.mrf.mxu0
  %1992 = vdwg.mxu0
  %v2013 = vunpack.c.l.b16 %v1402
  %v2014 = vunpack.c.l.b16 %v1403
  %v2015 = vunpack.c.l.b16 %v1404
  %v2016 = vunpack.c.l.b16 %v1405
  %v2017 = vunpack.c.l.b16 %v1406
  %v2018 = vunpack.c.l.b16 %v1407
  %v2019 = vunpack.c.l.b16 %v1408
  %v2020 = vunpack.c.l.b16 %v1409
  %v2021 = vunpack.c.l.b16 %v1410
  %v2022 = vunpack.c.l.b16 %v1411
  %v2023 = vunpack.c.l.b16 %v1412
  %v2024 = vunpack.c.l.b16 %v1413
  %v2025 = vunpack.c.l.b16 %v1414
  %v2026 = vunpack.c.l.b16 %v1415
  %v2027 = vunpack.c.l.b16 %v1416
  %v2028 = vunpack.c.l.b16 %v1417
  %v2029 = vunpack.c.l.b16 %v1418
  %v2030 = vunpack.c.l.b16 %v1419
  %v2031 = vunpack.c.l.b16 %v1420
  %v2032 = vunpack.c.l.b16 %v1421
  %v2033 = vpack.c.b16 %v2014, %v2013
  %v2034 = vpack.c.b16 %v2016, %v2015
  %v2035 = vpack.c.b16 %v2018, %v2017
  %v2036 = vpack.c.b16 %v2020, %v2019
  %v2037 = vpack.c.b16 %v2022, %v2021
  %v2038 = vpack.c.b16 %v2024, %v2023
  %v2039 = vpack.c.b16 %v2026, %v2025
  %v2040 = vpack.c.b16 %v2028, %v2027
  %v2041 = vpack.c.b16 %v2030, %v2029
  %v2042 = vpack.c.b16 %v2032, %v2031
  %v2054 = vsel %vm1549, %v1401, 0
  %2056 = vmatprep.subr.bf16.mxu0 0
  %2057 = vmatpush1.bf16.msra.mxu0 %v2040
  %2058 = vmatprep.subr.bf16.mxu0 0
  %2059 = vmatpush1.bf16.msra.mxu0 %v2039
  %2060 = vmatprep.subr.bf16.mxu0 0
  %2061 = vmatpush1.bf16.msra.mxu0 %v2038
  %2062 = vmatprep.subr.bf16.mxu0 0
  %2063 = vmatpush1.bf16.msra.mxu0 %v2037
  %2064 = vmatprep.subr.bf16.mxu0 0
  %2065 = vmatpush1.bf16.msra.mxu0 %v2036
  %2066 = vmatprep.subr.bf16.mxu0 0
  %2067 = vmatpush1.bf16.msra.mxu0 %v2035
  %2068 = vmatprep.subr.bf16.mxu0 0
  %2069 = vmatpush1.bf16.msra.mxu0 %v2034
  %2070 = vmatprep.subr.bf16.mxu0 0
  %2071 = vmatpush1.bf16.msra.mxu0 %v2033
  %2072 = vmatprep.subr.bf16.mxu0 0
  %2073 = vmatpush2.bf16.msra.mxu0 0
  %2074 = vmatprep.subr.bf16.mxu0 0
  %2075 = vmatpush2.bf16.msra.mxu0 0
  %2076 = vmatprep.subr.bf16.mxu0 0
  %2077 = vmatpush2.bf16.msra.mxu0 0
  %2078 = vmatprep.subr.bf16.mxu0 0
  %2079 = vmatpush2.bf16.msra.mxu0 0
  %2080 = vmatprep.subr.bf16.mxu0 0
  %2081 = vmatpush2.bf16.msra.mxu0 0
  %2082 = vmatprep.subr.bf16.mxu0 0
  %2083 = vmatpush2.bf16.msra.mxu0 0
  %2084 = vmatprep.subr.bf16.mxu0 0
  %2085 = vmatpush2.bf16.msra.mxu0 %v2042
  %2086 = vmatprep.subr.bf16.mxu0 0
  %2087 = vmatpush2.bf16.msra.mxu0 %v2041
  %2088 = vmatprep.mubr.bf16.mxu0 %v2054
  %2089 = vmatmul.mubr.bf16.gmra.mxu0 %v1400
  %v2090 = vpop.f32.mrf.mxu0
  %v2091 = vadd.f32 %v1588, %v2090
  %v2092 = vpop.f32.mrf.mxu0
  %v2093 = vpop.f32.mrf.mxu0
  %v2094 = vadd.f32 %v1591, %v2093
  %v2095 = vpop.f32.mrf.mxu0
  %2096 = vdwg.mxu0
  %v2117 = vunpack.c.l.b16 %v1636
  %v2118 = vunpack.c.l.b16 %v1637
  %v2119 = vunpack.c.l.b16 %v1638
  %v2120 = vunpack.c.l.b16 %v1639
  %v2121 = vunpack.c.l.b16 %v1640
  %v2122 = vunpack.c.l.b16 %v1641
  %v2123 = vunpack.c.l.b16 %v1642
  %v2124 = vunpack.c.l.b16 %v1643
  %v2125 = vunpack.c.l.b16 %v1644
  %v2126 = vunpack.c.l.b16 %v1645
  %v2127 = vunpack.c.l.b16 %v1646
  %v2128 = vunpack.c.l.b16 %v1647
  %v2129 = vunpack.c.l.b16 %v1648
  %v2130 = vunpack.c.l.b16 %v1649
  %v2131 = vunpack.c.l.b16 %v1650
  %v2132 = vunpack.c.l.b16 %v1651
  %v2133 = vunpack.c.l.b16 %v1652
  %v2134 = vunpack.c.l.b16 %v1653
  %v2135 = vunpack.c.l.b16 %v1654
  %v2136 = vunpack.c.l.b16 %v1655
  %v2137 = vpack.c.b16 %v2118, %v2117
  %v2138 = vpack.c.b16 %v2120, %v2119
  %v2139 = vpack.c.b16 %v2122, %v2121
  %v2140 = vpack.c.b16 %v2124, %v2123
  %v2141 = vpack.c.b16 %v2126, %v2125
  %v2142 = vpack.c.b16 %v2128, %v2127
  %v2143 = vpack.c.b16 %v2130, %v2129
  %v2144 = vpack.c.b16 %v2132, %v2131
  %v2145 = vpack.c.b16 %v2134, %v2133
  %v2146 = vpack.c.b16 %v2136, %v2135
  %v2158 = vsel %vm1549, %v1635, 0
  %2160 = vmatprep.subr.bf16.mxu0 0
  %2161 = vmatpush1.bf16.msra.mxu0 %v2144
  %2162 = vmatprep.subr.bf16.mxu0 0
  %2163 = vmatpush1.bf16.msra.mxu0 %v2143
  %2164 = vmatprep.subr.bf16.mxu0 0
  %2165 = vmatpush1.bf16.msra.mxu0 %v2142
  %2166 = vmatprep.subr.bf16.mxu0 0
  %2167 = vmatpush1.bf16.msra.mxu0 %v2141
  %2168 = vmatprep.subr.bf16.mxu0 0
  %2169 = vmatpush1.bf16.msra.mxu0 %v2140
  %2170 = vmatprep.subr.bf16.mxu0 0
  %2171 = vmatpush1.bf16.msra.mxu0 %v2139
  %2172 = vmatprep.subr.bf16.mxu0 0
  %2173 = vmatpush1.bf16.msra.mxu0 %v2138
  %2174 = vmatprep.subr.bf16.mxu0 0
  %2175 = vmatpush1.bf16.msra.mxu0 %v2137
  %2176 = vmatprep.subr.bf16.mxu0 0
  %2177 = vmatpush2.bf16.msra.mxu0 0
  %2178 = vmatprep.subr.bf16.mxu0 0
  %2179 = vmatpush2.bf16.msra.mxu0 0
  %2180 = vmatprep.subr.bf16.mxu0 0
  %2181 = vmatpush2.bf16.msra.mxu0 0
  %2182 = vmatprep.subr.bf16.mxu0 0
  %2183 = vmatpush2.bf16.msra.mxu0 0
  %2184 = vmatprep.subr.bf16.mxu0 0
  %2185 = vmatpush2.bf16.msra.mxu0 0
  %2186 = vmatprep.subr.bf16.mxu0 0
  %2187 = vmatpush2.bf16.msra.mxu0 0
  %2188 = vmatprep.subr.bf16.mxu0 0
  %2189 = vmatpush2.bf16.msra.mxu0 %v2146
  %2190 = vmatprep.subr.bf16.mxu0 0
  %2191 = vmatpush2.bf16.msra.mxu0 %v2145
  %2192 = vmatprep.mubr.bf16.mxu0 %v2158
  %2193 = vmatmul.mubr.bf16.gmra.mxu0 %v1634
  %v2194 = vpop.f32.mrf.mxu0
  %v2195 = vadd.f32 %v1821, %v2194
  %v2196 = vpop.f32.mrf.mxu0
  %v2197 = vpop.f32.mrf.mxu0
  %v2198 = vadd.f32 %v1824, %v2197
  %v2199 = vpop.f32.mrf.mxu0
  %2200 = vdwg.mxu0
  %v2201 = vadd.f32 %v2091, %v2195
  %v2202 = vadd.f32 %v2094, %v2198
  %v2203 = vadd.f32 %v2201, %v1987
  %v2204 = vadd.f32 %v2202, %v1990
  %2207 = vrot.lane.b32.xlu0 %v2203, 32
  %v2208 = vpop.permute.xlu0 %2207
  %2209 = vrot.lane.b32.xlu0 %v2204, 32
  %v2210 = vpop.permute.xlu0 %2209
  %v2213 = vsel %vm1549, %v2203, 0.0
  %v2214 = vsel %vm1549, %v2204, 0.0
  %vm2215 = vcmask 523264
  %v2216 = vsel %vm2215, %v2213, %v2208
  %v2217 = vsel %vm2215, %v2214, %v2210
  %vm2218 = vcmask 785408
  %v2219 = vsel %vm2218, %v2216, 0.0
  %v2220 = vsel %vm2218, %v2217, 0.0
  %v2221 = vsel %vm2215, 0.0, %v2203
  %v2222 = vsel %vm2215, 0.0, %v2204
  %v2223 = vsel %vm2218, %v2221, 0.0
  %v2224 = vsel %vm2218, %v2222, 0.0
  %v2225 = vld [vmem:[%s7] sm:$0x3]
  %v2227 = vlaneseq
  %v2228 = vshrl.u32 %v2227, 7
  %v2229 = vsub.s32 0, %v2228
  %v2230 = vrot.slane %v2225, %v2229
  %v2231 = vlaneseq
  %v2232 = vshrl.u32 %v2231, 7
  %v2233 = vsub.s32 1, %v2232
  %v2234 = vrot.slane %v2225, %v2233
  %v2237 = vadd.f32 %v2219, %v2230
  %v2238 = vadd.f32 %v2223, %v2234
  %v2239 = vadd.f32 %v2220, %v2230
  %v2240 = vadd.f32 %v2224, %v2234
  %v2241 = vsel %vm1205, %v2239, %v2230
  %v2242 = vsel %vm1205, %v2240, %v2234
  %v2243 = vld [vmem:[%s6] sm:$0xff]
  %v2244 = vld [vmem:[%s6 + $0x8] sm:$0xff]
  %v2245 = vld [vmem:[%s6 + $0x10] sm:$0xff]
  %v2246 = vld [vmem:[%s6 + $0x18] sm:$0xff]
  %v2247 = vld [vmem:[%s6 + $0x20] sm:$0xff]
  %v2248 = vld [vmem:[%s6 + $0x28] sm:$0xff]
  %v2249 = vld [vmem:[%s6 + $0x30] sm:$0xff]
  %v2250 = vld [vmem:[%s6 + $0x38] sm:$0xff]
  %v2251 = vld [vmem:[%s6 + $0x40] sm:$0xff]
  %v2252 = vld [vmem:[%s6 + $0x48] sm:$0xff]
  %v2253 = vld [vmem:[%s6 + $0x50] sm:$0xff]
  %v2254 = vld [vmem:[%s6 + $0x58] sm:$0xff]
  %v2255 = vld [vmem:[%s6 + $0x60] sm:$0xff]
  %v2256 = vld [vmem:[%s6 + $0x68] sm:$0xff]
  %v2257 = vld [vmem:[%s6 + $0x70] sm:$0xff]
  %v2258 = vld [vmem:[%s6 + $0x78] sm:$0xff]
  %v2259 = vld [vmem:[%s10] sm:$0x1]
  %v2260 = vlaneseq
  %v2261 = vand.u32 %v2260, 127
  %vm2262 = vcmp.lt.s32.totalorder %v2261, 32
  %v2264 = vsel %vm2215, %v2259, 0
  %2266 = vmatprep.subr.mxu0 0.0
  %2267 = vmatpush1.msra.mxu0 0.0
  %2268 = vmatprep.subr.mxu0 0.0
  %2269 = vmatpush1.msra.mxu0 0.0
  %2270 = vmatprep.subr.mxu0 0.0
  %2271 = vmatpush1.msra.mxu0 0.0
  %2272 = vmatprep.subr.mxu0 0.0
  %2273 = vmatpush1.msra.mxu0 0.0
  %2274 = vmatprep.subr.mxu0 0.0
  %2275 = vmatpush1.msra.mxu0 0.0
  %2276 = vmatprep.subr.mxu0 0.0
  %2277 = vmatpush1.msra.mxu0 0.0
  %2278 = vmatprep.subr.mxu0 0.0
  %2279 = vmatpush1.msra.mxu0 0.0
  %2280 = vmatprep.subr.mxu0 0.0
  %2281 = vmatpush1.msra.mxu0 0.0
  %2282 = vmatprep.subr.mxu0 %v2258
  %2283 = vmatpush1.msra.mxu0 %v2257
  %2284 = vmatprep.subr.mxu0 %v2256
  %2285 = vmatpush1.msra.mxu0 %v2255
  %2286 = vmatprep.subr.mxu0 %v2254
  %2287 = vmatpush1.msra.mxu0 %v2253
  %2288 = vmatprep.subr.mxu0 %v2252
  %2289 = vmatpush1.msra.mxu0 %v2251
  %2290 = vmatprep.subr.mxu0 %v2250
  %2291 = vmatpush1.msra.mxu0 %v2249
  %2292 = vmatprep.subr.mxu0 %v2248
  %2293 = vmatpush1.msra.mxu0 %v2247
  %2294 = vmatprep.subr.mxu0 %v2246
  %2295 = vmatpush1.msra.mxu0 %v2245
  %2296 = vmatprep.subr.mxu0 %v2244
  %2297 = vmatpush1.msra.mxu0 %v2243
  %2298 = vmatprep.subr.mxu0 0.0
  %2299 = vmatpush2.msra.mxu0 0.0
  %2300 = vmatprep.subr.mxu0 0.0
  %2301 = vmatpush2.msra.mxu0 0.0
  %2302 = vmatprep.subr.mxu0 0.0
  %2303 = vmatpush2.msra.mxu0 0.0
  %2304 = vmatprep.subr.mxu0 0.0
  %2305 = vmatpush2.msra.mxu0 0.0
  %2306 = vmatprep.subr.mxu0 0.0
  %2307 = vmatpush2.msra.mxu0 0.0
  %2308 = vmatprep.subr.mxu0 0.0
  %2309 = vmatpush2.msra.mxu0 0.0
  %2310 = vmatprep.subr.mxu0 0.0
  %2311 = vmatpush2.msra.mxu0 0.0
  %2312 = vmatprep.subr.mxu0 0.0
  %2313 = vmatpush2.msra.mxu0 0.0
  %2314 = vmatprep.subr.mxu0 0.0
  %2315 = vmatpush2.msra.mxu0 0.0
  %2316 = vmatprep.subr.mxu0 0.0
  %2317 = vmatpush2.msra.mxu0 0.0
  %2318 = vmatprep.subr.mxu0 0.0
  %2319 = vmatpush2.msra.mxu0 0.0
  %2320 = vmatprep.subr.mxu0 0.0
  %2321 = vmatpush2.msra.mxu0 0.0
  %2322 = vmatprep.subr.mxu0 0.0
  %2323 = vmatpush2.msra.mxu0 0.0
  %2324 = vmatprep.subr.mxu0 0.0
  %2325 = vmatpush2.msra.mxu0 0.0
  %2326 = vmatprep.subr.mxu0 0.0
  %2327 = vmatpush2.msra.mxu0 0.0
  %2328 = vmatprep.subr.mxu0 0.0
  %2329 = vmatpush2.msra.mxu0 0.0
  %2330 = vmatprep.mubr.f32.mxu0 0.0
  %2331 = vmatmul.mubr.f32.gmra.mxu0 %v2264
  %v2332 = vpop.f32.mrf.mxu0
  %v2333 = vadd.f32 %v2237, %v2332
  %v2334 = vpop.f32.mrf.mxu0
  %v2335 = vadd.f32 %v2238, %v2334
  %2336 = vdwg.mxu0
  %v2337 = vxor.u32 %v2333, 2147483648
  %v2338 = vmul.f32 %v2337, 1.442695
  %v2339 = vpow.pop %v2338
  %v2340 = vadd.f32 %v2339, 1.0
  %v2341 = vrcp.pop %v2340
  %v2342 = vmul.f32 1.0, %v2341
  %v2343 = vmul.f32 %v2342, %v2335
  %2345 = vrot.lane.b32.xlu0 %v2343, 64
  %v2346 = vpop.permute.xlu0 %2345
  %v2348 = vadd.f32 %v2335, %v2346
  %v2349 = vtanh.pop %v2348
  %v2350 = vsub.f32 1.0, %v2342
  %v2351 = vmul.f32 %v2350, %v2349
  %v2352 = vlaneseq
  %v2353 = vshrl.u32 %v2352, 7
  %v2354 = vsub.s32 0, %v2353
  %v2355 = vrot.slane %v2259, %v2354
  %2356 = vrot.lane.b32.xlu0 %v2355, 64
  %v2357 = vpop.permute.xlu0 %2356
  %v2359 = vmul.f32 %v2342, %v2357
  %v2360 = vadd.f32 %v2351, %v2359
  %2362 = vrot.lane.b32.xlu0 %v2360, 64
  %v2363 = vpop.permute.xlu0 %2362
  %v2365 = vsel %vm2262, %v2363, %v2259
  %v2368 = vrot.slane %v2237, 1
  %v2369 = vrot.slane %v2238, 1
  %v2373 = vsel %vm2215, %v2365, 0
  %2375 = vmatprep.subr.mxu0 0.0
  %2376 = vmatpush1.msra.mxu0 0.0
  %2377 = vmatprep.subr.mxu0 0.0
  %2378 = vmatpush1.msra.mxu0 0.0
  %2379 = vmatprep.subr.mxu0 0.0
  %2380 = vmatpush1.msra.mxu0 0.0
  %2381 = vmatprep.subr.mxu0 0.0
  %2382 = vmatpush1.msra.mxu0 0.0
  %2383 = vmatprep.subr.mxu0 0.0
  %2384 = vmatpush1.msra.mxu0 0.0
  %2385 = vmatprep.subr.mxu0 0.0
  %2386 = vmatpush1.msra.mxu0 0.0
  %2387 = vmatprep.subr.mxu0 0.0
  %2388 = vmatpush1.msra.mxu0 0.0
  %2389 = vmatprep.subr.mxu0 0.0
  %2390 = vmatpush1.msra.mxu0 0.0
  %2391 = vmatprep.subr.mxu0 %v2258
  %2392 = vmatpush1.msra.mxu0 %v2257
  %2393 = vmatprep.subr.mxu0 %v2256
  %2394 = vmatpush1.msra.mxu0 %v2255
  %2395 = vmatprep.subr.mxu0 %v2254
  %2396 = vmatpush1.msra.mxu0 %v2253
  %2397 = vmatprep.subr.mxu0 %v2252
  %2398 = vmatpush1.msra.mxu0 %v2251
  %2399 = vmatprep.subr.mxu0 %v2250
  %2400 = vmatpush1.msra.mxu0 %v2249
  %2401 = vmatprep.subr.mxu0 %v2248
  %2402 = vmatpush1.msra.mxu0 %v2247
  %2403 = vmatprep.subr.mxu0 %v2246
  %2404 = vmatpush1.msra.mxu0 %v2245
  %2405 = vmatprep.subr.mxu0 %v2244
  %2406 = vmatpush1.msra.mxu0 %v2243
  %2407 = vmatprep.subr.mxu0 0.0
  %2408 = vmatpush2.msra.mxu0 0.0
  %2409 = vmatprep.subr.mxu0 0.0
  %2410 = vmatpush2.msra.mxu0 0.0
  %2411 = vmatprep.subr.mxu0 0.0
  %2412 = vmatpush2.msra.mxu0 0.0
  %2413 = vmatprep.subr.mxu0 0.0
  %2414 = vmatpush2.msra.mxu0 0.0
  %2415 = vmatprep.subr.mxu0 0.0
  %2416 = vmatpush2.msra.mxu0 0.0
  %2417 = vmatprep.subr.mxu0 0.0
  %2418 = vmatpush2.msra.mxu0 0.0
  %2419 = vmatprep.subr.mxu0 0.0
  %2420 = vmatpush2.msra.mxu0 0.0
  %2421 = vmatprep.subr.mxu0 0.0
  %2422 = vmatpush2.msra.mxu0 0.0
  %2423 = vmatprep.subr.mxu0 0.0
  %2424 = vmatpush2.msra.mxu0 0.0
  %2425 = vmatprep.subr.mxu0 0.0
  %2426 = vmatpush2.msra.mxu0 0.0
  %2427 = vmatprep.subr.mxu0 0.0
  %2428 = vmatpush2.msra.mxu0 0.0
  %2429 = vmatprep.subr.mxu0 0.0
  %2430 = vmatpush2.msra.mxu0 0.0
  %2431 = vmatprep.subr.mxu0 0.0
  %2432 = vmatpush2.msra.mxu0 0.0
  %2433 = vmatprep.subr.mxu0 0.0
  %2434 = vmatpush2.msra.mxu0 0.0
  %2435 = vmatprep.subr.mxu0 0.0
  %2436 = vmatpush2.msra.mxu0 0.0
  %2437 = vmatprep.subr.mxu0 0.0
  %2438 = vmatpush2.msra.mxu0 0.0
  %2439 = vmatprep.mubr.f32.mxu0 0.0
  %2440 = vmatmul.mubr.f32.gmra.mxu0 %v2373
  %v2441 = vpop.f32.mrf.mxu0
  %v2442 = vadd.f32 %v2368, %v2441
  %v2443 = vpop.f32.mrf.mxu0
  %v2444 = vadd.f32 %v2369, %v2443
  %2445 = vdwg.mxu0
  %v2446 = vxor.u32 %v2442, 2147483648
  %v2447 = vmul.f32 %v2446, 1.442695
  %v2448 = vpow.pop %v2447
  %v2449 = vadd.f32 %v2448, 1.0
  %v2450 = vrcp.pop %v2449
  %v2451 = vmul.f32 1.0, %v2450
  %v2452 = vmul.f32 %v2451, %v2444
  %2454 = vrot.lane.b32.xlu0 %v2452, 64
  %v2455 = vpop.permute.xlu0 %2454
  %v2457 = vadd.f32 %v2444, %v2455
  %v2458 = vtanh.pop %v2457
  %v2459 = vsub.f32 1.0, %v2451
  %v2460 = vmul.f32 %v2459, %v2458
  %2461 = vrot.lane.b32.xlu0 %v2365, 64
  %v2462 = vpop.permute.xlu0 %2461
  %v2464 = vmul.f32 %v2451, %v2462
  %v2465 = vadd.f32 %v2460, %v2464
  %2467 = vrot.lane.b32.xlu0 %v2465, 64
  %v2468 = vpop.permute.xlu0 %2467
  %v2469 = vrot.slane %v2237, 2
  %v2470 = vrot.slane %v2238, 2
  %v2473 = vsel %vm2215, %v2468, 0
  %2475 = vmatprep.subr.mxu0 0.0
  %2476 = vmatpush1.msra.mxu0 0.0
  %2477 = vmatprep.subr.mxu0 0.0
  %2478 = vmatpush1.msra.mxu0 0.0
  %2479 = vmatprep.subr.mxu0 0.0
  %2480 = vmatpush1.msra.mxu0 0.0
  %2481 = vmatprep.subr.mxu0 0.0
  %2482 = vmatpush1.msra.mxu0 0.0
  %2483 = vmatprep.subr.mxu0 0.0
  %2484 = vmatpush1.msra.mxu0 0.0
  %2485 = vmatprep.subr.mxu0 0.0
  %2486 = vmatpush1.msra.mxu0 0.0
  %2487 = vmatprep.subr.mxu0 0.0
  %2488 = vmatpush1.msra.mxu0 0.0
  %2489 = vmatprep.subr.mxu0 0.0
  %2490 = vmatpush1.msra.mxu0 0.0
  %2491 = vmatprep.subr.mxu0 %v2258
  %2492 = vmatpush1.msra.mxu0 %v2257
  %2493 = vmatprep.subr.mxu0 %v2256
  %2494 = vmatpush1.msra.mxu0 %v2255
  %2495 = vmatprep.subr.mxu0 %v2254
  %2496 = vmatpush1.msra.mxu0 %v2253
  %2497 = vmatprep.subr.mxu0 %v2252
  %2498 = vmatpush1.msra.mxu0 %v2251
  %2499 = vmatprep.subr.mxu0 %v2250
  %2500 = vmatpush1.msra.mxu0 %v2249
  %2501 = vmatprep.subr.mxu0 %v2248
  %2502 = vmatpush1.msra.mxu0 %v2247
  %2503 = vmatprep.subr.mxu0 %v2246
  %2504 = vmatpush1.msra.mxu0 %v2245
  %2505 = vmatprep.subr.mxu0 %v2244
  %2506 = vmatpush1.msra.mxu0 %v2243
  %2507 = vmatprep.subr.mxu0 0.0
  %2508 = vmatpush2.msra.mxu0 0.0
  %2509 = vmatprep.subr.mxu0 0.0
  %2510 = vmatpush2.msra.mxu0 0.0
  %2511 = vmatprep.subr.mxu0 0.0
  %2512 = vmatpush2.msra.mxu0 0.0
  %2513 = vmatprep.subr.mxu0 0.0
  %2514 = vmatpush2.msra.mxu0 0.0
  %2515 = vmatprep.subr.mxu0 0.0
  %2516 = vmatpush2.msra.mxu0 0.0
  %2517 = vmatprep.subr.mxu0 0.0
  %2518 = vmatpush2.msra.mxu0 0.0
  %2519 = vmatprep.subr.mxu0 0.0
  %2520 = vmatpush2.msra.mxu0 0.0
  %2521 = vmatprep.subr.mxu0 0.0
  %2522 = vmatpush2.msra.mxu0 0.0
  %2523 = vmatprep.subr.mxu0 0.0
  %2524 = vmatpush2.msra.mxu0 0.0
  %2525 = vmatprep.subr.mxu0 0.0
  %2526 = vmatpush2.msra.mxu0 0.0
  %2527 = vmatprep.subr.mxu0 0.0
  %2528 = vmatpush2.msra.mxu0 0.0
  %2529 = vmatprep.subr.mxu0 0.0
  %2530 = vmatpush2.msra.mxu0 0.0
  %2531 = vmatprep.subr.mxu0 0.0
  %2532 = vmatpush2.msra.mxu0 0.0
  %2533 = vmatprep.subr.mxu0 0.0
  %2534 = vmatpush2.msra.mxu0 0.0
  %2535 = vmatprep.subr.mxu0 0.0
  %2536 = vmatpush2.msra.mxu0 0.0
  %2537 = vmatprep.subr.mxu0 0.0
  %2538 = vmatpush2.msra.mxu0 0.0
  %2539 = vmatprep.mubr.f32.mxu0 0.0
  %2540 = vmatmul.mubr.f32.gmra.mxu0 %v2473
  %v2541 = vpop.f32.mrf.mxu0
  %v2542 = vadd.f32 %v2469, %v2541
  %v2543 = vpop.f32.mrf.mxu0
  %v2544 = vadd.f32 %v2470, %v2543
  %2545 = vdwg.mxu0
  %v2546 = vxor.u32 %v2542, 2147483648
  %v2547 = vmul.f32 %v2546, 1.442695
  %v2548 = vpow.pop %v2547
  %v2549 = vadd.f32 %v2548, 1.0
  %v2550 = vrcp.pop %v2549
  %v2551 = vmul.f32 1.0, %v2550
  %v2552 = vmul.f32 %v2551, %v2544
  %2554 = vrot.lane.b32.xlu0 %v2552, 64
  %v2555 = vpop.permute.xlu0 %2554
  %v2557 = vadd.f32 %v2544, %v2555
  %v2558 = vtanh.pop %v2557
  %v2559 = vsub.f32 1.0, %v2551
  %v2560 = vmul.f32 %v2559, %v2558
  %v2561 = vmul.f32 %v2551, %v2465
  %v2562 = vadd.f32 %v2560, %v2561
  %2564 = vrot.lane.b32.xlu0 %v2562, 64
  %v2565 = vpop.permute.xlu0 %2564
  %v2566 = vrot.slane %v2237, 3
  %v2567 = vrot.slane %v2238, 3
  %v2570 = vsel %vm2215, %v2565, 0
  %2572 = vmatprep.subr.mxu0 0.0
  %2573 = vmatpush1.msra.mxu0 0.0
  %2574 = vmatprep.subr.mxu0 0.0
  %2575 = vmatpush1.msra.mxu0 0.0
  %2576 = vmatprep.subr.mxu0 0.0
  %2577 = vmatpush1.msra.mxu0 0.0
  %2578 = vmatprep.subr.mxu0 0.0
  %2579 = vmatpush1.msra.mxu0 0.0
  %2580 = vmatprep.subr.mxu0 0.0
  %2581 = vmatpush1.msra.mxu0 0.0
  %2582 = vmatprep.subr.mxu0 0.0
  %2583 = vmatpush1.msra.mxu0 0.0
  %2584 = vmatprep.subr.mxu0 0.0
  %2585 = vmatpush1.msra.mxu0 0.0
  %2586 = vmatprep.subr.mxu0 0.0
  %2587 = vmatpush1.msra.mxu0 0.0
  %2588 = vmatprep.subr.mxu0 %v2258
  %2589 = vmatpush1.msra.mxu0 %v2257
  %2590 = vmatprep.subr.mxu0 %v2256
  %2591 = vmatpush1.msra.mxu0 %v2255
  %2592 = vmatprep.subr.mxu0 %v2254
  %2593 = vmatpush1.msra.mxu0 %v2253
  %2594 = vmatprep.subr.mxu0 %v2252
  %2595 = vmatpush1.msra.mxu0 %v2251
  %2596 = vmatprep.subr.mxu0 %v2250
  %2597 = vmatpush1.msra.mxu0 %v2249
  %2598 = vmatprep.subr.mxu0 %v2248
  %2599 = vmatpush1.msra.mxu0 %v2247
  %2600 = vmatprep.subr.mxu0 %v2246
  %2601 = vmatpush1.msra.mxu0 %v2245
  %2602 = vmatprep.subr.mxu0 %v2244
  %2603 = vmatpush1.msra.mxu0 %v2243
  %2604 = vmatprep.subr.mxu0 0.0
  %2605 = vmatpush2.msra.mxu0 0.0
  %2606 = vmatprep.subr.mxu0 0.0
  %2607 = vmatpush2.msra.mxu0 0.0
  %2608 = vmatprep.subr.mxu0 0.0
  %2609 = vmatpush2.msra.mxu0 0.0
  %2610 = vmatprep.subr.mxu0 0.0
  %2611 = vmatpush2.msra.mxu0 0.0
  %2612 = vmatprep.subr.mxu0 0.0
  %2613 = vmatpush2.msra.mxu0 0.0
  %2614 = vmatprep.subr.mxu0 0.0
  %2615 = vmatpush2.msra.mxu0 0.0
  %2616 = vmatprep.subr.mxu0 0.0
  %2617 = vmatpush2.msra.mxu0 0.0
  %2618 = vmatprep.subr.mxu0 0.0
  %2619 = vmatpush2.msra.mxu0 0.0
  %2620 = vmatprep.subr.mxu0 0.0
  %2621 = vmatpush2.msra.mxu0 0.0
  %2622 = vmatprep.subr.mxu0 0.0
  %2623 = vmatpush2.msra.mxu0 0.0
  %2624 = vmatprep.subr.mxu0 0.0
  %2625 = vmatpush2.msra.mxu0 0.0
  %2626 = vmatprep.subr.mxu0 0.0
  %2627 = vmatpush2.msra.mxu0 0.0
  %2628 = vmatprep.subr.mxu0 0.0
  %2629 = vmatpush2.msra.mxu0 0.0
  %2630 = vmatprep.subr.mxu0 0.0
  %2631 = vmatpush2.msra.mxu0 0.0
  %2632 = vmatprep.subr.mxu0 0.0
  %2633 = vmatpush2.msra.mxu0 0.0
  %2634 = vmatprep.subr.mxu0 0.0
  %2635 = vmatpush2.msra.mxu0 0.0
  %2636 = vmatprep.mubr.f32.mxu0 0.0
  %2637 = vmatmul.mubr.f32.gmra.mxu0 %v2570
  %v2638 = vpop.f32.mrf.mxu0
  %v2639 = vadd.f32 %v2566, %v2638
  %v2640 = vpop.f32.mrf.mxu0
  %v2641 = vadd.f32 %v2567, %v2640
  %2642 = vdwg.mxu0
  %v2643 = vxor.u32 %v2639, 2147483648
  %v2644 = vmul.f32 %v2643, 1.442695
  %v2645 = vpow.pop %v2644
  %v2646 = vadd.f32 %v2645, 1.0
  %v2647 = vrcp.pop %v2646
  %v2648 = vmul.f32 1.0, %v2647
  %v2649 = vmul.f32 %v2648, %v2641
  %2651 = vrot.lane.b32.xlu0 %v2649, 64
  %v2652 = vpop.permute.xlu0 %2651
  %v2654 = vadd.f32 %v2641, %v2652
  %v2655 = vtanh.pop %v2654
  %v2656 = vsub.f32 1.0, %v2648
  %v2657 = vmul.f32 %v2656, %v2655
  %v2658 = vmul.f32 %v2648, %v2562
  %v2659 = vadd.f32 %v2657, %v2658
  %2661 = vrot.lane.b32.xlu0 %v2659, 64
  %v2662 = vpop.permute.xlu0 %2661
  %v2663 = vrot.slane %v2237, 4
  %v2664 = vrot.slane %v2238, 4
  %v2667 = vsel %vm2215, %v2662, 0
  %2669 = vmatprep.subr.mxu0 0.0
  %2670 = vmatpush1.msra.mxu0 0.0
  %2671 = vmatprep.subr.mxu0 0.0
  %2672 = vmatpush1.msra.mxu0 0.0
  %2673 = vmatprep.subr.mxu0 0.0
  %2674 = vmatpush1.msra.mxu0 0.0
  %2675 = vmatprep.subr.mxu0 0.0
  %2676 = vmatpush1.msra.mxu0 0.0
  %2677 = vmatprep.subr.mxu0 0.0
  %2678 = vmatpush1.msra.mxu0 0.0
  %2679 = vmatprep.subr.mxu0 0.0
  %2680 = vmatpush1.msra.mxu0 0.0
  %2681 = vmatprep.subr.mxu0 0.0
  %2682 = vmatpush1.msra.mxu0 0.0
  %2683 = vmatprep.subr.mxu0 0.0
  %2684 = vmatpush1.msra.mxu0 0.0
  %2685 = vmatprep.subr.mxu0 %v2258
  %2686 = vmatpush1.msra.mxu0 %v2257
  %2687 = vmatprep.subr.mxu0 %v2256
  %2688 = vmatpush1.msra.mxu0 %v2255
  %2689 = vmatprep.subr.mxu0 %v2254
  %2690 = vmatpush1.msra.mxu0 %v2253
  %2691 = vmatprep.subr.mxu0 %v2252
  %2692 = vmatpush1.msra.mxu0 %v2251
  %2693 = vmatprep.subr.mxu0 %v2250
  %2694 = vmatpush1.msra.mxu0 %v2249
  %2695 = vmatprep.subr.mxu0 %v2248
  %2696 = vmatpush1.msra.mxu0 %v2247
  %2697 = vmatprep.subr.mxu0 %v2246
  %2698 = vmatpush1.msra.mxu0 %v2245
  %2699 = vmatprep.subr.mxu0 %v2244
  %2700 = vmatpush1.msra.mxu0 %v2243
  %2701 = vmatprep.subr.mxu0 0.0
  %2702 = vmatpush2.msra.mxu0 0.0
  %2703 = vmatprep.subr.mxu0 0.0
  %2704 = vmatpush2.msra.mxu0 0.0
  %2705 = vmatprep.subr.mxu0 0.0
  %2706 = vmatpush2.msra.mxu0 0.0
  %2707 = vmatprep.subr.mxu0 0.0
  %2708 = vmatpush2.msra.mxu0 0.0
  %2709 = vmatprep.subr.mxu0 0.0
  %2710 = vmatpush2.msra.mxu0 0.0
  %2711 = vmatprep.subr.mxu0 0.0
  %2712 = vmatpush2.msra.mxu0 0.0
  %2713 = vmatprep.subr.mxu0 0.0
  %2714 = vmatpush2.msra.mxu0 0.0
  %2715 = vmatprep.subr.mxu0 0.0
  %2716 = vmatpush2.msra.mxu0 0.0
  %2717 = vmatprep.subr.mxu0 0.0
  %2718 = vmatpush2.msra.mxu0 0.0
  %2719 = vmatprep.subr.mxu0 0.0
  %2720 = vmatpush2.msra.mxu0 0.0
  %2721 = vmatprep.subr.mxu0 0.0
  %2722 = vmatpush2.msra.mxu0 0.0
  %2723 = vmatprep.subr.mxu0 0.0
  %2724 = vmatpush2.msra.mxu0 0.0
  %2725 = vmatprep.subr.mxu0 0.0
  %2726 = vmatpush2.msra.mxu0 0.0
  %2727 = vmatprep.subr.mxu0 0.0
  %2728 = vmatpush2.msra.mxu0 0.0
  %2729 = vmatprep.subr.mxu0 0.0
  %2730 = vmatpush2.msra.mxu0 0.0
  %2731 = vmatprep.subr.mxu0 0.0
  %2732 = vmatpush2.msra.mxu0 0.0
  %2733 = vmatprep.mubr.f32.mxu0 0.0
  %2734 = vmatmul.mubr.f32.gmra.mxu0 %v2667
  %v2735 = vpop.f32.mrf.mxu0
  %v2736 = vadd.f32 %v2663, %v2735
  %v2737 = vpop.f32.mrf.mxu0
  %v2738 = vadd.f32 %v2664, %v2737
  %2739 = vdwg.mxu0
  %v2740 = vxor.u32 %v2736, 2147483648
  %v2741 = vmul.f32 %v2740, 1.442695
  %v2742 = vpow.pop %v2741
  %v2743 = vadd.f32 %v2742, 1.0
  %v2744 = vrcp.pop %v2743
  %v2745 = vmul.f32 1.0, %v2744
  %v2746 = vmul.f32 %v2745, %v2738
  %2748 = vrot.lane.b32.xlu0 %v2746, 64
  %v2749 = vpop.permute.xlu0 %2748
  %v2751 = vadd.f32 %v2738, %v2749
  %v2752 = vtanh.pop %v2751
  %v2753 = vsub.f32 1.0, %v2745
  %v2754 = vmul.f32 %v2753, %v2752
  %v2755 = vmul.f32 %v2745, %v2659
  %v2756 = vadd.f32 %v2754, %v2755
  %2758 = vrot.lane.b32.xlu0 %v2756, 64
  %v2759 = vpop.permute.xlu0 %2758
  %v2760 = vrot.slane %v2237, 5
  %v2761 = vrot.slane %v2238, 5
  %v2764 = vsel %vm2215, %v2759, 0
  %2766 = vmatprep.subr.mxu0 0.0
  %2767 = vmatpush1.msra.mxu0 0.0
  %2768 = vmatprep.subr.mxu0 0.0
  %2769 = vmatpush1.msra.mxu0 0.0
  %2770 = vmatprep.subr.mxu0 0.0
  %2771 = vmatpush1.msra.mxu0 0.0
  %2772 = vmatprep.subr.mxu0 0.0
  %2773 = vmatpush1.msra.mxu0 0.0
  %2774 = vmatprep.subr.mxu0 0.0
  %2775 = vmatpush1.msra.mxu0 0.0
  %2776 = vmatprep.subr.mxu0 0.0
  %2777 = vmatpush1.msra.mxu0 0.0
  %2778 = vmatprep.subr.mxu0 0.0
  %2779 = vmatpush1.msra.mxu0 0.0
  %2780 = vmatprep.subr.mxu0 0.0
  %2781 = vmatpush1.msra.mxu0 0.0
  %2782 = vmatprep.subr.mxu0 %v2258
  %2783 = vmatpush1.msra.mxu0 %v2257
  %2784 = vmatprep.subr.mxu0 %v2256
  %2785 = vmatpush1.msra.mxu0 %v2255
  %2786 = vmatprep.subr.mxu0 %v2254
  %2787 = vmatpush1.msra.mxu0 %v2253
  %2788 = vmatprep.subr.mxu0 %v2252
  %2789 = vmatpush1.msra.mxu0 %v2251
  %2790 = vmatprep.subr.mxu0 %v2250
  %2791 = vmatpush1.msra.mxu0 %v2249
  %2792 = vmatprep.subr.mxu0 %v2248
  %2793 = vmatpush1.msra.mxu0 %v2247
  %2794 = vmatprep.subr.mxu0 %v2246
  %2795 = vmatpush1.msra.mxu0 %v2245
  %2796 = vmatprep.subr.mxu0 %v2244
  %2797 = vmatpush1.msra.mxu0 %v2243
  %2798 = vmatprep.subr.mxu0 0.0
  %2799 = vmatpush2.msra.mxu0 0.0
  %2800 = vmatprep.subr.mxu0 0.0
  %2801 = vmatpush2.msra.mxu0 0.0
  %2802 = vmatprep.subr.mxu0 0.0
  %2803 = vmatpush2.msra.mxu0 0.0
  %2804 = vmatprep.subr.mxu0 0.0
  %2805 = vmatpush2.msra.mxu0 0.0
  %2806 = vmatprep.subr.mxu0 0.0
  %2807 = vmatpush2.msra.mxu0 0.0
  %2808 = vmatprep.subr.mxu0 0.0
  %2809 = vmatpush2.msra.mxu0 0.0
  %2810 = vmatprep.subr.mxu0 0.0
  %2811 = vmatpush2.msra.mxu0 0.0
  %2812 = vmatprep.subr.mxu0 0.0
  %2813 = vmatpush2.msra.mxu0 0.0
  %2814 = vmatprep.subr.mxu0 0.0
  %2815 = vmatpush2.msra.mxu0 0.0
  %2816 = vmatprep.subr.mxu0 0.0
  %2817 = vmatpush2.msra.mxu0 0.0
  %2818 = vmatprep.subr.mxu0 0.0
  %2819 = vmatpush2.msra.mxu0 0.0
  %2820 = vmatprep.subr.mxu0 0.0
  %2821 = vmatpush2.msra.mxu0 0.0
  %2822 = vmatprep.subr.mxu0 0.0
  %2823 = vmatpush2.msra.mxu0 0.0
  %2824 = vmatprep.subr.mxu0 0.0
  %2825 = vmatpush2.msra.mxu0 0.0
  %2826 = vmatprep.subr.mxu0 0.0
  %2827 = vmatpush2.msra.mxu0 0.0
  %2828 = vmatprep.subr.mxu0 0.0
  %2829 = vmatpush2.msra.mxu0 0.0
  %2830 = vmatprep.mubr.f32.mxu0 0.0
  %2831 = vmatmul.mubr.f32.gmra.mxu0 %v2764
  %v2832 = vpop.f32.mrf.mxu0
  %v2833 = vadd.f32 %v2760, %v2832
  %v2834 = vpop.f32.mrf.mxu0
  %v2835 = vadd.f32 %v2761, %v2834
  %2836 = vdwg.mxu0
  %v2837 = vxor.u32 %v2833, 2147483648
  %v2838 = vmul.f32 %v2837, 1.442695
  %v2839 = vpow.pop %v2838
  %v2840 = vadd.f32 %v2839, 1.0
  %v2841 = vrcp.pop %v2840
  %v2842 = vmul.f32 1.0, %v2841
  %v2843 = vmul.f32 %v2842, %v2835
  %2845 = vrot.lane.b32.xlu0 %v2843, 64
  %v2846 = vpop.permute.xlu0 %2845
  %v2848 = vadd.f32 %v2835, %v2846
  %v2849 = vtanh.pop %v2848
  %v2850 = vsub.f32 1.0, %v2842
  %v2851 = vmul.f32 %v2850, %v2849
  %v2852 = vmul.f32 %v2842, %v2756
  %v2853 = vadd.f32 %v2851, %v2852
  %2855 = vrot.lane.b32.xlu0 %v2853, 64
  %v2856 = vpop.permute.xlu0 %2855
  %v2857 = vrot.slane %v2237, 6
  %v2858 = vrot.slane %v2238, 6
  %v2861 = vsel %vm2215, %v2856, 0
  %2863 = vmatprep.subr.mxu0 0.0
  %2864 = vmatpush1.msra.mxu0 0.0
  %2865 = vmatprep.subr.mxu0 0.0
  %2866 = vmatpush1.msra.mxu0 0.0
  %2867 = vmatprep.subr.mxu0 0.0
  %2868 = vmatpush1.msra.mxu0 0.0
  %2869 = vmatprep.subr.mxu0 0.0
  %2870 = vmatpush1.msra.mxu0 0.0
  %2871 = vmatprep.subr.mxu0 0.0
  %2872 = vmatpush1.msra.mxu0 0.0
  %2873 = vmatprep.subr.mxu0 0.0
  %2874 = vmatpush1.msra.mxu0 0.0
  %2875 = vmatprep.subr.mxu0 0.0
  %2876 = vmatpush1.msra.mxu0 0.0
  %2877 = vmatprep.subr.mxu0 0.0
  %2878 = vmatpush1.msra.mxu0 0.0
  %2879 = vmatprep.subr.mxu0 %v2258
  %2880 = vmatpush1.msra.mxu0 %v2257
  %2881 = vmatprep.subr.mxu0 %v2256
  %2882 = vmatpush1.msra.mxu0 %v2255
  %2883 = vmatprep.subr.mxu0 %v2254
  %2884 = vmatpush1.msra.mxu0 %v2253
  %2885 = vmatprep.subr.mxu0 %v2252
  %2886 = vmatpush1.msra.mxu0 %v2251
  %2887 = vmatprep.subr.mxu0 %v2250
  %2888 = vmatpush1.msra.mxu0 %v2249
  %2889 = vmatprep.subr.mxu0 %v2248
  %2890 = vmatpush1.msra.mxu0 %v2247
  %2891 = vmatprep.subr.mxu0 %v2246
  %2892 = vmatpush1.msra.mxu0 %v2245
  %2893 = vmatprep.subr.mxu0 %v2244
  %2894 = vmatpush1.msra.mxu0 %v2243
  %2895 = vmatprep.subr.mxu0 0.0
  %2896 = vmatpush2.msra.mxu0 0.0
  %2897 = vmatprep.subr.mxu0 0.0
  %2898 = vmatpush2.msra.mxu0 0.0
  %2899 = vmatprep.subr.mxu0 0.0
  %2900 = vmatpush2.msra.mxu0 0.0
  %2901 = vmatprep.subr.mxu0 0.0
  %2902 = vmatpush2.msra.mxu0 0.0
  %2903 = vmatprep.subr.mxu0 0.0
  %2904 = vmatpush2.msra.mxu0 0.0
  %2905 = vmatprep.subr.mxu0 0.0
  %2906 = vmatpush2.msra.mxu0 0.0
  %2907 = vmatprep.subr.mxu0 0.0
  %2908 = vmatpush2.msra.mxu0 0.0
  %2909 = vmatprep.subr.mxu0 0.0
  %2910 = vmatpush2.msra.mxu0 0.0
  %2911 = vmatprep.subr.mxu0 0.0
  %2912 = vmatpush2.msra.mxu0 0.0
  %2913 = vmatprep.subr.mxu0 0.0
  %2914 = vmatpush2.msra.mxu0 0.0
  %2915 = vmatprep.subr.mxu0 0.0
  %2916 = vmatpush2.msra.mxu0 0.0
  %2917 = vmatprep.subr.mxu0 0.0
  %2918 = vmatpush2.msra.mxu0 0.0
  %2919 = vmatprep.subr.mxu0 0.0
  %2920 = vmatpush2.msra.mxu0 0.0
  %2921 = vmatprep.subr.mxu0 0.0
  %2922 = vmatpush2.msra.mxu0 0.0
  %2923 = vmatprep.subr.mxu0 0.0
  %2924 = vmatpush2.msra.mxu0 0.0
  %2925 = vmatprep.subr.mxu0 0.0
  %2926 = vmatpush2.msra.mxu0 0.0
  %2927 = vmatprep.mubr.f32.mxu0 0.0
  %2928 = vmatmul.mubr.f32.gmra.mxu0 %v2861
  %v2929 = vpop.f32.mrf.mxu0
  %v2930 = vadd.f32 %v2857, %v2929
  %v2931 = vpop.f32.mrf.mxu0
  %v2932 = vadd.f32 %v2858, %v2931
  %2933 = vdwg.mxu0
  %v2934 = vxor.u32 %v2930, 2147483648
  %v2935 = vmul.f32 %v2934, 1.442695
  %v2936 = vpow.pop %v2935
  %v2937 = vadd.f32 %v2936, 1.0
  %v2938 = vrcp.pop %v2937
  %v2939 = vmul.f32 1.0, %v2938
  %v2940 = vmul.f32 %v2939, %v2932
  %2942 = vrot.lane.b32.xlu0 %v2940, 64
  %v2943 = vpop.permute.xlu0 %2942
  %v2945 = vadd.f32 %v2932, %v2943
  %v2946 = vtanh.pop %v2945
  %v2947 = vsub.f32 1.0, %v2939
  %v2948 = vmul.f32 %v2947, %v2946
  %v2949 = vmul.f32 %v2939, %v2853
  %v2950 = vadd.f32 %v2948, %v2949
  %2952 = vrot.lane.b32.xlu0 %v2950, 64
  %v2953 = vpop.permute.xlu0 %2952
  %v2954 = vrot.slane %v2237, 7
  %v2955 = vrot.slane %v2238, 7
  %v2958 = vsel %vm2215, %v2953, 0
  %2960 = vmatprep.subr.mxu0 0.0
  %2961 = vmatpush1.msra.mxu0 0.0
  %2962 = vmatprep.subr.mxu0 0.0
  %2963 = vmatpush1.msra.mxu0 0.0
  %2964 = vmatprep.subr.mxu0 0.0
  %2965 = vmatpush1.msra.mxu0 0.0
  %2966 = vmatprep.subr.mxu0 0.0
  %2967 = vmatpush1.msra.mxu0 0.0
  %2968 = vmatprep.subr.mxu0 0.0
  %2969 = vmatpush1.msra.mxu0 0.0
  %2970 = vmatprep.subr.mxu0 0.0
  %2971 = vmatpush1.msra.mxu0 0.0
  %2972 = vmatprep.subr.mxu0 0.0
  %2973 = vmatpush1.msra.mxu0 0.0
  %2974 = vmatprep.subr.mxu0 0.0
  %2975 = vmatpush1.msra.mxu0 0.0
  %2976 = vmatprep.subr.mxu0 %v2258
  %2977 = vmatpush1.msra.mxu0 %v2257
  %2978 = vmatprep.subr.mxu0 %v2256
  %2979 = vmatpush1.msra.mxu0 %v2255
  %2980 = vmatprep.subr.mxu0 %v2254
  %2981 = vmatpush1.msra.mxu0 %v2253
  %2982 = vmatprep.subr.mxu0 %v2252
  %2983 = vmatpush1.msra.mxu0 %v2251
  %2984 = vmatprep.subr.mxu0 %v2250
  %2985 = vmatpush1.msra.mxu0 %v2249
  %2986 = vmatprep.subr.mxu0 %v2248
  %2987 = vmatpush1.msra.mxu0 %v2247
  %2988 = vmatprep.subr.mxu0 %v2246
  %2989 = vmatpush1.msra.mxu0 %v2245
  %2990 = vmatprep.subr.mxu0 %v2244
  %2991 = vmatpush1.msra.mxu0 %v2243
  %2992 = vmatprep.subr.mxu0 0.0
  %2993 = vmatpush2.msra.mxu0 0.0
  %2994 = vmatprep.subr.mxu0 0.0
  %2995 = vmatpush2.msra.mxu0 0.0
  %2996 = vmatprep.subr.mxu0 0.0
  %2997 = vmatpush2.msra.mxu0 0.0
  %2998 = vmatprep.subr.mxu0 0.0
  %2999 = vmatpush2.msra.mxu0 0.0
  %3000 = vmatprep.subr.mxu0 0.0
  %3001 = vmatpush2.msra.mxu0 0.0
  %3002 = vmatprep.subr.mxu0 0.0
  %3003 = vmatpush2.msra.mxu0 0.0
  %3004 = vmatprep.subr.mxu0 0.0
  %3005 = vmatpush2.msra.mxu0 0.0
  %3006 = vmatprep.subr.mxu0 0.0
  %3007 = vmatpush2.msra.mxu0 0.0
  %3008 = vmatprep.subr.mxu0 0.0
  %3009 = vmatpush2.msra.mxu0 0.0
  %3010 = vmatprep.subr.mxu0 0.0
  %3011 = vmatpush2.msra.mxu0 0.0
  %3012 = vmatprep.subr.mxu0 0.0
  %3013 = vmatpush2.msra.mxu0 0.0
  %3014 = vmatprep.subr.mxu0 0.0
  %3015 = vmatpush2.msra.mxu0 0.0
  %3016 = vmatprep.subr.mxu0 0.0
  %3017 = vmatpush2.msra.mxu0 0.0
  %3018 = vmatprep.subr.mxu0 0.0
  %3019 = vmatpush2.msra.mxu0 0.0
  %3020 = vmatprep.subr.mxu0 0.0
  %3021 = vmatpush2.msra.mxu0 0.0
  %3022 = vmatprep.subr.mxu0 0.0
  %3023 = vmatpush2.msra.mxu0 0.0
  %3024 = vmatprep.mubr.f32.mxu0 0.0
  %3025 = vmatmul.mubr.f32.gmra.mxu0 %v2958
  %v3026 = vpop.f32.mrf.mxu0
  %v3027 = vadd.f32 %v2954, %v3026
  %v3028 = vpop.f32.mrf.mxu0
  %v3029 = vadd.f32 %v2955, %v3028
  %3030 = vdwg.mxu0
  %v3031 = vxor.u32 %v3027, 2147483648
  %v3032 = vmul.f32 %v3031, 1.442695
  %v3033 = vpow.pop %v3032
  %v3034 = vadd.f32 %v3033, 1.0
  %v3035 = vrcp.pop %v3034
  %v3036 = vmul.f32 1.0, %v3035
  %v3037 = vmul.f32 %v3036, %v3029
  %3039 = vrot.lane.b32.xlu0 %v3037, 64
  %v3040 = vpop.permute.xlu0 %3039
  %v3042 = vadd.f32 %v3029, %v3040
  %v3043 = vtanh.pop %v3042
  %v3044 = vsub.f32 1.0, %v3036
  %v3045 = vmul.f32 %v3044, %v3043
  %v3046 = vmul.f32 %v3036, %v2950
  %v3047 = vadd.f32 %v3045, %v3046
  %3049 = vrot.lane.b32.xlu0 %v3047, 64
  %v3050 = vpop.permute.xlu0 %3049
  %v3051 = vsel %vm2215, %v3050, 0
  %3053 = vmatprep.subr.mxu0 0.0
  %3054 = vmatpush1.msra.mxu0 0.0
  %3055 = vmatprep.subr.mxu0 0.0
  %3056 = vmatpush1.msra.mxu0 0.0
  %3057 = vmatprep.subr.mxu0 0.0
  %3058 = vmatpush1.msra.mxu0 0.0
  %3059 = vmatprep.subr.mxu0 0.0
  %3060 = vmatpush1.msra.mxu0 0.0
  %3061 = vmatprep.subr.mxu0 0.0
  %3062 = vmatpush1.msra.mxu0 0.0
  %3063 = vmatprep.subr.mxu0 0.0
  %3064 = vmatpush1.msra.mxu0 0.0
  %3065 = vmatprep.subr.mxu0 0.0
  %3066 = vmatpush1.msra.mxu0 0.0
  %3067 = vmatprep.subr.mxu0 0.0
  %3068 = vmatpush1.msra.mxu0 0.0
  %3069 = vmatprep.subr.mxu0 %v2258
  %3070 = vmatpush1.msra.mxu0 %v2257
  %3071 = vmatprep.subr.mxu0 %v2256
  %3072 = vmatpush1.msra.mxu0 %v2255
  %3073 = vmatprep.subr.mxu0 %v2254
  %3074 = vmatpush1.msra.mxu0 %v2253
  %3075 = vmatprep.subr.mxu0 %v2252
  %3076 = vmatpush1.msra.mxu0 %v2251
  %3077 = vmatprep.subr.mxu0 %v2250
  %3078 = vmatpush1.msra.mxu0 %v2249
  %3079 = vmatprep.subr.mxu0 %v2248
  %3080 = vmatpush1.msra.mxu0 %v2247
  %3081 = vmatprep.subr.mxu0 %v2246
  %3082 = vmatpush1.msra.mxu0 %v2245
  %3083 = vmatprep.subr.mxu0 %v2244
  %3084 = vmatpush1.msra.mxu0 %v2243
  %3085 = vmatprep.subr.mxu0 0.0
  %3086 = vmatpush2.msra.mxu0 0.0
  %3087 = vmatprep.subr.mxu0 0.0
  %3088 = vmatpush2.msra.mxu0 0.0
  %3089 = vmatprep.subr.mxu0 0.0
  %3090 = vmatpush2.msra.mxu0 0.0
  %3091 = vmatprep.subr.mxu0 0.0
  %3092 = vmatpush2.msra.mxu0 0.0
  %3093 = vmatprep.subr.mxu0 0.0
  %3094 = vmatpush2.msra.mxu0 0.0
  %3095 = vmatprep.subr.mxu0 0.0
  %3096 = vmatpush2.msra.mxu0 0.0
  %3097 = vmatprep.subr.mxu0 0.0
  %3098 = vmatpush2.msra.mxu0 0.0
  %3099 = vmatprep.subr.mxu0 0.0
  %3100 = vmatpush2.msra.mxu0 0.0
  %3101 = vmatprep.subr.mxu0 0.0
  %3102 = vmatpush2.msra.mxu0 0.0
  %3103 = vmatprep.subr.mxu0 0.0
  %3104 = vmatpush2.msra.mxu0 0.0
  %3105 = vmatprep.subr.mxu0 0.0
  %3106 = vmatpush2.msra.mxu0 0.0
  %3107 = vmatprep.subr.mxu0 0.0
  %3108 = vmatpush2.msra.mxu0 0.0
  %3109 = vmatprep.subr.mxu0 0.0
  %3110 = vmatpush2.msra.mxu0 0.0
  %3111 = vmatprep.subr.mxu0 0.0
  %3112 = vmatpush2.msra.mxu0 0.0
  %3113 = vmatprep.subr.mxu0 0.0
  %3114 = vmatpush2.msra.mxu0 0.0
  %3115 = vmatprep.subr.mxu0 0.0
  %3116 = vmatpush2.msra.mxu0 0.0
  %3117 = vmatprep.mubr.f32.mxu0 0.0
  %3118 = vmatmul.mubr.f32.gmra.mxu0 %v3051
  %v3119 = vpop.f32.mrf.mxu0
  %v3120 = vadd.f32 %v2241, %v3119
  %v3121 = vpop.f32.mrf.mxu0
  %v3122 = vadd.f32 %v2242, %v3121
  %3123 = vdwg.mxu0
  %v3124 = vxor.u32 %v3120, 2147483648
  %v3125 = vmul.f32 %v3124, 1.442695
  %v3126 = vpow.pop %v3125
  %v3127 = vadd.f32 %v3126, 1.0
  %v3128 = vrcp.pop %v3127
  %v3129 = vmul.f32 1.0, %v3128
  %v3130 = vmul.f32 %v3129, %v3122
  %3132 = vrot.lane.b32.xlu0 %v3130, 64
  %v3133 = vpop.permute.xlu0 %3132
  %v3135 = vadd.f32 %v3122, %v3133
  %v3136 = vtanh.pop %v3135
  %v3137 = vsub.f32 1.0, %v3129
  %v3138 = vmul.f32 %v3137, %v3136
  %v3139 = vmul.f32 %v3129, %v3047
  %v3140 = vadd.f32 %v3138, %v3139
  %3142 = vrot.lane.b32.xlu0 %v3140, 64
  %v3143 = vpop.permute.xlu0 %3142
  %v3146 = vrot.slane %v2241, 1
  %v3147 = vrot.slane %v2242, 1
  %v3150 = vsel %vm2215, %v3143, 0
  %3152 = vmatprep.subr.mxu0 0.0
  %3153 = vmatpush1.msra.mxu0 0.0
  %3154 = vmatprep.subr.mxu0 0.0
  %3155 = vmatpush1.msra.mxu0 0.0
  %3156 = vmatprep.subr.mxu0 0.0
  %3157 = vmatpush1.msra.mxu0 0.0
  %3158 = vmatprep.subr.mxu0 0.0
  %3159 = vmatpush1.msra.mxu0 0.0
  %3160 = vmatprep.subr.mxu0 0.0
  %3161 = vmatpush1.msra.mxu0 0.0
  %3162 = vmatprep.subr.mxu0 0.0
  %3163 = vmatpush1.msra.mxu0 0.0
  %3164 = vmatprep.subr.mxu0 0.0
  %3165 = vmatpush1.msra.mxu0 0.0
  %3166 = vmatprep.subr.mxu0 0.0
  %3167 = vmatpush1.msra.mxu0 0.0
  %3168 = vmatprep.subr.mxu0 %v2258
  %3169 = vmatpush1.msra.mxu0 %v2257
  %3170 = vmatprep.subr.mxu0 %v2256
  %3171 = vmatpush1.msra.mxu0 %v2255
  %3172 = vmatprep.subr.mxu0 %v2254
  %3173 = vmatpush1.msra.mxu0 %v2253
  %3174 = vmatprep.subr.mxu0 %v2252
  %3175 = vmatpush1.msra.mxu0 %v2251
  %3176 = vmatprep.subr.mxu0 %v2250
  %3177 = vmatpush1.msra.mxu0 %v2249
  %3178 = vmatprep.subr.mxu0 %v2248
  %3179 = vmatpush1.msra.mxu0 %v2247
  %3180 = vmatprep.subr.mxu0 %v2246
  %3181 = vmatpush1.msra.mxu0 %v2245
  %3182 = vmatprep.subr.mxu0 %v2244
  %3183 = vmatpush1.msra.mxu0 %v2243
  %3184 = vmatprep.subr.mxu0 0.0
  %3185 = vmatpush2.msra.mxu0 0.0
  %3186 = vmatprep.subr.mxu0 0.0
  %3187 = vmatpush2.msra.mxu0 0.0
  %3188 = vmatprep.subr.mxu0 0.0
  %3189 = vmatpush2.msra.mxu0 0.0
  %3190 = vmatprep.subr.mxu0 0.0
  %3191 = vmatpush2.msra.mxu0 0.0
  %3192 = vmatprep.subr.mxu0 0.0
  %3193 = vmatpush2.msra.mxu0 0.0
  %3194 = vmatprep.subr.mxu0 0.0
  %3195 = vmatpush2.msra.mxu0 0.0
  %3196 = vmatprep.subr.mxu0 0.0
  %3197 = vmatpush2.msra.mxu0 0.0
  %3198 = vmatprep.subr.mxu0 0.0
  %3199 = vmatpush2.msra.mxu0 0.0
  %3200 = vmatprep.subr.mxu0 0.0
  %3201 = vmatpush2.msra.mxu0 0.0
  %3202 = vmatprep.subr.mxu0 0.0
  %3203 = vmatpush2.msra.mxu0 0.0
  %3204 = vmatprep.subr.mxu0 0.0
  %3205 = vmatpush2.msra.mxu0 0.0
  %3206 = vmatprep.subr.mxu0 0.0
  %3207 = vmatpush2.msra.mxu0 0.0
  %3208 = vmatprep.subr.mxu0 0.0
  %3209 = vmatpush2.msra.mxu0 0.0
  %3210 = vmatprep.subr.mxu0 0.0
  %3211 = vmatpush2.msra.mxu0 0.0
  %3212 = vmatprep.subr.mxu0 0.0
  %3213 = vmatpush2.msra.mxu0 0.0
  %3214 = vmatprep.subr.mxu0 0.0
  %3215 = vmatpush2.msra.mxu0 0.0
  %3216 = vmatprep.mubr.f32.mxu0 0.0
  %3217 = vmatmul.mubr.f32.gmra.mxu0 %v3150
  %v3218 = vpop.f32.mrf.mxu0
  %v3219 = vadd.f32 %v3146, %v3218
  %v3220 = vpop.f32.mrf.mxu0
  %v3221 = vadd.f32 %v3147, %v3220
  %3222 = vdwg.mxu0
  %v3223 = vxor.u32 %v3219, 2147483648
  %v3224 = vmul.f32 %v3223, 1.442695
  %v3225 = vpow.pop %v3224
  %v3226 = vadd.f32 %v3225, 1.0
  %v3227 = vrcp.pop %v3226
  %v3228 = vmul.f32 1.0, %v3227
  %v3229 = vmul.f32 %v3228, %v3221
  %3231 = vrot.lane.b32.xlu0 %v3229, 64
  %v3232 = vpop.permute.xlu0 %3231
  %v3234 = vadd.f32 %v3221, %v3232
  %v3235 = vtanh.pop %v3234
  %v3236 = vsub.f32 1.0, %v3228
  %v3237 = vmul.f32 %v3236, %v3235
  %v3238 = vmul.f32 %v3228, %v3140
  %v3239 = vadd.f32 %v3237, %v3238
  %3241 = vrot.lane.b32.xlu0 %v3239, 64
  %v3242 = vpop.permute.xlu0 %3241
  %v3243 = vrot.slane %v2241, 2
  %v3244 = vrot.slane %v2242, 2
  %v3247 = vsel %vm2215, %v3242, 0
  %3249 = vmatprep.subr.mxu0 0.0
  %3250 = vmatpush1.msra.mxu0 0.0
  %3251 = vmatprep.subr.mxu0 0.0
  %3252 = vmatpush1.msra.mxu0 0.0
  %3253 = vmatprep.subr.mxu0 0.0
  %3254 = vmatpush1.msra.mxu0 0.0
  %3255 = vmatprep.subr.mxu0 0.0
  %3256 = vmatpush1.msra.mxu0 0.0
  %3257 = vmatprep.subr.mxu0 0.0
  %3258 = vmatpush1.msra.mxu0 0.0
  %3259 = vmatprep.subr.mxu0 0.0
  %3260 = vmatpush1.msra.mxu0 0.0
  %3261 = vmatprep.subr.mxu0 0.0
  %3262 = vmatpush1.msra.mxu0 0.0
  %3263 = vmatprep.subr.mxu0 0.0
  %3264 = vmatpush1.msra.mxu0 0.0
  %3265 = vmatprep.subr.mxu0 %v2258
  %3266 = vmatpush1.msra.mxu0 %v2257
  %3267 = vmatprep.subr.mxu0 %v2256
  %3268 = vmatpush1.msra.mxu0 %v2255
  %3269 = vmatprep.subr.mxu0 %v2254
  %3270 = vmatpush1.msra.mxu0 %v2253
  %3271 = vmatprep.subr.mxu0 %v2252
  %3272 = vmatpush1.msra.mxu0 %v2251
  %3273 = vmatprep.subr.mxu0 %v2250
  %3274 = vmatpush1.msra.mxu0 %v2249
  %3275 = vmatprep.subr.mxu0 %v2248
  %3276 = vmatpush1.msra.mxu0 %v2247
  %3277 = vmatprep.subr.mxu0 %v2246
  %3278 = vmatpush1.msra.mxu0 %v2245
  %3279 = vmatprep.subr.mxu0 %v2244
  %3280 = vmatpush1.msra.mxu0 %v2243
  %3281 = vmatprep.subr.mxu0 0.0
  %3282 = vmatpush2.msra.mxu0 0.0
  %3283 = vmatprep.subr.mxu0 0.0
  %3284 = vmatpush2.msra.mxu0 0.0
  %3285 = vmatprep.subr.mxu0 0.0
  %3286 = vmatpush2.msra.mxu0 0.0
  %3287 = vmatprep.subr.mxu0 0.0
  %3288 = vmatpush2.msra.mxu0 0.0
  %3289 = vmatprep.subr.mxu0 0.0
  %3290 = vmatpush2.msra.mxu0 0.0
  %3291 = vmatprep.subr.mxu0 0.0
  %3292 = vmatpush2.msra.mxu0 0.0
  %3293 = vmatprep.subr.mxu0 0.0
  %3294 = vmatpush2.msra.mxu0 0.0
  %3295 = vmatprep.subr.mxu0 0.0
  %3296 = vmatpush2.msra.mxu0 0.0
  %3297 = vmatprep.subr.mxu0 0.0
  %3298 = vmatpush2.msra.mxu0 0.0
  %3299 = vmatprep.subr.mxu0 0.0
  %3300 = vmatpush2.msra.mxu0 0.0
  %3301 = vmatprep.subr.mxu0 0.0
  %3302 = vmatpush2.msra.mxu0 0.0
  %3303 = vmatprep.subr.mxu0 0.0
  %3304 = vmatpush2.msra.mxu0 0.0
  %3305 = vmatprep.subr.mxu0 0.0
  %3306 = vmatpush2.msra.mxu0 0.0
  %3307 = vmatprep.subr.mxu0 0.0
  %3308 = vmatpush2.msra.mxu0 0.0
  %3309 = vmatprep.subr.mxu0 0.0
  %3310 = vmatpush2.msra.mxu0 0.0
  %3311 = vmatprep.subr.mxu0 0.0
  %3312 = vmatpush2.msra.mxu0 0.0
  %3313 = vmatprep.mubr.f32.mxu0 0.0
  %3314 = vmatmul.mubr.f32.gmra.mxu0 %v3247
  %v3315 = vpop.f32.mrf.mxu0
  %v3316 = vadd.f32 %v3243, %v3315
  %v3317 = vpop.f32.mrf.mxu0
  %v3318 = vadd.f32 %v3244, %v3317
  %3319 = vdwg.mxu0
  %v3320 = vxor.u32 %v3316, 2147483648
  %v3321 = vmul.f32 %v3320, 1.442695
  %v3322 = vpow.pop %v3321
  %v3323 = vadd.f32 %v3322, 1.0
  %v3324 = vrcp.pop %v3323
  %v3325 = vmul.f32 1.0, %v3324
  %v3326 = vmul.f32 %v3325, %v3318
  %3328 = vrot.lane.b32.xlu0 %v3326, 64
  %v3329 = vpop.permute.xlu0 %3328
  %v3331 = vadd.f32 %v3318, %v3329
  %v3332 = vtanh.pop %v3331
  %v3333 = vsub.f32 1.0, %v3325
  %v3334 = vmul.f32 %v3333, %v3332
  %v3335 = vmul.f32 %v3325, %v3239
  %v3336 = vadd.f32 %v3334, %v3335
  %3338 = vrot.lane.b32.xlu0 %v3336, 64
  %v3339 = vpop.permute.xlu0 %3338
  %v3340 = vrot.slane %v2241, 3
  %v3341 = vrot.slane %v2242, 3
  %v3344 = vsel %vm2215, %v3339, 0
  %3346 = vmatprep.subr.mxu0 0.0
  %3347 = vmatpush1.msra.mxu0 0.0
  %3348 = vmatprep.subr.mxu0 0.0
  %3349 = vmatpush1.msra.mxu0 0.0
  %3350 = vmatprep.subr.mxu0 0.0
  %3351 = vmatpush1.msra.mxu0 0.0
  %3352 = vmatprep.subr.mxu0 0.0
  %3353 = vmatpush1.msra.mxu0 0.0
  %3354 = vmatprep.subr.mxu0 0.0
  %3355 = vmatpush1.msra.mxu0 0.0
  %3356 = vmatprep.subr.mxu0 0.0
  %3357 = vmatpush1.msra.mxu0 0.0
  %3358 = vmatprep.subr.mxu0 0.0
  %3359 = vmatpush1.msra.mxu0 0.0
  %3360 = vmatprep.subr.mxu0 0.0
  %3361 = vmatpush1.msra.mxu0 0.0
  %3362 = vmatprep.subr.mxu0 %v2258
  %3363 = vmatpush1.msra.mxu0 %v2257
  %3364 = vmatprep.subr.mxu0 %v2256
  %3365 = vmatpush1.msra.mxu0 %v2255
  %3366 = vmatprep.subr.mxu0 %v2254
  %3367 = vmatpush1.msra.mxu0 %v2253
  %3368 = vmatprep.subr.mxu0 %v2252
  %3369 = vmatpush1.msra.mxu0 %v2251
  %3370 = vmatprep.subr.mxu0 %v2250
  %3371 = vmatpush1.msra.mxu0 %v2249
  %3372 = vmatprep.subr.mxu0 %v2248
  %3373 = vmatpush1.msra.mxu0 %v2247
  %3374 = vmatprep.subr.mxu0 %v2246
  %3375 = vmatpush1.msra.mxu0 %v2245
  %3376 = vmatprep.subr.mxu0 %v2244
  %3377 = vmatpush1.msra.mxu0 %v2243
  %3378 = vmatprep.subr.mxu0 0.0
  %3379 = vmatpush2.msra.mxu0 0.0
  %3380 = vmatprep.subr.mxu0 0.0
  %3381 = vmatpush2.msra.mxu0 0.0
  %3382 = vmatprep.subr.mxu0 0.0
  %3383 = vmatpush2.msra.mxu0 0.0
  %3384 = vmatprep.subr.mxu0 0.0
  %3385 = vmatpush2.msra.mxu0 0.0
  %3386 = vmatprep.subr.mxu0 0.0
  %3387 = vmatpush2.msra.mxu0 0.0
  %3388 = vmatprep.subr.mxu0 0.0
  %3389 = vmatpush2.msra.mxu0 0.0
  %3390 = vmatprep.subr.mxu0 0.0
  %3391 = vmatpush2.msra.mxu0 0.0
  %3392 = vmatprep.subr.mxu0 0.0
  %3393 = vmatpush2.msra.mxu0 0.0
  %3394 = vmatprep.subr.mxu0 0.0
  %3395 = vmatpush2.msra.mxu0 0.0
  %3396 = vmatprep.subr.mxu0 0.0
  %3397 = vmatpush2.msra.mxu0 0.0
  %3398 = vmatprep.subr.mxu0 0.0
  %3399 = vmatpush2.msra.mxu0 0.0
  %3400 = vmatprep.subr.mxu0 0.0
  %3401 = vmatpush2.msra.mxu0 0.0
  %3402 = vmatprep.subr.mxu0 0.0
  %3403 = vmatpush2.msra.mxu0 0.0
  %3404 = vmatprep.subr.mxu0 0.0
  %3405 = vmatpush2.msra.mxu0 0.0
  %3406 = vmatprep.subr.mxu0 0.0
  %3407 = vmatpush2.msra.mxu0 0.0
  %3408 = vmatprep.subr.mxu0 0.0
  %3409 = vmatpush2.msra.mxu0 0.0
  %3410 = vmatprep.mubr.f32.mxu0 0.0
  %3411 = vmatmul.mubr.f32.gmra.mxu0 %v3344
  %v3412 = vpop.f32.mrf.mxu0
  %v3413 = vadd.f32 %v3340, %v3412
  %v3414 = vpop.f32.mrf.mxu0
  %v3415 = vadd.f32 %v3341, %v3414
  %3416 = vdwg.mxu0
  %v3417 = vxor.u32 %v3413, 2147483648
  %v3418 = vmul.f32 %v3417, 1.442695
  %v3419 = vpow.pop %v3418
  %v3420 = vadd.f32 %v3419, 1.0
  %v3421 = vrcp.pop %v3420
  %v3422 = vmul.f32 1.0, %v3421
  %v3423 = vmul.f32 %v3422, %v3415
  %3425 = vrot.lane.b32.xlu0 %v3423, 64
  %v3426 = vpop.permute.xlu0 %3425
  %v3428 = vadd.f32 %v3415, %v3426
  %v3429 = vtanh.pop %v3428
  %v3430 = vsub.f32 1.0, %v3422
  %v3431 = vmul.f32 %v3430, %v3429
  %v3432 = vmul.f32 %v3422, %v3336
  %v3433 = vadd.f32 %v3431, %v3432
  %3436 = vrot.lane.b32.xlu0 %v3433, 64
  %v3437 = vpop.permute.xlu0 %3436
  %v3439 = vsel %vm2262, %v3339, %v3437
  %vm3440 = vcmask 516096
  %3441 = vst.msk [vmem:[%s13] sm:$0x1] %vm3440, %v3439
  %v3442 = vrot.slane %v2562, 7
  %v3444 = vrot.slane %v2659, 6
  %v3446 = vrot.slane %v2756, 5
  %v3448 = vrot.slane %v2853, 4
  %v3450 = vrot.slane %v2950, 3
  %v3452 = vrot.slane %v3047, 2
  %v3454 = vrot.slane %v3140, 1
  %v3456 = vrot.slane %v3336, 7
  %v3459 = vrot.slane %v3439, 6
  %3460 = vrot.lane.b32.xlu0 %v3459, 64
  %v3461 = vpop.permute.xlu0 %3460
  %vm3463 = vcmask 1040384
  %v3464 = vsel %vm3463, %v2465, %v3442
  %v3465 = vsel %vm1035, %v3464, %v3444
  %v3466 = vsel %vm1205, %v3465, %v3446
  %vm3467 = vcmask 1043456
  %v3468 = vsel %vm3467, %v3466, %v3448
  %v3469 = vsel %vm1358, %v3468, %v3450
  %vm3470 = vcmask 1045504
  %v3471 = vsel %vm3470, %v3469, %v3452
  %v3472 = vsel %vm1382, %v3471, %v3454
  %v3473 = vsel %vm3463, %v3239, %v3456
  %v3474 = vsel %vm1035, %v3473, %v3461
  %v3475 = vld [vmem:[%s8] sm:$0xff]
  %v3476 = vld [vmem:[%s8 + $0x8] sm:$0xff]
  %v3477 = vld [vmem:[%s8 + $0x10] sm:$0xff]
  %v3478 = vld [vmem:[%s8 + $0x18] sm:$0xff]
  %v3479 = vld [vmem:[%s9] sm:$0x1]
  %v3481 = vlaneseq
  %v3482 = vshrl.u32 %v3481, 7
  %v3483 = vsub.s32 0, %v3482
  %v3484 = vrot.slane %v3479, %v3483
  %3488 = vrot.lane.b32.xlu0 %v3472, 32
  %v3489 = vpop.permute.xlu0 %3488
  %3490 = vrot.lane.b32.xlu0 %v3474, 32
  %v3491 = vpop.permute.xlu0 %3490
  %v3492 = vsel %vm1549, %v3489, 0
  %v3494 = vsel %vm1549, %v3491, 0
  %3496 = vmatprep.subr.mxu0 0.0
  %3497 = vmatpush1.msra.mxu0 0.0
  %3498 = vmatprep.subr.mxu0 0.0
  %3499 = vmatpush1.msra.mxu0 0.0
  %3500 = vmatprep.subr.mxu0 0.0
  %3501 = vmatpush1.msra.mxu0 0.0
  %3502 = vmatprep.subr.mxu0 0.0
  %3503 = vmatpush1.msra.mxu0 0.0
  %3504 = vmatprep.subr.mxu0 0.0
  %3505 = vmatpush1.msra.mxu0 0.0
  %3506 = vmatprep.subr.mxu0 0.0
  %3507 = vmatpush1.msra.mxu0 0.0
  %3508 = vmatprep.subr.mxu0 0.0
  %3509 = vmatpush1.msra.mxu0 0.0
  %3510 = vmatprep.subr.mxu0 0.0
  %3511 = vmatpush1.msra.mxu0 0.0
  %3512 = vmatprep.subr.mxu0 0.0
  %3513 = vmatpush1.msra.mxu0 0.0
  %3514 = vmatprep.subr.mxu0 0.0
  %3515 = vmatpush1.msra.mxu0 0.0
  %3516 = vmatprep.subr.mxu0 0.0
  %3517 = vmatpush1.msra.mxu0 0.0
  %3518 = vmatprep.subr.mxu0 0.0
  %3519 = vmatpush1.msra.mxu0 0.0
  %3520 = vmatprep.subr.mxu0 0.0
  %3521 = vmatpush1.msra.mxu0 %v3478
  %3522 = vmatprep.subr.mxu0 0.0
  %3523 = vmatpush1.msra.mxu0 %v3477
  %3524 = vmatprep.subr.mxu0 0.0
  %3525 = vmatpush1.msra.mxu0 %v3476
  %3526 = vmatprep.subr.mxu0 0.0
  %3527 = vmatpush1.msra.mxu0 %v3475
  %3528 = vmatprep.subr.mxu0 0.0
  %3529 = vmatpush2.msra.mxu0 0.0
  %3530 = vmatprep.subr.mxu0 0.0
  %3531 = vmatpush2.msra.mxu0 0.0
  %3532 = vmatprep.subr.mxu0 0.0
  %3533 = vmatpush2.msra.mxu0 0.0
  %3534 = vmatprep.subr.mxu0 0.0
  %3535 = vmatpush2.msra.mxu0 0.0
  %3536 = vmatprep.subr.mxu0 0.0
  %3537 = vmatpush2.msra.mxu0 0.0
  %3538 = vmatprep.subr.mxu0 0.0
  %3539 = vmatpush2.msra.mxu0 0.0
  %3540 = vmatprep.subr.mxu0 0.0
  %3541 = vmatpush2.msra.mxu0 0.0
  %3542 = vmatprep.subr.mxu0 0.0
  %3543 = vmatpush2.msra.mxu0 0.0
  %3544 = vmatprep.subr.mxu0 0.0
  %3545 = vmatpush2.msra.mxu0 0.0
  %3546 = vmatprep.subr.mxu0 0.0
  %3547 = vmatpush2.msra.mxu0 0.0
  %3548 = vmatprep.subr.mxu0 0.0
  %3549 = vmatpush2.msra.mxu0 0.0
  %3550 = vmatprep.subr.mxu0 0.0
  %3551 = vmatpush2.msra.mxu0 0.0
  %3552 = vmatprep.subr.mxu0 0.0
  %3553 = vmatpush2.msra.mxu0 0.0
  %3554 = vmatprep.subr.mxu0 0.0
  %3555 = vmatpush2.msra.mxu0 0.0
  %3556 = vmatprep.subr.mxu0 0.0
  %3557 = vmatpush2.msra.mxu0 0.0
  %3558 = vmatprep.subr.mxu0 0.0
  %3559 = vmatpush2.msra.mxu0 0.0
  %3560 = vmatprep.mubr.f32.mxu0 0.0
  %3561 = vmatmul.mubr.f32.gmra.mxu0 %v3492
  %v3562 = vpop.f32.mrf.mxu0
  %v3563 = vadd.f32 %v3484, %v3562
  %v3564 = vpop.f32.mrf.mxu0
  %3565 = vmatprep.mubr.f32.mxu0 0.0
  %3566 = vmatmul.mubr.f32.gmra.mxu0 %v3494
  %v3567 = vpop.f32.mrf.mxu0
  %v3568 = vadd.f32 %v3484, %v3567
  %v3569 = vpop.f32.mrf.mxu0
  %3570 = vdwg.mxu0
  %v3571 = vtanh.pop %v3563
  %v3572 = vtanh.pop %v3568
  %3577 = vrot.lane.b32.xlu0 %v3475, 96
  %v3578 = vpop.permute.xlu0 %3577
  %3579 = vrot.lane.b32.xlu0 %v3476, 96
  %v3580 = vpop.permute.xlu0 %3579
  %3581 = vrot.lane.b32.xlu0 %v3477, 96
  %v3582 = vpop.permute.xlu0 %3581
  %3583 = vrot.lane.b32.xlu0 %v3478, 96
  %v3584 = vpop.permute.xlu0 %3583
  %3589 = vrot.lane.b32.xlu0 %v3484, 96
  %v3590 = vpop.permute.xlu0 %3589
  %v3593 = vsel %vm1549, %v3571, 0
  %v3596 = vsel %vm1549, %v3572, 0
  %3598 = vmatprep.subr.mxu0 0.0
  %3599 = vmatpush1.msra.mxu0 0.0
  %3600 = vmatprep.subr.mxu0 0.0
  %3601 = vmatpush1.msra.mxu0 0.0
  %3602 = vmatprep.subr.mxu0 0.0
  %3603 = vmatpush1.msra.mxu0 0.0
  %3604 = vmatprep.subr.mxu0 0.0
  %3605 = vmatpush1.msra.mxu0 0.0
  %3606 = vmatprep.subr.mxu0 0.0
  %3607 = vmatpush1.msra.mxu0 0.0
  %3608 = vmatprep.subr.mxu0 0.0
  %3609 = vmatpush1.msra.mxu0 0.0
  %3610 = vmatprep.subr.mxu0 0.0
  %3611 = vmatpush1.msra.mxu0 0.0
  %3612 = vmatprep.subr.mxu0 0.0
  %3613 = vmatpush1.msra.mxu0 0.0
  %3614 = vmatprep.subr.mxu0 0.0
  %3615 = vmatpush1.msra.mxu0 0.0
  %3616 = vmatprep.subr.mxu0 0.0
  %3617 = vmatpush1.msra.mxu0 0.0
  %3618 = vmatprep.subr.mxu0 0.0
  %3619 = vmatpush1.msra.mxu0 0.0
  %3620 = vmatprep.subr.mxu0 0.0
  %3621 = vmatpush1.msra.mxu0 0.0
  %3622 = vmatprep.subr.mxu0 0.0
  %3623 = vmatpush1.msra.mxu0 %v3584
  %3624 = vmatprep.subr.mxu0 0.0
  %3625 = vmatpush1.msra.mxu0 %v3582
  %3626 = vmatprep.subr.mxu0 0.0
  %3627 = vmatpush1.msra.mxu0 %v3580
  %3628 = vmatprep.subr.mxu0 0.0
  %3629 = vmatpush1.msra.mxu0 %v3578
  %3630 = vmatprep.subr.mxu0 0.0
  %3631 = vmatpush2.msra.mxu0 0.0
  %3632 = vmatprep.subr.mxu0 0.0
  %3633 = vmatpush2.msra.mxu0 0.0
  %3634 = vmatprep.subr.mxu0 0.0
  %3635 = vmatpush2.msra.mxu0 0.0
  %3636 = vmatprep.subr.mxu0 0.0
  %3637 = vmatpush2.msra.mxu0 0.0
  %3638 = vmatprep.subr.mxu0 0.0
  %3639 = vmatpush2.msra.mxu0 0.0
  %3640 = vmatprep.subr.mxu0 0.0
  %3641 = vmatpush2.msra.mxu0 0.0
  %3642 = vmatprep.subr.mxu0 0.0
  %3643 = vmatpush2.msra.mxu0 0.0
  %3644 = vmatprep.subr.mxu0 0.0
  %3645 = vmatpush2.msra.mxu0 0.0
  %3646 = vmatprep.subr.mxu0 0.0
  %3647 = vmatpush2.msra.mxu0 0.0
  %3648 = vmatprep.subr.mxu0 0.0
  %3649 = vmatpush2.msra.mxu0 0.0
  %3650 = vmatprep.subr.mxu0 0.0
  %3651 = vmatpush2.msra.mxu0 0.0
  %3652 = vmatprep.subr.mxu0 0.0
  %3653 = vmatpush2.msra.mxu0 0.0
  %3654 = vmatprep.subr.mxu0 0.0
  %3655 = vmatpush2.msra.mxu0 0.0
  %3656 = vmatprep.subr.mxu0 0.0
  %3657 = vmatpush2.msra.mxu0 0.0
  %3658 = vmatprep.subr.mxu0 0.0
  %3659 = vmatpush2.msra.mxu0 0.0
  %3660 = vmatprep.subr.mxu0 0.0
  %3661 = vmatpush2.msra.mxu0 0.0
  %3662 = vmatprep.mubr.f32.mxu0 0.0
  %3663 = vmatmul.mubr.f32.gmra.mxu0 %v3593
  %v3664 = vpop.f32.mrf.mxu0
  %v3665 = vadd.f32 %v3590, %v3664
  %v3666 = vpop.f32.mrf.mxu0
  %3667 = vmatprep.mubr.f32.mxu0 0.0
  %3668 = vmatmul.mubr.f32.gmra.mxu0 %v3596
  %v3669 = vpop.f32.mrf.mxu0
  %v3670 = vadd.f32 %v3590, %v3669
  %v3671 = vpop.f32.mrf.mxu0
  %3672 = vdwg.mxu0
  %vm3673 = vcmask 7168
  %v3674 = vsel %vm3673, %v3665, -inf
  %vm3675 = vcmask 2048
  %v3676 = vsel %vm3675, %v3670, -inf
  %v3677 = vmax.f32 %v3674, %v3676
  %v3678 = vrot.slane %v3677, 4
  %v3679 = vmax.f32 %v3677, %v3678
  %v3680 = vrot.slane %v3679, 2
  %v3681 = vmax.f32 %v3679, %v3680
  %v3682 = vrot.slane %v3681, 1
  %v3683 = vmax.f32 %v3681, %v3682
  %v3684 = vsub.f32 %v3665, %v3683
  %v3685 = vsub.f32 %v3670, %v3683
  %v3686 = vmul.f32 %v3684, 1.442695
  %v3687 = vpow.pop %v3686
  %v3688 = vmul.f32 %v3685, 1.442695
  %v3689 = vpow.pop %v3688
  %v3690 = vsel %vm3673, %v3687, 0.0
  %v3691 = vsel %vm3675, %v3689, 0.0
  %v3692 = vadd.f32 %v3690, %v3691
  %v3693 = vrot.slane %v3692, 4
  %v3694 = vadd.f32 %v3692, %v3693
  %v3695 = vrot.slane %v3694, 2
  %v3696 = vadd.f32 %v3694, %v3695
  %v3697 = vrot.slane %v3696, 1
  %v3698 = vadd.f32 %v3696, %v3697
  %v3699 = vrcp.pop %v3698
  %v3700 = vmul.f32 %v3687, %v3699
  %v3701 = vmul.f32 %v3689, %v3699
  %3703 = vset.pattern.permute.xlu0 0
  %3704 = vperm.xlu0 %3703, %v3700
  %v3705 = vpop.permute.xlu0 %3704
  %3708 = vset.pattern.permute.xlu0 0
  %3709 = vperm.xlu0 %3708, %v3701
  %v3710 = vpop.permute.xlu0 %3709
  %v3712 = vmul.f32 %v3705, %v3472
  %v3713 = vmul.f32 %v3710, %v3474
  %vm3714 = vcmask 1048320
  %v3715 = vsel %vm3714, %v3712, 0.0
  %vm3716 = vcmask 1043200
  %v3717 = vsel %vm3716, %v3713, 0.0
  %v3718 = vadd.f32 %v3715, %v3717
  %v3719 = vrot.slane %v3718, 4
  %v3720 = vadd.f32 %v3718, %v3719
  %v3721 = vrot.slane %v3720, 2
  %v3722 = vadd.f32 %v3720, %v3721
  %v3723 = vrot.slane %v3722, 1
  %v3724 = vadd.f32 %v3722, %v3723
  %3726 = vrot.lane.b32.xlu0 %v3724, 32
  %v3727 = vpop.permute.xlu0 %3726
  %3728 = vrot.lane.b32.xlu0 %v3475, 95
  %v3729 = vpop.permute.xlu0 %3728
  %3730 = vrot.lane.b32.xlu0 %v3476, 95
  %v3731 = vpop.permute.xlu0 %3730
  %3732 = vrot.lane.b32.xlu0 %v3477, 95
  %v3733 = vpop.permute.xlu0 %3732
  %3734 = vrot.lane.b32.xlu0 %v3478, 95
  %v3735 = vpop.permute.xlu0 %3734
  %3740 = vrot.lane.b32.xlu0 %v3484, 95
  %v3741 = vpop.permute.xlu0 %3740
  %v3743 = vsel %vm1549, %v3727, 0
  %3745 = vmatprep.subr.mxu0 0.0
  %3746 = vmatpush1.msra.mxu0 0.0
  %3747 = vmatprep.subr.mxu0 0.0
  %3748 = vmatpush1.msra.mxu0 0.0
  %3749 = vmatprep.subr.mxu0 0.0
  %3750 = vmatpush1.msra.mxu0 0.0
  %3751 = vmatprep.subr.mxu0 0.0
  %3752 = vmatpush1.msra.mxu0 0.0
  %3753 = vmatprep.subr.mxu0 0.0
  %3754 = vmatpush1.msra.mxu0 0.0
  %3755 = vmatprep.subr.mxu0 0.0
  %3756 = vmatpush1.msra.mxu0 0.0
  %3757 = vmatprep.subr.mxu0 0.0
  %3758 = vmatpush1.msra.mxu0 0.0
  %3759 = vmatprep.subr.mxu0 0.0
  %3760 = vmatpush1.msra.mxu0 0.0
  %3761 = vmatprep.subr.mxu0 0.0
  %3762 = vmatpush1.msra.mxu0 0.0
  %3763 = vmatprep.subr.mxu0 0.0
  %3764 = vmatpush1.msra.mxu0 0.0
  %3765 = vmatprep.subr.mxu0 0.0
  %3766 = vmatpush1.msra.mxu0 0.0
  %3767 = vmatprep.subr.mxu0 0.0
  %3768 = vmatpush1.msra.mxu0 0.0
  %3769 = vmatprep.subr.mxu0 0.0
  %3770 = vmatpush1.msra.mxu0 %v3735
  %3771 = vmatprep.subr.mxu0 0.0
  %3772 = vmatpush1.msra.mxu0 %v3733
  %3773 = vmatprep.subr.mxu0 0.0
  %3774 = vmatpush1.msra.mxu0 %v3731
  %3775 = vmatprep.subr.mxu0 0.0
  %3776 = vmatpush1.msra.mxu0 %v3729
  %3777 = vmatprep.subr.mxu0 0.0
  %3778 = vmatpush2.msra.mxu0 0.0
  %3779 = vmatprep.subr.mxu0 0.0
  %3780 = vmatpush2.msra.mxu0 0.0
  %3781 = vmatprep.subr.mxu0 0.0
  %3782 = vmatpush2.msra.mxu0 0.0
  %3783 = vmatprep.subr.mxu0 0.0
  %3784 = vmatpush2.msra.mxu0 0.0
  %3785 = vmatprep.subr.mxu0 0.0
  %3786 = vmatpush2.msra.mxu0 0.0
  %3787 = vmatprep.subr.mxu0 0.0
  %3788 = vmatpush2.msra.mxu0 0.0
  %3789 = vmatprep.subr.mxu0 0.0
  %3790 = vmatpush2.msra.mxu0 0.0
  %3791 = vmatprep.subr.mxu0 0.0
  %3792 = vmatpush2.msra.mxu0 0.0
  %3793 = vmatprep.subr.mxu0 0.0
  %3794 = vmatpush2.msra.mxu0 0.0
  %3795 = vmatprep.subr.mxu0 0.0
  %3796 = vmatpush2.msra.mxu0 0.0
  %3797 = vmatprep.subr.mxu0 0.0
  %3798 = vmatpush2.msra.mxu0 0.0
  %3799 = vmatprep.subr.mxu0 0.0
  %3800 = vmatpush2.msra.mxu0 0.0
  %3801 = vmatprep.subr.mxu0 0.0
  %3802 = vmatpush2.msra.mxu0 0.0
  %3803 = vmatprep.subr.mxu0 0.0
  %3804 = vmatpush2.msra.mxu0 0.0
  %3805 = vmatprep.subr.mxu0 0.0
  %3806 = vmatpush2.msra.mxu0 0.0
  %3807 = vmatprep.subr.mxu0 0.0
  %3808 = vmatpush2.msra.mxu0 0.0
  %3809 = vmatprep.mubr.f32.mxu0 0.0
  %3810 = vmatmul.mubr.f32.gmra.mxu0 %v3743
  %v3811 = vpop.f32.mrf.mxu0
  %v3812 = vadd.f32 %v3741, %v3811
  %v3813 = vpop.f32.mrf.mxu0
  %3814 = vdwg.mxu0
  %vm3815 = vcmask 8192
  %v3816 = vsel %vm3815, %v3812, -inf
  %3817 = vmax.xlane.f32.xlu0 %v3816
  %v3818 = vpop.xlane.xlu0 %3817
  %v3819 = vsub.f32 %v3812, %v3818
  %v3820 = vmul.f32 %v3819, 1.442695
  %v3821 = vpow.pop %v3820
  %v3822 = vsel %vm3815, %v3821, 0.0
  %3823 = vadd.xlane.f32.xlu0 %v3822
  %v3824 = vpop.xlane.xlu0 %3823
  %v3825 = vrcp.pop %v3824
  %v3826 = vmul.f32 %v3821, %v3825
  %3827 = vst.msk [vmem:[%s12] sm:$0x1] %vm3815, %v3826
  // Predicated region
  $region46: #{forward.1} parent=0 // pred_check
    _
  $region47: #{forward.1} parent=0 // pred_check_branch
    %3829 = sbr.rel (0) target = $region49
  $region48: #{forward.1} parent=0 // pred_region
    _
  $region49: #{forward.1} parent=0 // pred_fallthru
    _
  // Predicated region
  $region50: #{forward.1} parent=0 // pred_check
    _
  $region51: #{forward.1} parent=0 // pred_check_branch
    %3831 = sbr.rel (0) target = $region53
  $region52: #{forward.1} parent=0 // pred_region
    _
  $region53: #{forward.1} parent=0 // pred_fallthru
    _
  // Predicated region
  $region54: #{forward.1} parent=0 // pred_check
    _
  $region55: #{forward.1} parent=0 // pred_check_branch
    %3833 = sbr.rel (0) target = $region57
  $region56: #{forward.1} parent=0 // pred_region
    _
  $region57: #{forward.1} parent=0 // pred_fallthru
    _
  // Predicated region
  $region58: #{forward.1} parent=0 // pred_check
    _
  $region59: #{forward.1} parent=0 // pred_check_branch
    %3835 = sbr.rel (0) target = $region61
  $region60: #{forward.1} parent=0 // pred_region
    _
  $region61: #{forward.1} parent=0 // pred_fallthru
    _
  // Predicated region
  $region62: #{forward.1} parent=0 // pred_check
    _
  $region63: #{forward.1} parent=0 // pred_check_branch
    %3837 = sbr.rel (0) target = $region65
  $region64: #{forward.1} parent=0 // pred_region
    _
  $region65: #{forward.1} parent=0 // pred_fallthru
    _
  // Predicated region
  $region66: #{forward.1} parent=0 // pred_check
    _
  $region67: #{forward.1} parent=0 // pred_check_branch
    %3839 = sbr.rel (0) target = $region69
  $region68: #{forward.1} parent=0 // pred_region
    _
  $region69: #{forward.1} parent=0 // pred_fallthru
    _

</llo_original>
